<compile_context>
chip_gen: v7x
topology: tpu7x:2x2x1
jax: 0.10.0
libtpu: 0.0.40
codegen_flags: <defaults>
</compile_context>

<pallas_src>
import functools
import math

import jax
import jax.numpy as jnp
from jax import lax
from jax.experimental import pallas as pl
from jax.experimental.pallas import tpu as pltpu

NUM_MEL_BINS = 100
NUM_TEXT_TOKENS = 128

_VMEM_LIMIT = 48 * 1024 * 1024  # explicit scoped-VMEM budget (fits v5e/v6e/v7x)


def _round_up(x, m):
    return (x + m - 1) // m * m


def _tiles(dim, pref, align):
    """Return (padded_dim, tile) with tile % align == 0 (or tile == padded_dim)."""
    padded = _round_up(dim, align)
    if padded <= pref:
        return padded, padded
    padded = _round_up(dim, pref)
    return padded, pref


# ---------------------------------------------------------------------------
# Tiled fused linear:  out = [relu](x @ w + b) [+ residual]
# ---------------------------------------------------------------------------
def _linear_kernel(*refs, act, has_res):
    if has_res:
        x_ref, w_ref, b_ref, res_ref, o_ref, acc_ref = refs
    else:
        x_ref, w_ref, b_ref, o_ref, acc_ref = refs
        res_ref = None

    @pl.when(pl.program_id(2) == 0)
    def _():
        acc_ref[...] = jnp.zeros_like(acc_ref)

    acc_ref[...] += jnp.dot(x_ref[...], w_ref[...],
                            preferred_element_type=jnp.float32)

    @pl.when(pl.program_id(2) == pl.num_programs(2) - 1)
    def _():
        r = acc_ref[...] + b_ref[...]
        if act == "relu":
            r = jnp.maximum(r, 0.0)
        if has_res:
            r = r + res_ref[...]
        o_ref[...] = r.astype(o_ref.dtype)


def pallas_linear(x2d, w, b, *, residual=None, act=None, out_dtype=jnp.float32,
                  tm=256, tn=256, tk=512):
    M, K = x2d.shape
    Kw, N = w.shape
    assert K == Kw
    Mp, tm = _tiles(M, tm, 8)
    Np, tn = _tiles(N, tn, 128)
    Kp, tk = _tiles(K, tk, 128)

    x = jnp.pad(x2d.astype(jnp.bfloat16), ((0, Mp - M), (0, Kp - K)))
    wp = jnp.pad(w.astype(jnp.bfloat16), ((0, Kp - K), (0, Np - N)))
    bp = jnp.pad(b.astype(jnp.float32), (0, Np - N)).reshape(1, Np)

    has_res = residual is not None
    in_specs = [
        pl.BlockSpec((tm, tk), lambda i, j, k: (i, k)),
        pl.BlockSpec((tk, tn), lambda i, j, k: (k, j)),
        pl.BlockSpec((1, tn), lambda i, j, k: (0, j)),
    ]
    args = [x, wp, bp]
    if has_res:
        rp = jnp.pad(residual.astype(jnp.float32), ((0, Mp - M), (0, Np - N)))
        in_specs.append(pl.BlockSpec((tm, tn), lambda i, j, k: (i, j)))
        args.append(rp)

    kern = functools.partial(_linear_kernel, act=act, has_res=has_res)
    out = pl.pallas_call(
        kern,
        out_shape=jax.ShapeDtypeStruct((Mp, Np), out_dtype),
        grid=(Mp // tm, Np // tn, Kp // tk),
        in_specs=in_specs,
        out_specs=pl.BlockSpec((tm, tn), lambda i, j, k: (i, j)),
        scratch_shapes=[pltpu.VMEM((tm, tn), jnp.float32)],
        compiler_params=pltpu.CompilerParams(
            dimension_semantics=("parallel", "parallel", "arbitrary"),
            vmem_limit_bytes=_VMEM_LIMIT),
    )(*args)
    if (Mp, Np) != (M, N):
        out = out[:M, :N]
    return out


# ---------------------------------------------------------------------------
# LayerNorm (row-tiled, f32 statistics)
# ---------------------------------------------------------------------------
def _layernorm_kernel(x_ref, g_ref, b_ref, o_ref):
    x = x_ref[...]
    mu = jnp.mean(x, axis=-1, keepdims=True)
    xc = x - mu
    var = jnp.mean(xc * xc, axis=-1, keepdims=True)
    o_ref[...] = xc * lax.rsqrt(var + 1e-5) * g_ref[...] + b_ref[...]


def pallas_layernorm(x2d, gamma, beta, tm=512):
    M, D = x2d.shape
    Mp, tm = _tiles(M, tm, 8)
    x = jnp.pad(x2d, ((0, Mp - M), (0, 0))) if Mp != M else x2d
    out = pl.pallas_call(
        _layernorm_kernel,
        out_shape=jax.ShapeDtypeStruct((Mp, D), jnp.float32),
        grid=(Mp // tm,),
        in_specs=[pl.BlockSpec((tm, D), lambda i: (i, 0)),
                  pl.BlockSpec((1, D), lambda i: (0, 0)),
                  pl.BlockSpec((1, D), lambda i: (0, 0))],
        out_specs=pl.BlockSpec((tm, D), lambda i: (i, 0)),
        compiler_params=pltpu.CompilerParams(
            dimension_semantics=("parallel",),
            vmem_limit_bytes=_VMEM_LIMIT),
    )(x, gamma.reshape(1, D), beta.reshape(1, D))
    return out[:M] if Mp != M else out


# ---------------------------------------------------------------------------
# Attention: one batch row per grid step, all heads inside, lane-dense output.
# Key-padding built in-kernel from x_lens (scalar prefetch); causal via iota.
# ---------------------------------------------------------------------------
def _attn_kernel(*refs, nhead, scale, causal, has_lens):
    if has_lens:
        lens_ref, q_ref, k_ref, v_ref, o_ref = refs
    else:
        q_ref, k_ref, v_ref, o_ref = refs
        lens_ref = None

    q = q_ref[0]                     # (Tq, D) bf16
    k = k_ref[0]                     # (Tk, D) bf16
    v = v_ref[0]                     # (Tk, D) bf16
    Tq, D = q.shape
    Tk = k.shape[0]
    Dh = D // nhead

    neg = jnp.float32(-1e30)
    bias = jnp.zeros((Tq, Tk), jnp.float32)
    if has_lens:
        klen = lens_ref[pl.program_id(0)]
        col = lax.broadcasted_iota(jnp.int32, (Tq, Tk), 1)
        bias = jnp.where(col >= klen, neg, bias)
    if causal:
        row = lax.broadcasted_iota(jnp.int32, (Tq, Tk), 0)
        col = lax.broadcasted_iota(jnp.int32, (Tq, Tk), 1)
        bias = jnp.where(col > row, neg, bias)

    outs = []
    for h in range(nhead):                       # static unroll over heads
        sl = slice(h * Dh, (h + 1) * Dh)
        qh, kh, vh = q[:, sl], k[:, sl], v[:, sl]
        # trans_b dot_general: contract last axes, no XLU transpose of K
        s = lax.dot_general(qh, kh, dimension_numbers=(((1,), (1,)), ((), ())),
                            preferred_element_type=jnp.float32) * scale + bias
        m = jnp.max(s, axis=-1, keepdims=True)
        p = jnp.exp(s - m)
        denom = jnp.sum(p, axis=-1, keepdims=True)
        p = p * pl.reciprocal(denom, approx=True)
        outs.append(jnp.dot(p.astype(v.dtype), vh,
                            preferred_element_type=jnp.float32))
    o_ref[0] = jnp.concatenate(outs, axis=-1).astype(o_ref.dtype)


def pallas_attention(q, k, v, *, nhead, k_lens=None, causal=False):
    # TODO(synk): flash-style online-softmax Tk/Tq streaming for long sequences
    # (current kernel holds full (Tq,Tk) scores per head per batch row).
    B, Tq, D = q.shape
    Tk = k.shape[1]
    Dh = D // nhead
    has_lens = k_lens is not None
    kern = functools.partial(_attn_kernel, nhead=nhead, scale=1.0 / math.sqrt(Dh),
                             causal=causal, has_lens=has_lens)
    if has_lens:
        idx = lambda b, lens: (b, 0, 0)
        nsp, pre = 1, (k_lens.astype(jnp.int32),)
    else:
        idx = lambda b: (b, 0, 0)
        nsp, pre = 0, ()

    grid_spec = pltpu.PrefetchScalarGridSpec(
        num_scalar_prefetch=nsp,
        grid=(B,),
        in_specs=[pl.BlockSpec((1, Tq, D), idx),
                  pl.BlockSpec((1, Tk, D), idx),
                  pl.BlockSpec((1, Tk, D), idx)],
        out_specs=pl.BlockSpec((1, Tq, D), idx),
    )
    return pl.pallas_call(
        kern,
        out_shape=jax.ShapeDtypeStruct((B, Tq, D), jnp.bfloat16),
        grid_spec=grid_spec,
        compiler_params=pltpu.CompilerParams(
            dimension_semantics=("parallel",),
            vmem_limit_bytes=_VMEM_LIMIT),
    )(*pre, q.astype(jnp.bfloat16), k.astype(jnp.bfloat16), v.astype(jnp.bfloat16))


# ---------------------------------------------------------------------------
# Losses: row-tiled reduction, MSE(sum) + weighted BCE-with-logits(sum)
# ---------------------------------------------------------------------------
def _loss_kernel(pred_ref, tgt_ref, z_ref, t_ref, w_ref, mse_ref, bce_ref):
    @pl.when(pl.program_id(0) == 0)
    def _():
        mse_ref[...] = jnp.zeros_like(mse_ref)
        bce_ref[...] = jnp.zeros_like(bce_ref)

    d = pred_ref[...] - tgt_ref[...]
    mse_part = jnp.sum(jnp.sum(d * d, axis=1, keepdims=True), axis=0, keepdims=True)
    mse_ref[...] += mse_part

    z = z_ref[...]
    t = t_ref[...]
    # numerically-stable binary_cross_entropy_with_logits
    bce = jnp.maximum(z, 0.0) - z * t + jnp.log(1.0 + jnp.exp(-jnp.abs(z)))
    bce_part = jnp.sum(jnp.sum(w_ref[...] * bce, axis=1, keepdims=True),
                       axis=0, keepdims=True)
    bce_ref[...] += bce_part


def pallas_losses(predict, targets, logits, y_mask_f):
    B, T, Fdim = predict.shape
    M = B * T
    Fp = _round_up(Fdim, 128)
    Mp, tm = _tiles(M, 512, 8)

    pred = jnp.pad(predict.reshape(M, Fdim), ((0, Mp - M), (0, Fp - Fdim)))
    tgt = jnp.pad(targets.reshape(M, Fdim), ((0, Mp - M), (0, Fp - Fdim)))
    z = jnp.pad(logits.reshape(M, 1), ((0, Mp - M), (0, 0)))
    t = jnp.pad(y_mask_f.reshape(M, 1), ((0, Mp - M), (0, 0)))
    w = jnp.pad((1.0 + 4.0 * y_mask_f).reshape(M, 1), ((0, Mp - M), (0, 0)))

    mse, bce = pl.pallas_call(
        _loss_kernel,
        out_shape=(jax.ShapeDtypeStruct((1, 1), jnp.float32),
                   jax.ShapeDtypeStruct((1, 1), jnp.float32)),
        grid=(Mp // tm,),
        in_specs=[pl.BlockSpec((tm, Fp), lambda i: (i, 0)),
                  pl.BlockSpec((tm, Fp), lambda i: (i, 0)),
                  pl.BlockSpec((tm, 1), lambda i: (i, 0)),
                  pl.BlockSpec((tm, 1), lambda i: (i, 0)),
                  pl.BlockSpec((tm, 1), lambda i: (i, 0))],
        out_specs=(pl.BlockSpec((1, 1), lambda i: (0, 0)),
                   pl.BlockSpec((1, 1), lambda i: (0, 0))),
        compiler_params=pltpu.CompilerParams(
            dimension_semantics=("arbitrary",),
            vmem_limit_bytes=_VMEM_LIMIT),
    )(pred, tgt, z, t, w)
    return mse[0, 0], bce[0, 0]


# ---------------------------------------------------------------------------
# Transformer building blocks (glue around the kernels)
# ---------------------------------------------------------------------------
def ln3d(x, lnp):
    B, T, D = x.shape
    return pallas_layernorm(x.reshape(B * T, D), lnp["g"], lnp["b"]).reshape(B, T, D)


def mha_self(x_ln, p, nhead, *, residual, k_lens=None, causal=False):
    B, T, D = x_ln.shape
    qkv = pallas_linear(x_ln.reshape(B * T, D), p["w_qkv"], p["b_qkv"],
                        out_dtype=jnp.bfloat16)            # (B*T, 3D) fused projection
    q = qkv[:, :D].reshape(B, T, D)
    k = qkv[:, D:2 * D].reshape(B, T, D)
    v = qkv[:, 2 * D:].reshape(B, T, D)
    ctx = pallas_attention(q, k, v, nhead=nhead, k_lens=k_lens, causal=causal)
    out = pallas_linear(ctx.reshape(B * T, D), p["w_o"], p["b_o"],
                        residual=residual.reshape(B * T, D))   # residual fused
    return out.reshape(B, T, D)


def mha_cross(x_ln, memory, p, nhead, *, residual, k_lens):
    B, Tq, D = x_ln.shape
    Tk = memory.shape[1]
    q = pallas_linear(x_ln.reshape(B * Tq, D), p["w_q"], p["b_q"],
                      out_dtype=jnp.bfloat16).reshape(B, Tq, D)
    kv = pallas_linear(memory.reshape(B * Tk, D), p["w_kv"], p["b_kv"],
                       out_dtype=jnp.bfloat16)              # fused K|V projection
    k = kv[:, :D].reshape(B, Tk, D)
    v = kv[:, D:].reshape(B, Tk, D)
    ctx = pallas_attention(q, k, v, nhead=nhead, k_lens=k_lens, causal=False)
    out = pallas_linear(ctx.reshape(B * Tq, D), p["w_o"], p["b_o"],
                        residual=residual.reshape(B * Tq, D))
    return out.reshape(B, Tq, D)


def ffn_res(x_ln, fp, *, residual):
    B, T, D = x_ln.shape
    h = pallas_linear(x_ln.reshape(B * T, D), fp["w1"], fp["b1"],
                      act="relu", out_dtype=jnp.bfloat16)   # relu fused
    out = pallas_linear(h, fp["w2"], fp["b2"],
                        residual=residual.reshape(B * T, D))  # residual fused
    return out.reshape(B, T, D)


def encoder_layer(x, p, nhead, x_lens):
    # norm_first=True pre-norm layer
    h = ln3d(x, p["ln1"])
    x = mha_self(h, p["attn"], nhead, residual=x, k_lens=x_lens, causal=False)
    h = ln3d(x, p["ln2"])
    x = ffn_res(h, p["ffn"], residual=x)
    return x


def decoder_layer(x, memory, p, nhead, x_lens):
    h = ln3d(x, p["ln1"])
    x = mha_self(h, p["self_attn"], nhead, residual=x, k_lens=None, causal=True)
    h = ln3d(x, p["ln2"])
    x = mha_cross(h, memory, p["cross_attn"], nhead, residual=x, k_lens=x_lens)
    h = ln3d(x, p["ln3"])
    x = ffn_res(h, p["ffn"], residual=x)
    return x


def sine_positional_encoding(length, d_model):
    pos = jnp.arange(length, dtype=jnp.float32)[:, None]
    div = jnp.exp(
        jnp.arange(0, d_model, 2, dtype=jnp.float32) * (-math.log(10000.0) / d_model)
    )
    pe = jnp.zeros((length, d_model), jnp.float32)
    pe = pe.at[:, 0::2].set(jnp.sin(pos * div))
    pe = pe.at[:, 1::2].set(jnp.cos(pos * div))
    return pe


# ---------------------------------------------------------------------------
# Full forward pass
# ---------------------------------------------------------------------------
def transformer_forward(params, x_tokens, x_lens, y, y_lens, *, d_model, nhead, num_layers):
    B, S = x_tokens.shape
    T = y.shape[1]
    x_lens = x_lens.astype(jnp.int32)
    y_lens = y_lens.astype(jnp.int32)

    # make_pad_mask: True = padded position
    y_mask = jnp.arange(T)[None, :] >= y_lens[:, None]
    y_mask_f = y_mask.astype(jnp.float32)
    data_mask = 1.0 - y_mask_f[..., None]

    # ---- encoder side ----
    xe = jnp.take(params["emb"], x_tokens, axis=0)  # TokenEmbedding (gather = glue)
    # encoder_prenet = Identity; SinePositionalEmbedding(scale=True, alpha=1.0)
    # NOTE: dropout layers run in eval semantics (identity) for determinism.
    xe = xe * math.sqrt(d_model) + sine_positional_encoding(S, d_model)[None]
    mem = xe
    for l in range(num_layers):
        mem = encoder_layer(mem, params["enc"][l], nhead, x_lens)
    mem = ln3d(mem, params["enc_norm"])  # encoder final LayerNorm (norm_first=True)

    # ---- decoder side ----
    y_masked = y * data_mask
    y_pad = jnp.pad(y_masked, ((0, 0), (1, 0), (0, 0)))  # F.pad(..., (0,0,1,0,0,0))
    y_in, targets = y_pad[:, :-1], y_pad[:, 1:]

    y_emb = pallas_linear(
        y_in.reshape(B * T, NUM_MEL_BINS), params["prenet_w"], params["prenet_b"]
    ).reshape(B, T, d_model)
    y_pos = y_emb + sine_positional_encoding(T, d_model)[None]  # scale=False, alpha=1.0

    dec = y_pos
    for l in range(num_layers):
        dec = decoder_layer(dec, mem, params["dec"][l], nhead, x_lens)
    dec = ln3d(dec, params["dec_norm"])

    # fused predict + stop head (N = 100+1 padded to 128 inside pallas_linear)
    dec2d = dec.reshape(B * T, d_model)
    head = pallas_linear(dec2d, params["head_w"], params["head_b"])
    predict = head[:, :NUM_MEL_BINS].reshape(B, T, NUM_MEL_BINS)
    logits = head[:, NUM_MEL_BINS].reshape(B, T)

    mse_loss, stop_loss = pallas_losses(predict, targets, logits, y_mask_f)

    # BinaryAccuracy(threshold=0.5, multidim_average='samplewise') — tiny metric glue
    preds = (jax.nn.sigmoid(logits) >= 0.5).astype(jnp.int32)
    sample_acc = jnp.mean((preds == y_mask.astype(jnp.int32)).astype(jnp.float32), axis=-1)
    stop_accuracy = jnp.mean(sample_acc) * jnp.sum(y_lens).astype(jnp.float32)

    total_loss = mse_loss + 100.0 * stop_loss
    metrics = {"stop_loss": stop_loss, "stop_accuracy": stop_accuracy}
    return (mem, predict), total_loss, metrics


# ---------------------------------------------------------------------------
# Deterministic parameter init (synthetic; matmul weights stored bf16, fused)
# ---------------------------------------------------------------------------
def init_params(key, d_model, nhead, num_layers):
    keys = iter(jax.random.split(key, 512))

    def w(shape):
        return (0.02 * jax.random.normal(next(keys), shape, jnp.float32)).astype(jnp.bfloat16)

    def zeros(shape):
        return jnp.zeros(shape, jnp.float32)

    def self_attn_p():
        return dict(
            w_qkv=w((d_model, 3 * d_model)), b_qkv=zeros((3 * d_model,)),
            w_o=w((d_model, d_model)), b_o=zeros((d_model,)),
        )

    def cross_attn_p():
        return dict(
            w_q=w((d_model, d_model)), b_q=zeros((d_model,)),
            w_kv=w((d_model, 2 * d_model)), b_kv=zeros((2 * d_model,)),
            w_o=w((d_model, d_model)), b_o=zeros((d_model,)),
        )

    def ln_p():
        return dict(g=jnp.ones((d_model,), jnp.float32), b=zeros((d_model,)))

    def ffn_p():
        return dict(
            w1=w((d_model, 4 * d_model)), b1=zeros((4 * d_model,)),
            w2=w((4 * d_model, d_model)), b2=zeros((d_model,)),
        )

    enc_layers = [dict(attn=self_attn_p(), ln1=ln_p(), ln2=ln_p(), ffn=ffn_p())
                  for _ in range(num_layers)]
    dec_layers = [dict(self_attn=self_attn_p(), cross_attn=cross_attn_p(),
                       ln1=ln_p(), ln2=ln_p(), ln3=ln_p(), ffn=ffn_p())
                  for _ in range(num_layers)]

    # TODO(synk): add_prenet=True conv/batchnorm prenet branch not instantiated
    # (module default path with add_prenet=False is implemented).
    return dict(
        emb=0.02 * jax.random.normal(next(keys), (NUM_TEXT_TOKENS, d_model), jnp.float32),
        enc=enc_layers,
        enc_norm=ln_p(),
        dec=dec_layers,
        dec_norm=ln_p(),
        prenet_w=w((NUM_MEL_BINS, d_model)), prenet_b=zeros((d_model,)),
        head_w=w((d_model, NUM_MEL_BINS + 1)), head_b=zeros((NUM_MEL_BINS + 1,)),
    )


if __name__ == "__main__":
    d_model, nhead, num_layers = 32, 4, 2
    B, S, T = 2, 8, 8

    key = jax.random.PRNGKey(0)
    kp, kx, ky = jax.random.split(key, 3)

    params = init_params(kp, d_model, nhead, num_layers)
    x_tokens = jax.random.randint(kx, (B, S), 1, NUM_TEXT_TOKENS)
    x_lens = jnp.array([S, S - 2], dtype=jnp.int32)          # max == S
    y = jax.random.normal(ky, (B, T, NUM_MEL_BINS), dtype=jnp.float32)
    y_lens = jnp.array([T, T - 3], dtype=jnp.int32)          # max == T

    fwd = jax.jit(functools.partial(
        transformer_forward, d_model=d_model, nhead=nhead, num_layers=num_layers))

    (enc_out, predict), total_loss, metrics = fwd(params, x_tokens, x_lens, y, y_lens)
    jax.block_until_ready((enc_out, predict, total_loss, metrics))
    print("KERNEL_OK")
</pallas_src>

<mosaic_0001>
module attributes {stable_mosaic.version = 11 : i64} {
  func.func @_layernorm_kernel(%arg0: i32, %arg1: memref<16x32xf32, #tpu.memory_space<vmem>>, %arg2: memref<1x32xf32, #tpu.memory_space<vmem>>, %arg3: memref<1x32xf32, #tpu.memory_space<vmem>>, %arg4: memref<16x32xf32, #tpu.memory_space<vmem>>) attributes {dimension_semantics = [#tpu.dimension_semantics<parallel>], iteration_bounds = array<i64: 1>, scalar_prefetch = 0 : i64, scratch_operands = 0 : i64, tpu.core_type = #tpu.core_type<tc>, window_params = [{transform_indices = @transform_0, window_bounds = array<i64: 16, 32>}, {pipeline_mode = #tpu.pipeline_mode<synchronous>, transform_indices = @transform_1, window_bounds = array<i64: 1, 32>}, {pipeline_mode = #tpu.pipeline_mode<synchronous>, transform_indices = @transform_2, window_bounds = array<i64: 1, 32>}, {transform_indices = @transform_3, window_bounds = array<i64: 16, 32>}]} {
    %c0 = arith.constant 0 : index
    %c0_0 = arith.constant 0 : index
    %0 = vector.load %arg1[%c0, %c0_0] : memref<16x32xf32, #tpu.memory_space<vmem>>, vector<16x32xf32>
    %cst = arith.constant dense<0.000000e+00> : vector<16xf32>
    %1 = vector.multi_reduction <add>, %0, %cst [1] : vector<16x32xf32> to vector<16xf32>
    %2 = vector.shape_cast %1 : vector<16xf32> to vector<16x1xf32>
    %cst_1 = arith.constant 3.200000e+01 : f32
    %3 = vector.broadcast %cst_1 : f32 to vector<16x1xf32>
    %4 = arith.divf %2, %3 : vector<16x1xf32>
    %5 = vector.broadcast %4 : vector<16x1xf32> to vector<16x32xf32>
    %6 = arith.subf %0, %5 : vector<16x32xf32>
    %7 = arith.mulf %6, %6 : vector<16x32xf32>
    %cst_2 = arith.constant dense<0.000000e+00> : vector<16xf32>
    %8 = vector.multi_reduction <add>, %7, %cst_2 [1] : vector<16x32xf32> to vector<16xf32>
    %9 = vector.shape_cast %8 : vector<16xf32> to vector<16x1xf32>
    %cst_3 = arith.constant 3.200000e+01 : f32
    %10 = vector.broadcast %cst_3 : f32 to vector<16x1xf32>
    %11 = arith.divf %9, %10 : vector<16x1xf32>
    %cst_4 = arith.constant 9.99999974E-6 : f32
    %12 = vector.broadcast %cst_4 : f32 to vector<16x1xf32>
    %13 = arith.addf %11, %12 : vector<16x1xf32>
    %14 = math.rsqrt %13 : vector<16x1xf32>
    %15 = vector.broadcast %14 : vector<16x1xf32> to vector<16x32xf32>
    %16 = arith.mulf %6, %15 : vector<16x32xf32>
    %c0_5 = arith.constant 0 : index
    %c0_6 = arith.constant 0 : index
    %17 = vector.load %arg2[%c0_5, %c0_6] : memref<1x32xf32, #tpu.memory_space<vmem>>, vector<1x32xf32>
    %18 = vector.broadcast %17 : vector<1x32xf32> to vector<16x32xf32>
    %19 = arith.mulf %16, %18 : vector<16x32xf32>
    %c0_7 = arith.constant 0 : index
    %c0_8 = arith.constant 0 : index
    %20 = vector.load %arg3[%c0_7, %c0_8] : memref<1x32xf32, #tpu.memory_space<vmem>>, vector<1x32xf32>
    %21 = vector.broadcast %20 : vector<1x32xf32> to vector<16x32xf32>
    %22 = arith.addf %19, %21 : vector<16x32xf32>
    %c0_9 = arith.constant 0 : index
    %c0_10 = arith.constant 0 : index
    %23 = vector.load %arg4[%c0_9, %c0_10] : memref<16x32xf32, #tpu.memory_space<vmem>>, vector<16x32xf32>
    tpu.vector_store %arg4[%c0_9, %c0_10], %22 {strides = array<i32>} : memref<16x32xf32, #tpu.memory_space<vmem>>, vector<16x32xf32>,
    return
  }
  func.func @transform_0(%arg0: i32) -> (i32, i32) {
    %c0_i32 = arith.constant 0 : i32
    %c0_i32_0 = arith.constant 0 : i32
    return %arg0, %c0_i32 : i32, i32
  }
  func.func @transform_1(%arg0: i32) -> (i32, i32) {
    %c0_i32 = arith.constant 0 : i32
    %c0_i32_0 = arith.constant 0 : i32
    %c0_i32_1 = arith.constant 0 : i32
    return %c0_i32, %c0_i32_0 : i32, i32
  }
  func.func @transform_2(%arg0: i32) -> (i32, i32) {
    %c0_i32 = arith.constant 0 : i32
    %c0_i32_0 = arith.constant 0 : i32
    %c0_i32_1 = arith.constant 0 : i32
    return %c0_i32, %c0_i32_0 : i32, i32
  }
  func.func @transform_3(%arg0: i32) -> (i32, i32) {
    %c0_i32 = arith.constant 0 : i32
    %c0_i32_0 = arith.constant 0 : i32
    return %arg0, %c0_i32 : i32, i32
  }
}

module attributes {stable_mosaic.version = 11 : i64} {
  func.func @_linear_kernel(%arg0: i32, %arg1: i32, %arg2: i32, %arg3: memref<16x128xbf16, #tpu.memory_space<vmem>>, %arg4: memref<128x128xbf16, #tpu.memory_space<vmem>>, %arg5: memref<1x128xf32, #tpu.memory_space<vmem>>, %arg6: memref<16x128xf32, #tpu.memory_space<vmem>>, %arg7: memref<16x128xf32, #tpu.memory_space<vmem>>) attributes {dimension_semantics = [#tpu.dimension_semantics<parallel>, #tpu.dimension_semantics<parallel>, #tpu.dimension_semantics<arbitrary>], iteration_bounds = array<i64: 1, 1, 1>, scalar_prefetch = 0 : i64, scratch_operands = 1 : i64, tpu.core_type = #tpu.core_type<tc>, window_params = [{transform_indices = @transform_0, window_bounds = array<i64: 16, 128>}, {transform_indices = @transform_1, window_bounds = array<i64: 128, 128>}, {transform_indices = @transform_2, window_bounds = array<i64: 1, 128>}, {transform_indices = @transform_3, window_bounds = array<i64: 16, 128>}]} {
    %c0_i32 = arith.constant 0 : i32
    %0 = arith.cmpi eq, %arg2, %c0_i32 : i32
    %1 = arith.extui %0 : i1 to i32
    %c0_i32_0 = arith.constant 0 : i32
    %2 = arith.cmpi ne, %1, %c0_i32_0 : i32
    scf.if %2 {
      %cst_10 = arith.constant 0.000000e+00 : f32
      %12 = vector.broadcast %cst_10 : f32 to vector<16x128xf32>
      %c0_11 = arith.constant 0 : index
      %c0_12 = arith.constant 0 : index
      %13 = vector.load %arg7[%c0_11, %c0_12] : memref<16x128xf32, #tpu.memory_space<vmem>>, vector<16x128xf32>
      tpu.vector_store %arg7[%c0_11, %c0_12], %12 {strides = array<i32>} : memref<16x128xf32, #tpu.memory_space<vmem>>, vector<16x128xf32>,
    } else {
    }
    %c0 = arith.constant 0 : index
    %c0_1 = arith.constant 0 : index
    %3 = vector.load %arg7[%c0, %c0_1] : memref<16x128xf32, #tpu.memory_space<vmem>>, vector<16x128xf32>
    %c0_2 = arith.constant 0 : index
    %c0_3 = arith.constant 0 : index
    %4 = vector.load %arg3[%c0_2, %c0_3] : memref<16x128xbf16, #tpu.memory_space<vmem>>, vector<16x128xbf16>
    %c0_4 = arith.constant 0 : index
    %c0_5 = arith.constant 0 : index
    %5 = vector.load %arg4[%c0_4, %c0_5] : memref<128x128xbf16, #tpu.memory_space<vmem>>, vector<128x128xbf16>
    %cst = arith.constant dense<0.000000e+00> : vector<16x128xf32>
    %6 = tpu.matmul %4, %5, %cst {dimension_numbers = #tpu.dot_dimension_numbers<[1], [0], [0], [1], [0, 0, 1, 1], [], []>} : vector<16x128xbf16>, vector<128x128xbf16>, vector<16x128xf32> -> vector<16x128xf32>
    %7 = arith.addf %3, %6 : vector<16x128xf32>
    %c0_6 = arith.constant 0 : index
    %c0_7 = arith.constant 0 : index
    %8 = vector.load %arg7[%c0_6, %c0_7] : memref<16x128xf32, #tpu.memory_space<vmem>>, vector<16x128xf32>
    tpu.vector_store %arg7[%c0_6, %c0_7], %7 {strides = array<i32>} : memref<16x128xf32, #tpu.memory_space<vmem>>, vector<16x128xf32>,
    %c0_i32_8 = arith.constant 0 : i32
    %9 = arith.cmpi eq, %arg2, %c0_i32_8 : i32
    %10 = arith.extui %9 : i1 to i32
    %c0_i32_9 = arith.constant 0 : i32
    %11 = arith.cmpi ne, %10, %c0_i32_9 : i32
    scf.if %11 {
      %c0_10 = arith.constant 0 : index
      %c0_11 = arith.constant 0 : index
      %12 = vector.load %arg7[%c0_10, %c0_11] : memref<16x128xf32, #tpu.memory_space<vmem>>, vector<16x128xf32>
      %c0_12 = arith.constant 0 : index
      %c0_13 = arith.constant 0 : index
      %13 = vector.load %arg5[%c0_12, %c0_13] : memref<1x128xf32, #tpu.memory_space<vmem>>, vector<1x128xf32>
      %14 = vector.broadcast %13 : vector<1x128xf32> to vector<16x128xf32>
      %15 = arith.addf %12, %14 : vector<16x128xf32>
      %c0_14 = arith.constant 0 : index
      %c0_15 = arith.constant 0 : index
      %16 = vector.load %arg6[%c0_14, %c0_15] : memref<16x128xf32, #tpu.memory_space<vmem>>, vector<16x128xf32>
      tpu.vector_store %arg6[%c0_14, %c0_15], %15 {strides = array<i32>} : memref<16x128xf32, #tpu.memory_space<vmem>>, vector<16x128xf32>,
    } else {
    }
    return
  }
  func.func @transform_0(%arg0: i32, %arg1: i32, %arg2: i32) -> (i32, i32) {
    %c0_i32 = arith.constant 0 : i32
    return %arg0, %arg2 : i32, i32
  }
  func.func @transform_1(%arg0: i32, %arg1: i32, %arg2: i32) -> (i32, i32) {
    %c0_i32 = arith.constant 0 : i32
    return %arg2, %arg1 : i32, i32
  }
  func.func @transform_2(%arg0: i32, %arg1: i32, %arg2: i32) -> (i32, i32) {
    %c0_i32 = arith.constant 0 : i32
    %c0_i32_0 = arith.constant 0 : i32
    return %c0_i32, %arg1 : i32, i32
  }
  func.func @transform_3(%arg0: i32, %arg1: i32, %arg2: i32) -> (i32, i32) {
    %c0_i32 = arith.constant 0 : i32
    return %arg0, %arg1 : i32, i32
  }
}

module attributes {stable_mosaic.version = 11 : i64} {
  func.func @_linear_kernel(%arg0: i32, %arg1: i32, %arg2: i32, %arg3: memref<16x128xbf16, #tpu.memory_space<vmem>>, %arg4: memref<128x128xbf16, #tpu.memory_space<vmem>>, %arg5: memref<1x128xf32, #tpu.memory_space<vmem>>, %arg6: memref<16x128xbf16, #tpu.memory_space<vmem>>, %arg7: memref<16x128xf32, #tpu.memory_space<vmem>>) attributes {dimension_semantics = [#tpu.dimension_semantics<parallel>, #tpu.dimension_semantics<parallel>, #tpu.dimension_semantics<arbitrary>], iteration_bounds = array<i64: 1, 1, 1>, scalar_prefetch = 0 : i64, scratch_operands = 1 : i64, tpu.core_type = #tpu.core_type<tc>, window_params = [{transform_indices = @transform_0, window_bounds = array<i64: 16, 128>}, {transform_indices = @transform_1, window_bounds = array<i64: 128, 128>}, {transform_indices = @transform_2, window_bounds = array<i64: 1, 128>}, {transform_indices = @transform_3, window_bounds = array<i64: 16, 128>}]} {
    %c0_i32 = arith.constant 0 : i32
    %0 = arith.cmpi eq, %arg2, %c0_i32 : i32
    %1 = arith.extui %0 : i1 to i32
    %c0_i32_0 = arith.constant 0 : i32
    %2 = arith.cmpi ne, %1, %c0_i32_0 : i32
    scf.if %2 {
      %cst_10 = arith.constant 0.000000e+00 : f32
      %12 = vector.broadcast %cst_10 : f32 to vector<16x128xf32>
      %c0_11 = arith.constant 0 : index
      %c0_12 = arith.constant 0 : index
      %13 = vector.load %arg7[%c0_11, %c0_12] : memref<16x128xf32, #tpu.memory_space<vmem>>, vector<16x128xf32>
      tpu.vector_store %arg7[%c0_11, %c0_12], %12 {strides = array<i32>} : memref<16x128xf32, #tpu.memory_space<vmem>>, vector<16x128xf32>,
    } else {
    }
    %c0 = arith.constant 0 : index
    %c0_1 = arith.constant 0 : index
    %3 = vector.load %arg7[%c0, %c0_1] : memref<16x128xf32, #tpu.memory_space<vmem>>, vector<16x128xf32>
    %c0_2 = arith.constant 0 : index
    %c0_3 = arith.constant 0 : index
    %4 = vector.load %arg3[%c0_2, %c0_3] : memref<16x128xbf16, #tpu.memory_space<vmem>>, vector<16x128xbf16>
    %c0_4 = arith.constant 0 : index
    %c0_5 = arith.constant 0 : index
    %5 = vector.load %arg4[%c0_4, %c0_5] : memref<128x128xbf16, #tpu.memory_space<vmem>>, vector<128x128xbf16>
    %cst = arith.constant dense<0.000000e+00> : vector<16x128xf32>
    %6 = tpu.matmul %4, %5, %cst {dimension_numbers = #tpu.dot_dimension_numbers<[1], [0], [0], [1], [0, 0, 1, 1], [], []>} : vector<16x128xbf16>, vector<128x128xbf16>, vector<16x128xf32> -> vector<16x128xf32>
    %7 = arith.addf %3, %6 : vector<16x128xf32>
    %c0_6 = arith.constant 0 : index
    %c0_7 = arith.constant 0 : index
    %8 = vector.load %arg7[%c0_6, %c0_7] : memref<16x128xf32, #tpu.memory_space<vmem>>, vector<16x128xf32>
    tpu.vector_store %arg7[%c0_6, %c0_7], %7 {strides = array<i32>} : memref<16x128xf32, #tpu.memory_space<vmem>>, vector<16x128xf32>,
    %c0_i32_8 = arith.constant 0 : i32
    %9 = arith.cmpi eq, %arg2, %c0_i32_8 : i32
    %10 = arith.extui %9 : i1 to i32
    %c0_i32_9 = arith.constant 0 : i32
    %11 = arith.cmpi ne, %10, %c0_i32_9 : i32
    scf.if %11 {
      %c0_10 = arith.constant 0 : index
      %c0_11 = arith.constant 0 : index
      %12 = vector.load %arg7[%c0_10, %c0_11] : memref<16x128xf32, #tpu.memory_space<vmem>>, vector<16x128xf32>
      %c0_12 = arith.constant 0 : index
      %c0_13 = arith.constant 0 : index
      %13 = vector.load %arg5[%c0_12, %c0_13] : memref<1x128xf32, #tpu.memory_space<vmem>>, vector<1x128xf32>
      %14 = vector.broadcast %13 : vector<1x128xf32> to vector<16x128xf32>
      %15 = arith.addf %12, %14 : vector<16x128xf32>
      %16 = arith.truncf %15 : vector<16x128xf32> to vector<16x128xbf16>
      %c0_14 = arith.constant 0 : index
      %c0_15 = arith.constant 0 : index
      %17 = vector.load %arg6[%c0_14, %c0_15] : memref<16x128xbf16, #tpu.memory_space<vmem>>, vector<16x128xbf16>
      tpu.vector_store %arg6[%c0_14, %c0_15], %16 {strides = array<i32>} : memref<16x128xbf16, #tpu.memory_space<vmem>>, vector<16x128xbf16>,
    } else {
    }
    return
  }
  func.func @transform_0(%arg0: i32, %arg1: i32, %arg2: i32) -> (i32, i32) {
    %c0_i32 = arith.constant 0 : i32
    return %arg0, %arg2 : i32, i32
  }
  func.func @transform_1(%arg0: i32, %arg1: i32, %arg2: i32) -> (i32, i32) {
    %c0_i32 = arith.constant 0 : i32
    return %arg2, %arg1 : i32, i32
  }
  func.func @transform_2(%arg0: i32, %arg1: i32, %arg2: i32) -> (i32, i32) {
    %c0_i32 = arith.constant 0 : i32
    %c0_i32_0 = arith.constant 0 : i32
    return %c0_i32, %arg1 : i32, i32
  }
  func.func @transform_3(%arg0: i32, %arg1: i32, %arg2: i32) -> (i32, i32) {
    %c0_i32 = arith.constant 0 : i32
    return %arg0, %arg1 : i32, i32
  }
}

module attributes {stable_mosaic.version = 11 : i64} {
  func.func @_attn_kernel(%arg0: i32, %arg1: memref<2xi32, #tpu.memory_space<smem>>, %arg2: memref<1x8x32xbf16, #tpu.memory_space<vmem>>, %arg3: memref<1x8x32xbf16, #tpu.memory_space<vmem>>, %arg4: memref<1x8x32xbf16, #tpu.memory_space<vmem>>, %arg5: memref<1x8x32xbf16, #tpu.memory_space<vmem>>) attributes {dimension_semantics = [#tpu.dimension_semantics<parallel>], iteration_bounds = array<i64: 2>, scalar_prefetch = 1 : i64, scratch_operands = 0 : i64, tpu.core_type = #tpu.core_type<tc>, window_params = [{transform_indices = @transform_0, window_bounds = array<i64: 1, 8, 32>}, {transform_indices = @transform_1, window_bounds = array<i64: 1, 8, 32>}, {transform_indices = @transform_2, window_bounds = array<i64: 1, 8, 32>}, {transform_indices = @transform_3, window_bounds = array<i64: 1, 8, 32>}]} {
    %c0 = arith.constant 0 : index
    %c0_0 = arith.constant 0 : index
    %c0_1 = arith.constant 0 : index
    %0 = vector.load %arg2[%c0, %c0_0, %c0_1] : memref<1x8x32xbf16, #tpu.memory_space<vmem>>, vector<1x8x32xbf16>
    %1 = vector.shape_cast %0 : vector<1x8x32xbf16> to vector<8x32xbf16>
    %c0_2 = arith.constant 0 : index
    %c0_3 = arith.constant 0 : index
    %c0_4 = arith.constant 0 : index
    %2 = vector.load %arg3[%c0_2, %c0_3, %c0_4] : memref<1x8x32xbf16, #tpu.memory_space<vmem>>, vector<1x8x32xbf16>
    %3 = vector.shape_cast %2 : vector<1x8x32xbf16> to vector<8x32xbf16>
    %c0_5 = arith.constant 0 : index
    %c0_6 = arith.constant 0 : index
    %c0_7 = arith.constant 0 : index
    %4 = vector.load %arg4[%c0_5, %c0_6, %c0_7] : memref<1x8x32xbf16, #tpu.memory_space<vmem>>, vector<1x8x32xbf16>
    %5 = vector.shape_cast %4 : vector<1x8x32xbf16> to vector<8x32xbf16>
    %cst = arith.constant 0.000000e+00 : f32
    %6 = vector.broadcast %cst : f32 to vector<8x8xf32>
    %7 = arith.index_cast %arg0 : i32 to index
    %8 = memref.load %arg1[%7] : memref<2xi32, #tpu.memory_space<smem>>
    %9 = tpu.iota {dimensions = array<i32: 1>} : vector<8x8xi32>
    %10 = vector.broadcast %8 : i32 to vector<8x8xi32>
    %11 = arith.cmpi sge, %9, %10 : vector<8x8xi32>
    %cst_8 = arith.constant -1.000000e+30 : f32
    %12 = vector.broadcast %cst_8 : f32 to vector<8x8xf32>
    %13 = arith.select %11, %12, %6 : vector<8x8xi1>, vector<8x8xf32>
    %14 = vector.extract_strided_slice %1 {offsets = [0, 0], sizes = [8, 8], strides = [1, 1]} : vector<8x32xbf16> to vector<8x8xbf16>
    %15 = vector.extract_strided_slice %3 {offsets = [0, 0], sizes = [8, 8], strides = [1, 1]} : vector<8x32xbf16> to vector<8x8xbf16>
    %16 = vector.extract_strided_slice %5 {offsets = [0, 0], sizes = [8, 8], strides = [1, 1]} : vector<8x32xbf16> to vector<8x8xbf16>
    %cst_9 = arith.constant dense<0.000000e+00> : vector<8x8xf32>
    %17 = tpu.matmul %14, %15, %cst_9 {dimension_numbers = #tpu.dot_dimension_numbers<[1], [1], [0], [0], [0, 0, 1, 0], [], []>} : vector<8x8xbf16>, vector<8x8xbf16>, vector<8x8xf32> -> vector<8x8xf32>
    %cst_10 = arith.constant 0.353553385 : f32
    %18 = vector.broadcast %cst_10 : f32 to vector<8x8xf32>
    %19 = arith.mulf %17, %18 : vector<8x8xf32>
    %20 = arith.addf %19, %13 : vector<8x8xf32>
    %cst_11 = arith.constant dense<0xFF800000> : vector<8xf32>
    %21 = vector.multi_reduction <maximumf>, %20, %cst_11 [1] : vector<8x8xf32> to vector<8xf32>
    %22 = vector.shape_cast %21 : vector<8xf32> to vector<8x1xf32>
    %23 = vector.broadcast %22 : vector<8x1xf32> to vector<8x8xf32>
    %24 = arith.subf %20, %23 : vector<8x8xf32>
    %25 = math.exp %24 : vector<8x8xf32>
    %cst_12 = arith.constant dense<0.000000e+00> : vector<8xf32>
    %26 = vector.multi_reduction <add>, %25, %cst_12 [1] : vector<8x8xf32> to vector<8xf32>
    %27 = vector.shape_cast %26 : vector<8xf32> to vector<8x1xf32>
    %28 = tpu.reciprocal %27 {approx = true} : vector<8x1xf32> -> vector<8x1xf32>
    %29 = vector.broadcast %28 : vector<8x1xf32> to vector<8x8xf32>
    %30 = arith.mulf %25, %29 : vector<8x8xf32>
    %31 = arith.truncf %30 : vector<8x8xf32> to vector<8x8xbf16>
    %cst_13 = arith.constant dense<0.000000e+00> : vector<8x8xf32>
    %32 = tpu.matmul %31, %16, %cst_13 {dimension_numbers = #tpu.dot_dimension_numbers<[1], [0], [0], [1], [0, 0, 1, 1], [], []>} : vector<8x8xbf16>, vector<8x8xbf16>, vector<8x8xf32> -> vector<8x8xf32>
    %33 = vector.extract_strided_slice %1 {offsets = [0, 8], sizes = [8, 8], strides = [1, 1]} : vector<8x32xbf16> to vector<8x8xbf16>
    %34 = vector.extract_strided_slice %3 {offsets = [0, 8], sizes = [8, 8], strides = [1, 1]} : vector<8x32xbf16> to vector<8x8xbf16>
    %35 = vector.extract_strided_slice %5 {offsets = [0, 8], sizes = [8, 8], strides = [1, 1]} : vector<8x32xbf16> to vector<8x8xbf16>
    %cst_14 = arith.constant dense<0.000000e+00> : vector<8x8xf32>
    %36 = tpu.matmul %33, %34, %cst_14 {dimension_numbers = #tpu.dot_dimension_numbers<[1], [1], [0], [0], [0, 0, 1, 0], [], []>} : vector<8x8xbf16>, vector<8x8xbf16>, vector<8x8xf32> -> vector<8x8xf32>
    %cst_15 = arith.constant 0.353553385 : f32
    %37 = vector.broadcast %cst_15 : f32 to vector<8x8xf32>
    %38 = arith.mulf %36, %37 : vector<8x8xf32>
    %39 = arith.addf %38, %13 : vector<8x8xf32>
    %cst_16 = arith.constant dense<0xFF800000> : vector<8xf32>
    %40 = vector.multi_reduction <maximumf>, %39, %cst_16 [1] : vector<8x8xf32> to vector<8xf32>
    %41 = vector.shape_cast %40 : vector<8xf32> to vector<8x1xf32>
    %42 = vector.broadcast %41 : vector<8x1xf32> to vector<8x8xf32>
    %43 = arith.subf %39, %42 : vector<8x8xf32>
    %44 = math.exp %43 : vector<8x8xf32>
    %cst_17 = arith.constant dense<0.000000e+00> : vector<8xf32>
    %45 = vector.multi_reduction <add>, %44, %cst_17 [1] : vector<8x8xf32> to vector<8xf32>
    %46 = vector.shape_cast %45 : vector<8xf32> to vector<8x1xf32>
    %47 = tpu.reciprocal %46 {approx = true} : vector<8x1xf32> -> vector<8x1xf32>
    %48 = vector.broadcast %47 : vector<8x1xf32> to vector<8x8xf32>
    %49 = arith.mulf %44, %48 : vector<8x8xf32>
    %50 = arith.truncf %49 : vector<8x8xf32> to vector<8x8xbf16>
    %cst_18 = arith.constant dense<0.000000e+00> : vector<8x8xf32>
    %51 = tpu.matmul %50, %35, %cst_18 {dimension_numbers = #tpu.dot_dimension_numbers<[1], [0], [0], [1], [0, 0, 1, 1], [], []>} : vector<8x8xbf16>, vector<8x8xbf16>, vector<8x8xf32> -> vector<8x8xf32>
    %52 = vector.extract_strided_slice %1 {offsets = [0, 16], sizes = [8, 8], strides = [1, 1]} : vector<8x32xbf16> to vector<8x8xbf16>
    %53 = vector.extract_strided_slice %3 {offsets = [0, 16], sizes = [8, 8], strides = [1, 1]} : vector<8x32xbf16> to vector<8x8xbf16>
    %54 = vector.extract_strided_slice %5 {offsets = [0, 16], sizes = [8, 8], strides = [1, 1]} : vector<8x32xbf16> to vector<8x8xbf16>
    %cst_19 = arith.constant dense<0.000000e+00> : vector<8x8xf32>
    %55 = tpu.matmul %52, %53, %cst_19 {dimension_numbers = #tpu.dot_dimension_numbers<[1], [1], [0], [0], [0, 0, 1, 0], [], []>} : vector<8x8xbf16>, vector<8x8xbf16>, vector<8x8xf32> -> vector<8x8xf32>
    %cst_20 = arith.constant 0.353553385 : f32
    %56 = vector.broadcast %cst_20 : f32 to vector<8x8xf32>
    %57 = arith.mulf %55, %56 : vector<8x8xf32>
    %58 = arith.addf %57, %13 : vector<8x8xf32>
    %cst_21 = arith.constant dense<0xFF800000> : vector<8xf32>
    %59 = vector.multi_reduction <maximumf>, %58, %cst_21 [1] : vector<8x8xf32> to vector<8xf32>
    %60 = vector.shape_cast %59 : vector<8xf32> to vector<8x1xf32>
    %61 = vector.broadcast %60 : vector<8x1xf32> to vector<8x8xf32>
    %62 = arith.subf %58, %61 : vector<8x8xf32>
    %63 = math.exp %62 : vector<8x8xf32>
    %cst_22 = arith.constant dense<0.000000e+00> : vector<8xf32>
    %64 = vector.multi_reduction <add>, %63, %cst_22 [1] : vector<8x8xf32> to vector<8xf32>
    %65 = vector.shape_cast %64 : vector<8xf32> to vector<8x1xf32>
    %66 = tpu.reciprocal %65 {approx = true} : vector<8x1xf32> -> vector<8x1xf32>
    %67 = vector.broadcast %66 : vector<8x1xf32> to vector<8x8xf32>
    %68 = arith.mulf %63, %67 : vector<8x8xf32>
    %69 = arith.truncf %68 : vector<8x8xf32> to vector<8x8xbf16>
    %cst_23 = arith.constant dense<0.000000e+00> : vector<8x8xf32>
    %70 = tpu.matmul %69, %54, %cst_23 {dimension_numbers = #tpu.dot_dimension_numbers<[1], [0], [0], [1], [0, 0, 1, 1], [], []>} : vector<8x8xbf16>, vector<8x8xbf16>, vector<8x8xf32> -> vector<8x8xf32>
    %71 = vector.extract_strided_slice %1 {offsets = [0, 24], sizes = [8, 8], strides = [1, 1]} : vector<8x32xbf16> to vector<8x8xbf16>
    %72 = vector.extract_strided_slice %3 {offsets = [0, 24], sizes = [8, 8], strides = [1, 1]} : vector<8x32xbf16> to vector<8x8xbf16>
    %73 = vector.extract_strided_slice %5 {offsets = [0, 24], sizes = [8, 8], strides = [1, 1]} : vector<8x32xbf16> to vector<8x8xbf16>
    %cst_24 = arith.constant dense<0.000000e+00> : vector<8x8xf32>
    %74 = tpu.matmul %71, %72, %cst_24 {dimension_numbers = #tpu.dot_dimension_numbers<[1], [1], [0], [0], [0, 0, 1, 0], [], []>} : vector<8x8xbf16>, vector<8x8xbf16>, vector<8x8xf32> -> vector<8x8xf32>
    %cst_25 = arith.constant 0.353553385 : f32
    %75 = vector.broadcast %cst_25 : f32 to vector<8x8xf32>
    %76 = arith.mulf %74, %75 : vector<8x8xf32>
    %77 = arith.addf %76, %13 : vector<8x8xf32>
    %cst_26 = arith.constant dense<0xFF800000> : vector<8xf32>
    %78 = vector.multi_reduction <maximumf>, %77, %cst_26 [1] : vector<8x8xf32> to vector<8xf32>
    %79 = vector.shape_cast %78 : vector<8xf32> to vector<8x1xf32>
    %80 = vector.broadcast %79 : vector<8x1xf32> to vector<8x8xf32>
    %81 = arith.subf %77, %80 : vector<8x8xf32>
    %82 = math.exp %81 : vector<8x8xf32>
    %cst_27 = arith.constant dense<0.000000e+00> : vector<8xf32>
    %83 = vector.multi_reduction <add>, %82, %cst_27 [1] : vector<8x8xf32> to vector<8xf32>
    %84 = vector.shape_cast %83 : vector<8xf32> to vector<8x1xf32>
    %85 = tpu.reciprocal %84 {approx = true} : vector<8x1xf32> -> vector<8x1xf32>
    %86 = vector.broadcast %85 : vector<8x1xf32> to vector<8x8xf32>
    %87 = arith.mulf %82, %86 : vector<8x8xf32>
    %88 = arith.truncf %87 : vector<8x8xf32> to vector<8x8xbf16>
    %cst_28 = arith.constant dense<0.000000e+00> : vector<8x8xf32>
    %89 = tpu.matmul %88, %73, %cst_28 {dimension_numbers = #tpu.dot_dimension_numbers<[1], [0], [0], [1], [0, 0, 1, 1], [], []>} : vector<8x8xbf16>, vector<8x8xbf16>, vector<8x8xf32> -> vector<8x8xf32>
    %90 = tpu.concatenate %32, %51, %70, %89 in 1 : vector<8x8xf32>, vector<8x8xf32>, vector<8x8xf32>, vector<8x8xf32> -> vector<8x32xf32>
    %91 = arith.truncf %90 : vector<8x32xf32> to vector<8x32xbf16>
    %c0_29 = arith.constant 0 : index
    %c0_30 = arith.constant 0 : index
    %c0_31 = arith.constant 0 : index
    %92 = vector.load %arg5[%c0_29, %c0_30, %c0_31] : memref<1x8x32xbf16, #tpu.memory_space<vmem>>, vector<1x8x32xbf16>
    %93 = vector.shape_cast %92 : vector<1x8x32xbf16> to vector<8x32xbf16>
    %94 = vector.shape_cast %91 : vector<8x32xbf16> to vector<1x8x32xbf16>
    tpu.vector_store %arg5[%c0_29, %c0_30, %c0_31], %94 {strides = array<i32>} : memref<1x8x32xbf16, #tpu.memory_space<vmem>>, vector<1x8x32xbf16>,
    return
  }
  func.func @transform_0(%arg0: i32, %arg1: memref<2xi32, #tpu.memory_space<smem>>) -> (i32, i32, i32) {
    %c0_i32 = arith.constant 0 : i32
    %c0_i32_0 = arith.constant 0 : i32
    %c0_i32_1 = arith.constant 0 : i32
    return %arg0, %c0_i32, %c0_i32_0 : i32, i32, i32
  }
  func.func @transform_1(%arg0: i32, %arg1: memref<2xi32, #tpu.memory_space<smem>>) -> (i32, i32, i32) {
    %c0_i32 = arith.constant 0 : i32
    %c0_i32_0 = arith.constant 0 : i32
    %c0_i32_1 = arith.constant 0 : i32
    return %arg0, %c0_i32, %c0_i32_0 : i32, i32, i32
  }
  func.func @transform_2(%arg0: i32, %arg1: memref<2xi32, #tpu.memory_space<smem>>) -> (i32, i32, i32) {
    %c0_i32 = arith.constant 0 : i32
    %c0_i32_0 = arith.constant 0 : i32
    %c0_i32_1 = arith.constant 0 : i32
    return %arg0, %c0_i32, %c0_i32_0 : i32, i32, i32
  }
  func.func @transform_3(%arg0: i32, %arg1: memref<2xi32, #tpu.memory_space<smem>>) -> (i32, i32, i32) {
    %c0_i32 = arith.constant 0 : i32
    %c0_i32_0 = arith.constant 0 : i32
    %c0_i32_1 = arith.constant 0 : i32
    return %arg0, %c0_i32, %c0_i32_0 : i32, i32, i32
  }
}

module attributes {stable_mosaic.version = 11 : i64} {
  func.func @_linear_kernel(%arg0: i32, %arg1: i32, %arg2: i32, %arg3: memref<16x128xbf16, #tpu.memory_space<vmem>>, %arg4: memref<128x128xbf16, #tpu.memory_space<vmem>>, %arg5: memref<1x128xf32, #tpu.memory_space<vmem>>, %arg6: memref<16x128xf32, #tpu.memory_space<vmem>>, %arg7: memref<16x128xf32, #tpu.memory_space<vmem>>, %arg8: memref<16x128xf32, #tpu.memory_space<vmem>>) attributes {dimension_semantics = [#tpu.dimension_semantics<parallel>, #tpu.dimension_semantics<parallel>, #tpu.dimension_semantics<arbitrary>], iteration_bounds = array<i64: 1, 1, 1>, scalar_prefetch = 0 : i64, scratch_operands = 1 : i64, tpu.core_type = #tpu.core_type<tc>, window_params = [{transform_indices = @transform_0, window_bounds = array<i64: 16, 128>}, {transform_indices = @transform_1, window_bounds = array<i64: 128, 128>}, {transform_indices = @transform_2, window_bounds = array<i64: 1, 128>}, {transform_indices = @transform_3, window_bounds = array<i64: 16, 128>}, {transform_indices = @transform_4, window_bounds = array<i64: 16, 128>}]} {
    %c0_i32 = arith.constant 0 : i32
    %0 = arith.cmpi eq, %arg2, %c0_i32 : i32
    %1 = arith.extui %0 : i1 to i32
    %c0_i32_0 = arith.constant 0 : i32
    %2 = arith.cmpi ne, %1, %c0_i32_0 : i32
    scf.if %2 {
      %cst_10 = arith.constant 0.000000e+00 : f32
      %12 = vector.broadcast %cst_10 : f32 to vector<16x128xf32>
      %c0_11 = arith.constant 0 : index
      %c0_12 = arith.constant 0 : index
      %13 = vector.load %arg8[%c0_11, %c0_12] : memref<16x128xf32, #tpu.memory_space<vmem>>, vector<16x128xf32>
      tpu.vector_store %arg8[%c0_11, %c0_12], %12 {strides = array<i32>} : memref<16x128xf32, #tpu.memory_space<vmem>>, vector<16x128xf32>,
    } else {
    }
    %c0 = arith.constant 0 : index
    %c0_1 = arith.constant 0 : index
    %3 = vector.load %arg8[%c0, %c0_1] : memref<16x128xf32, #tpu.memory_space<vmem>>, vector<16x128xf32>
    %c0_2 = arith.constant 0 : index
    %c0_3 = arith.constant 0 : index
    %4 = vector.load %arg3[%c0_2, %c0_3] : memref<16x128xbf16, #tpu.memory_space<vmem>>, vector<16x128xbf16>
    %c0_4 = arith.constant 0 : index
    %c0_5 = arith.constant 0 : index
    %5 = vector.load %arg4[%c0_4, %c0_5] : memref<128x128xbf16, #tpu.memory_space<vmem>>, vector<128x128xbf16>
    %cst = arith.constant dense<0.000000e+00> : vector<16x128xf32>
    %6 = tpu.matmul %4, %5, %cst {dimension_numbers = #tpu.dot_dimension_numbers<[1], [0], [0], [1], [0, 0, 1, 1], [], []>} : vector<16x128xbf16>, vector<128x128xbf16>, vector<16x128xf32> -> vector<16x128xf32>
    %7 = arith.addf %3, %6 : vector<16x128xf32>
    %c0_6 = arith.constant 0 : index
    %c0_7 = arith.constant 0 : index
    %8 = vector.load %arg8[%c0_6, %c0_7] : memref<16x128xf32, #tpu.memory_space<vmem>>, vector<16x128xf32>
    tpu.vector_store %arg8[%c0_6, %c0_7], %7 {strides = array<i32>} : memref<16x128xf32, #tpu.memory_space<vmem>>, vector<16x128xf32>,
    %c0_i32_8 = arith.constant 0 : i32
    %9 = arith.cmpi eq, %arg2, %c0_i32_8 : i32
    %10 = arith.extui %9 : i1 to i32
    %c0_i32_9 = arith.constant 0 : i32
    %11 = arith.cmpi ne, %10, %c0_i32_9 : i32
    scf.if %11 {
      %c0_10 = arith.constant 0 : index
      %c0_11 = arith.constant 0 : index
      %12 = vector.load %arg8[%c0_10, %c0_11] : memref<16x128xf32, #tpu.memory_space<vmem>>, vector<16x128xf32>
      %c0_12 = arith.constant 0 : index
      %c0_13 = arith.constant 0 : index
      %13 = vector.load %arg5[%c0_12, %c0_13] : memref<1x128xf32, #tpu.memory_space<vmem>>, vector<1x128xf32>
      %14 = vector.broadcast %13 : vector<1x128xf32> to vector<16x128xf32>
      %15 = arith.addf %12, %14 : vector<16x128xf32>
      %c0_14 = arith.constant 0 : index
      %c0_15 = arith.constant 0 : index
      %16 = vector.load %arg6[%c0_14, %c0_15] : memref<16x128xf32, #tpu.memory_space<vmem>>, vector<16x128xf32>
      %17 = arith.addf %15, %16 : vector<16x128xf32>
      %c0_16 = arith.constant 0 : index
      %c0_17 = arith.constant 0 : index
      %18 = vector.load %arg7[%c0_16, %c0_17] : memref<16x128xf32, #tpu.memory_space<vmem>>, vector<16x128xf32>
      tpu.vector_store %arg7[%c0_16, %c0_17], %17 {strides = array<i32>} : memref<16x128xf32, #tpu.memory_space<vmem>>, vector<16x128xf32>,
    } else {
    }
    return
  }
  func.func @transform_0(%arg0: i32, %arg1: i32, %arg2: i32) -> (i32, i32) {
    %c0_i32 = arith.constant 0 : i32
    return %arg0, %arg2 : i32, i32
  }
  func.func @transform_1(%arg0: i32, %arg1: i32, %arg2: i32) -> (i32, i32) {
    %c0_i32 = arith.constant 0 : i32
    return %arg2, %arg1 : i32, i32
  }
  func.func @transform_2(%arg0: i32, %arg1: i32, %arg2: i32) -> (i32, i32) {
    %c0_i32 = arith.constant 0 : i32
    %c0_i32_0 = arith.constant 0 : i32
    return %c0_i32, %arg1 : i32, i32
  }
  func.func @transform_3(%arg0: i32, %arg1: i32, %arg2: i32) -> (i32, i32) {
    %c0_i32 = arith.constant 0 : i32
    return %arg0, %arg1 : i32, i32
  }
  func.func @transform_4(%arg0: i32, %arg1: i32, %arg2: i32) -> (i32, i32) {
    %c0_i32 = arith.constant 0 : i32
    return %arg0, %arg1 : i32, i32
  }
}

module attributes {stable_mosaic.version = 11 : i64} {
  func.func @_attn_kernel(%arg0: i32, %arg1: memref<1x8x32xbf16, #tpu.memory_space<vmem>>, %arg2: memref<1x8x32xbf16, #tpu.memory_space<vmem>>, %arg3: memref<1x8x32xbf16, #tpu.memory_space<vmem>>, %arg4: memref<1x8x32xbf16, #tpu.memory_space<vmem>>) attributes {dimension_semantics = [#tpu.dimension_semantics<parallel>], iteration_bounds = array<i64: 2>, scalar_prefetch = 0 : i64, scratch_operands = 0 : i64, tpu.core_type = #tpu.core_type<tc>, window_params = [{transform_indices = @transform_0, window_bounds = array<i64: 1, 8, 32>}, {transform_indices = @transform_1, window_bounds = array<i64: 1, 8, 32>}, {transform_indices = @transform_2, window_bounds = array<i64: 1, 8, 32>}, {transform_indices = @transform_3, window_bounds = array<i64: 1, 8, 32>}]} {
    %c0 = arith.constant 0 : index
    %c0_0 = arith.constant 0 : index
    %c0_1 = arith.constant 0 : index
    %0 = vector.load %arg1[%c0, %c0_0, %c0_1] : memref<1x8x32xbf16, #tpu.memory_space<vmem>>, vector<1x8x32xbf16>
    %1 = vector.shape_cast %0 : vector<1x8x32xbf16> to vector<8x32xbf16>
    %c0_2 = arith.constant 0 : index
    %c0_3 = arith.constant 0 : index
    %c0_4 = arith.constant 0 : index
    %2 = vector.load %arg2[%c0_2, %c0_3, %c0_4] : memref<1x8x32xbf16, #tpu.memory_space<vmem>>, vector<1x8x32xbf16>
    %3 = vector.shape_cast %2 : vector<1x8x32xbf16> to vector<8x32xbf16>
    %c0_5 = arith.constant 0 : index
    %c0_6 = arith.constant 0 : index
    %c0_7 = arith.constant 0 : index
    %4 = vector.load %arg3[%c0_5, %c0_6, %c0_7] : memref<1x8x32xbf16, #tpu.memory_space<vmem>>, vector<1x8x32xbf16>
    %5 = vector.shape_cast %4 : vector<1x8x32xbf16> to vector<8x32xbf16>
    %cst = arith.constant 0.000000e+00 : f32
    %6 = vector.broadcast %cst : f32 to vector<8x8xf32>
    %7 = tpu.iota {dimensions = array<i32: 0>} : vector<8x8xi32>
    %8 = tpu.iota {dimensions = array<i32: 1>} : vector<8x8xi32>
    %9 = arith.cmpi sgt, %8, %7 : vector<8x8xi32>
    %cst_8 = arith.constant -1.000000e+30 : f32
    %10 = vector.broadcast %cst_8 : f32 to vector<8x8xf32>
    %11 = arith.select %9, %10, %6 : vector<8x8xi1>, vector<8x8xf32>
    %12 = vector.extract_strided_slice %1 {offsets = [0, 0], sizes = [8, 8], strides = [1, 1]} : vector<8x32xbf16> to vector<8x8xbf16>
    %13 = vector.extract_strided_slice %3 {offsets = [0, 0], sizes = [8, 8], strides = [1, 1]} : vector<8x32xbf16> to vector<8x8xbf16>
    %14 = vector.extract_strided_slice %5 {offsets = [0, 0], sizes = [8, 8], strides = [1, 1]} : vector<8x32xbf16> to vector<8x8xbf16>
    %cst_9 = arith.constant dense<0.000000e+00> : vector<8x8xf32>
    %15 = tpu.matmul %12, %13, %cst_9 {dimension_numbers = #tpu.dot_dimension_numbers<[1], [1], [0], [0], [0, 0, 1, 0], [], []>} : vector<8x8xbf16>, vector<8x8xbf16>, vector<8x8xf32> -> vector<8x8xf32>
    %cst_10 = arith.constant 0.353553385 : f32
    %16 = vector.broadcast %cst_10 : f32 to vector<8x8xf32>
    %17 = arith.mulf %15, %16 : vector<8x8xf32>
    %18 = arith.addf %17, %11 : vector<8x8xf32>
    %cst_11 = arith.constant dense<0xFF800000> : vector<8xf32>
    %19 = vector.multi_reduction <maximumf>, %18, %cst_11 [1] : vector<8x8xf32> to vector<8xf32>
    %20 = vector.shape_cast %19 : vector<8xf32> to vector<8x1xf32>
    %21 = vector.broadcast %20 : vector<8x1xf32> to vector<8x8xf32>
    %22 = arith.subf %18, %21 : vector<8x8xf32>
    %23 = math.exp %22 : vector<8x8xf32>
    %cst_12 = arith.constant dense<0.000000e+00> : vector<8xf32>
    %24 = vector.multi_reduction <add>, %23, %cst_12 [1] : vector<8x8xf32> to vector<8xf32>
    %25 = vector.shape_cast %24 : vector<8xf32> to vector<8x1xf32>
    %26 = tpu.reciprocal %25 {approx = true} : vector<8x1xf32> -> vector<8x1xf32>
    %27 = vector.broadcast %26 : vector<8x1xf32> to vector<8x8xf32>
    %28 = arith.mulf %23, %27 : vector<8x8xf32>
    %29 = arith.truncf %28 : vector<8x8xf32> to vector<8x8xbf16>
    %cst_13 = arith.constant dense<0.000000e+00> : vector<8x8xf32>
    %30 = tpu.matmul %29, %14, %cst_13 {dimension_numbers = #tpu.dot_dimension_numbers<[1], [0], [0], [1], [0, 0, 1, 1], [], []>} : vector<8x8xbf16>, vector<8x8xbf16>, vector<8x8xf32> -> vector<8x8xf32>
    %31 = vector.extract_strided_slice %1 {offsets = [0, 8], sizes = [8, 8], strides = [1, 1]} : vector<8x32xbf16> to vector<8x8xbf16>
    %32 = vector.extract_strided_slice %3 {offsets = [0, 8], sizes = [8, 8], strides = [1, 1]} : vector<8x32xbf16> to vector<8x8xbf16>
    %33 = vector.extract_strided_slice %5 {offsets = [0, 8], sizes = [8, 8], strides = [1, 1]} : vector<8x32xbf16> to vector<8x8xbf16>
    %cst_14 = arith.constant dense<0.000000e+00> : vector<8x8xf32>
    %34 = tpu.matmul %31, %32, %cst_14 {dimension_numbers = #tpu.dot_dimension_numbers<[1], [1], [0], [0], [0, 0, 1, 0], [], []>} : vector<8x8xbf16>, vector<8x8xbf16>, vector<8x8xf32> -> vector<8x8xf32>
    %cst_15 = arith.constant 0.353553385 : f32
    %35 = vector.broadcast %cst_15 : f32 to vector<8x8xf32>
    %36 = arith.mulf %34, %35 : vector<8x8xf32>
    %37 = arith.addf %36, %11 : vector<8x8xf32>
    %cst_16 = arith.constant dense<0xFF800000> : vector<8xf32>
    %38 = vector.multi_reduction <maximumf>, %37, %cst_16 [1] : vector<8x8xf32> to vector<8xf32>
    %39 = vector.shape_cast %38 : vector<8xf32> to vector<8x1xf32>
    %40 = vector.broadcast %39 : vector<8x1xf32> to vector<8x8xf32>
    %41 = arith.subf %37, %40 : vector<8x8xf32>
    %42 = math.exp %41 : vector<8x8xf32>
    %cst_17 = arith.constant dense<0.000000e+00> : vector<8xf32>
    %43 = vector.multi_reduction <add>, %42, %cst_17 [1] : vector<8x8xf32> to vector<8xf32>
    %44 = vector.shape_cast %43 : vector<8xf32> to vector<8x1xf32>
    %45 = tpu.reciprocal %44 {approx = true} : vector<8x1xf32> -> vector<8x1xf32>
    %46 = vector.broadcast %45 : vector<8x1xf32> to vector<8x8xf32>
    %47 = arith.mulf %42, %46 : vector<8x8xf32>
    %48 = arith.truncf %47 : vector<8x8xf32> to vector<8x8xbf16>
    %cst_18 = arith.constant dense<0.000000e+00> : vector<8x8xf32>
    %49 = tpu.matmul %48, %33, %cst_18 {dimension_numbers = #tpu.dot_dimension_numbers<[1], [0], [0], [1], [0, 0, 1, 1], [], []>} : vector<8x8xbf16>, vector<8x8xbf16>, vector<8x8xf32> -> vector<8x8xf32>
    %50 = vector.extract_strided_slice %1 {offsets = [0, 16], sizes = [8, 8], strides = [1, 1]} : vector<8x32xbf16> to vector<8x8xbf16>
    %51 = vector.extract_strided_slice %3 {offsets = [0, 16], sizes = [8, 8], strides = [1, 1]} : vector<8x32xbf16> to vector<8x8xbf16>
    %52 = vector.extract_strided_slice %5 {offsets = [0, 16], sizes = [8, 8], strides = [1, 1]} : vector<8x32xbf16> to vector<8x8xbf16>
    %cst_19 = arith.constant dense<0.000000e+00> : vector<8x8xf32>
    %53 = tpu.matmul %50, %51, %cst_19 {dimension_numbers = #tpu.dot_dimension_numbers<[1], [1], [0], [0], [0, 0, 1, 0], [], []>} : vector<8x8xbf16>, vector<8x8xbf16>, vector<8x8xf32> -> vector<8x8xf32>
    %cst_20 = arith.constant 0.353553385 : f32
    %54 = vector.broadcast %cst_20 : f32 to vector<8x8xf32>
    %55 = arith.mulf %53, %54 : vector<8x8xf32>
    %56 = arith.addf %55, %11 : vector<8x8xf32>
    %cst_21 = arith.constant dense<0xFF800000> : vector<8xf32>
    %57 = vector.multi_reduction <maximumf>, %56, %cst_21 [1] : vector<8x8xf32> to vector<8xf32>
    %58 = vector.shape_cast %57 : vector<8xf32> to vector<8x1xf32>
    %59 = vector.broadcast %58 : vector<8x1xf32> to vector<8x8xf32>
    %60 = arith.subf %56, %59 : vector<8x8xf32>
    %61 = math.exp %60 : vector<8x8xf32>
    %cst_22 = arith.constant dense<0.000000e+00> : vector<8xf32>
    %62 = vector.multi_reduction <add>, %61, %cst_22 [1] : vector<8x8xf32> to vector<8xf32>
    %63 = vector.shape_cast %62 : vector<8xf32> to vector<8x1xf32>
    %64 = tpu.reciprocal %63 {approx = true} : vector<8x1xf32> -> vector<8x1xf32>
    %65 = vector.broadcast %64 : vector<8x1xf32> to vector<8x8xf32>
    %66 = arith.mulf %61, %65 : vector<8x8xf32>
    %67 = arith.truncf %66 : vector<8x8xf32> to vector<8x8xbf16>
    %cst_23 = arith.constant dense<0.000000e+00> : vector<8x8xf32>
    %68 = tpu.matmul %67, %52, %cst_23 {dimension_numbers = #tpu.dot_dimension_numbers<[1], [0], [0], [1], [0, 0, 1, 1], [], []>} : vector<8x8xbf16>, vector<8x8xbf16>, vector<8x8xf32> -> vector<8x8xf32>
    %69 = vector.extract_strided_slice %1 {offsets = [0, 24], sizes = [8, 8], strides = [1, 1]} : vector<8x32xbf16> to vector<8x8xbf16>
    %70 = vector.extract_strided_slice %3 {offsets = [0, 24], sizes = [8, 8], strides = [1, 1]} : vector<8x32xbf16> to vector<8x8xbf16>
    %71 = vector.extract_strided_slice %5 {offsets = [0, 24], sizes = [8, 8], strides = [1, 1]} : vector<8x32xbf16> to vector<8x8xbf16>
    %cst_24 = arith.constant dense<0.000000e+00> : vector<8x8xf32>
    %72 = tpu.matmul %69, %70, %cst_24 {dimension_numbers = #tpu.dot_dimension_numbers<[1], [1], [0], [0], [0, 0, 1, 0], [], []>} : vector<8x8xbf16>, vector<8x8xbf16>, vector<8x8xf32> -> vector<8x8xf32>
    %cst_25 = arith.constant 0.353553385 : f32
    %73 = vector.broadcast %cst_25 : f32 to vector<8x8xf32>
    %74 = arith.mulf %72, %73 : vector<8x8xf32>
    %75 = arith.addf %74, %11 : vector<8x8xf32>
    %cst_26 = arith.constant dense<0xFF800000> : vector<8xf32>
    %76 = vector.multi_reduction <maximumf>, %75, %cst_26 [1] : vector<8x8xf32> to vector<8xf32>
    %77 = vector.shape_cast %76 : vector<8xf32> to vector<8x1xf32>
    %78 = vector.broadcast %77 : vector<8x1xf32> to vector<8x8xf32>
    %79 = arith.subf %75, %78 : vector<8x8xf32>
    %80 = math.exp %79 : vector<8x8xf32>
    %cst_27 = arith.constant dense<0.000000e+00> : vector<8xf32>
    %81 = vector.multi_reduction <add>, %80, %cst_27 [1] : vector<8x8xf32> to vector<8xf32>
    %82 = vector.shape_cast %81 : vector<8xf32> to vector<8x1xf32>
    %83 = tpu.reciprocal %82 {approx = true} : vector<8x1xf32> -> vector<8x1xf32>
    %84 = vector.broadcast %83 : vector<8x1xf32> to vector<8x8xf32>
    %85 = arith.mulf %80, %84 : vector<8x8xf32>
    %86 = arith.truncf %85 : vector<8x8xf32> to vector<8x8xbf16>
    %cst_28 = arith.constant dense<0.000000e+00> : vector<8x8xf32>
    %87 = tpu.matmul %86, %71, %cst_28 {dimension_numbers = #tpu.dot_dimension_numbers<[1], [0], [0], [1], [0, 0, 1, 1], [], []>} : vector<8x8xbf16>, vector<8x8xbf16>, vector<8x8xf32> -> vector<8x8xf32>
    %88 = tpu.concatenate %30, %49, %68, %87 in 1 : vector<8x8xf32>, vector<8x8xf32>, vector<8x8xf32>, vector<8x8xf32> -> vector<8x32xf32>
    %89 = arith.truncf %88 : vector<8x32xf32> to vector<8x32xbf16>
    %c0_29 = arith.constant 0 : index
    %c0_30 = arith.constant 0 : index
    %c0_31 = arith.constant 0 : index
    %90 = vector.load %arg4[%c0_29, %c0_30, %c0_31] : memref<1x8x32xbf16, #tpu.memory_space<vmem>>, vector<1x8x32xbf16>
    %91 = vector.shape_cast %90 : vector<1x8x32xbf16> to vector<8x32xbf16>
    %92 = vector.shape_cast %89 : vector<8x32xbf16> to vector<1x8x32xbf16>
    tpu.vector_store %arg4[%c0_29, %c0_30, %c0_31], %92 {strides = array<i32>} : memref<1x8x32xbf16, #tpu.memory_space<vmem>>, vector<1x8x32xbf16>,
    return
  }
  func.func @transform_0(%arg0: i32) -> (i32, i32, i32) {
    %c0_i32 = arith.constant 0 : i32
    %c0_i32_0 = arith.constant 0 : i32
    %c0_i32_1 = arith.constant 0 : i32
    return %arg0, %c0_i32, %c0_i32_0 : i32, i32, i32
  }
  func.func @transform_1(%arg0: i32) -> (i32, i32, i32) {
    %c0_i32 = arith.constant 0 : i32
    %c0_i32_0 = arith.constant 0 : i32
    %c0_i32_1 = arith.constant 0 : i32
    return %arg0, %c0_i32, %c0_i32_0 : i32, i32, i32
  }
  func.func @transform_2(%arg0: i32) -> (i32, i32, i32) {
    %c0_i32 = arith.constant 0 : i32
    %c0_i32_0 = arith.constant 0 : i32
    %c0_i32_1 = arith.constant 0 : i32
    return %arg0, %c0_i32, %c0_i32_0 : i32, i32, i32
  }
  func.func @transform_3(%arg0: i32) -> (i32, i32, i32) {
    %c0_i32 = arith.constant 0 : i32
    %c0_i32_0 = arith.constant 0 : i32
    %c0_i32_1 = arith.constant 0 : i32
    return %arg0, %c0_i32, %c0_i32_0 : i32, i32, i32
  }
}

module attributes {stable_mosaic.version = 11 : i64} {
  func.func @_linear_kernel(%arg0: i32, %arg1: i32, %arg2: i32, %arg3: memref<16x128xbf16, #tpu.memory_space<vmem>>, %arg4: memref<128x128xbf16, #tpu.memory_space<vmem>>, %arg5: memref<1x128xf32, #tpu.memory_space<vmem>>, %arg6: memref<16x128xbf16, #tpu.memory_space<vmem>>, %arg7: memref<16x128xf32, #tpu.memory_space<vmem>>) attributes {dimension_semantics = [#tpu.dimension_semantics<parallel>, #tpu.dimension_semantics<parallel>, #tpu.dimension_semantics<arbitrary>], iteration_bounds = array<i64: 1, 1, 1>, scalar_prefetch = 0 : i64, scratch_operands = 1 : i64, tpu.core_type = #tpu.core_type<tc>, window_params = [{transform_indices = @transform_0, window_bounds = array<i64: 16, 128>}, {transform_indices = @transform_1, window_bounds = array<i64: 128, 128>}, {transform_indices = @transform_2, window_bounds = array<i64: 1, 128>}, {transform_indices = @transform_3, window_bounds = array<i64: 16, 128>}]} {
    %c0_i32 = arith.constant 0 : i32
    %0 = arith.cmpi eq, %arg2, %c0_i32 : i32
    %1 = arith.extui %0 : i1 to i32
    %c0_i32_0 = arith.constant 0 : i32
    %2 = arith.cmpi ne, %1, %c0_i32_0 : i32
    scf.if %2 {
      %cst_10 = arith.constant 0.000000e+00 : f32
      %12 = vector.broadcast %cst_10 : f32 to vector<16x128xf32>
      %c0_11 = arith.constant 0 : index
      %c0_12 = arith.constant 0 : index
      %13 = vector.load %arg7[%c0_11, %c0_12] : memref<16x128xf32, #tpu.memory_space<vmem>>, vector<16x128xf32>
      tpu.vector_store %arg7[%c0_11, %c0_12], %12 {strides = array<i32>} : memref<16x128xf32, #tpu.memory_space<vmem>>, vector<16x128xf32>,
    } else {
    }
    %c0 = arith.constant 0 : index
    %c0_1 = arith.constant 0 : index
    %3 = vector.load %arg7[%c0, %c0_1] : memref<16x128xf32, #tpu.memory_space<vmem>>, vector<16x128xf32>
    %c0_2 = arith.constant 0 : index
    %c0_3 = arith.constant 0 : index
    %4 = vector.load %arg3[%c0_2, %c0_3] : memref<16x128xbf16, #tpu.memory_space<vmem>>, vector<16x128xbf16>
    %c0_4 = arith.constant 0 : index
    %c0_5 = arith.constant 0 : index
    %5 = vector.load %arg4[%c0_4, %c0_5] : memref<128x128xbf16, #tpu.memory_space<vmem>>, vector<128x128xbf16>
    %cst = arith.constant dense<0.000000e+00> : vector<16x128xf32>
    %6 = tpu.matmul %4, %5, %cst {dimension_numbers = #tpu.dot_dimension_numbers<[1], [0], [0], [1], [0, 0, 1, 1], [], []>} : vector<16x128xbf16>, vector<128x128xbf16>, vector<16x128xf32> -> vector<16x128xf32>
    %7 = arith.addf %3, %6 : vector<16x128xf32>
    %c0_6 = arith.constant 0 : index
    %c0_7 = arith.constant 0 : index
    %8 = vector.load %arg7[%c0_6, %c0_7] : memref<16x128xf32, #tpu.memory_space<vmem>>, vector<16x128xf32>
    tpu.vector_store %arg7[%c0_6, %c0_7], %7 {strides = array<i32>} : memref<16x128xf32, #tpu.memory_space<vmem>>, vector<16x128xf32>,
    %c0_i32_8 = arith.constant 0 : i32
    %9 = arith.cmpi eq, %arg2, %c0_i32_8 : i32
    %10 = arith.extui %9 : i1 to i32
    %c0_i32_9 = arith.constant 0 : i32
    %11 = arith.cmpi ne, %10, %c0_i32_9 : i32
    scf.if %11 {
      %c0_10 = arith.constant 0 : index
      %c0_11 = arith.constant 0 : index
      %12 = vector.load %arg7[%c0_10, %c0_11] : memref<16x128xf32, #tpu.memory_space<vmem>>, vector<16x128xf32>
      %c0_12 = arith.constant 0 : index
      %c0_13 = arith.constant 0 : index
      %13 = vector.load %arg5[%c0_12, %c0_13] : memref<1x128xf32, #tpu.memory_space<vmem>>, vector<1x128xf32>
      %14 = vector.broadcast %13 : vector<1x128xf32> to vector<16x128xf32>
      %15 = arith.addf %12, %14 : vector<16x128xf32>
      %cst_14 = arith.constant 0.000000e+00 : f32
      %16 = vector.broadcast %cst_14 : f32 to vector<16x128xf32>
      %17 = arith.maximumf %15, %16 : vector<16x128xf32>
      %18 = arith.truncf %17 : vector<16x128xf32> to vector<16x128xbf16>
      %c0_15 = arith.constant 0 : index
      %c0_16 = arith.constant 0 : index
      %19 = vector.load %arg6[%c0_15, %c0_16] : memref<16x128xbf16, #tpu.memory_space<vmem>>, vector<16x128xbf16>
      tpu.vector_store %arg6[%c0_15, %c0_16], %18 {strides = array<i32>} : memref<16x128xbf16, #tpu.memory_space<vmem>>, vector<16x128xbf16>,
    } else {
    }
    return
  }
  func.func @transform_0(%arg0: i32, %arg1: i32, %arg2: i32) -> (i32, i32) {
    %c0_i32 = arith.constant 0 : i32
    return %arg0, %arg2 : i32, i32
  }
  func.func @transform_1(%arg0: i32, %arg1: i32, %arg2: i32) -> (i32, i32) {
    %c0_i32 = arith.constant 0 : i32
    return %arg2, %arg1 : i32, i32
  }
  func.func @transform_2(%arg0: i32, %arg1: i32, %arg2: i32) -> (i32, i32) {
    %c0_i32 = arith.constant 0 : i32
    %c0_i32_0 = arith.constant 0 : i32
    return %c0_i32, %arg1 : i32, i32
  }
  func.func @transform_3(%arg0: i32, %arg1: i32, %arg2: i32) -> (i32, i32) {
    %c0_i32 = arith.constant 0 : i32
    return %arg0, %arg1 : i32, i32
  }
}

module attributes {stable_mosaic.version = 11 : i64} {
  func.func @_loss_kernel(%arg0: i32, %arg1: memref<16x128xf32, #tpu.memory_space<vmem>>, %arg2: memref<16x128xf32, #tpu.memory_space<vmem>>, %arg3: memref<16x1xf32, #tpu.memory_space<vmem>>, %arg4: memref<16x1xf32, #tpu.memory_space<vmem>>, %arg5: memref<16x1xf32, #tpu.memory_space<vmem>>, %arg6: memref<1x1xf32, #tpu.memory_space<vmem>>, %arg7: memref<1x1xf32, #tpu.memory_space<vmem>>) attributes {dimension_semantics = [#tpu.dimension_semantics<arbitrary>], iteration_bounds = array<i64: 1>, scalar_prefetch = 0 : i64, scratch_operands = 0 : i64, tpu.core_type = #tpu.core_type<tc>, window_params = [{transform_indices = @transform_0, window_bounds = array<i64: 16, 128>}, {transform_indices = @transform_1, window_bounds = array<i64: 16, 128>}, {transform_indices = @transform_2, window_bounds = array<i64: 16, 1>}, {transform_indices = @transform_3, window_bounds = array<i64: 16, 1>}, {transform_indices = @transform_4, window_bounds = array<i64: 16, 1>}, {pipeline_mode = #tpu.pipeline_mode<synchronous>, transform_indices = @transform_5, window_bounds = array<i64: 1, 1>}, {pipeline_mode = #tpu.pipeline_mode<synchronous>, transform_indices = @transform_6, window_bounds = array<i64: 1, 1>}]} {
    %c0_i32 = arith.constant 0 : i32
    %0 = arith.cmpi eq, %arg0, %c0_i32 : i32
    %1 = arith.extui %0 : i1 to i32
    %c0_i32_0 = arith.constant 0 : i32
    %2 = arith.cmpi ne, %1, %c0_i32_0 : i32
    scf.if %2 {
      %cst_24 = arith.constant 0.000000e+00 : f32
      %37 = vector.broadcast %cst_24 : f32 to vector<1x1xf32>
      %c0_25 = arith.constant 0 : index
      %c0_26 = arith.constant 0 : index
      %38 = vector.load %arg6[%c0_25, %c0_26] : memref<1x1xf32, #tpu.memory_space<vmem>>, vector<1x1xf32>
      tpu.vector_store %arg6[%c0_25, %c0_26], %37 {strides = array<i32>} : memref<1x1xf32, #tpu.memory_space<vmem>>, vector<1x1xf32>,
      %cst_27 = arith.constant 0.000000e+00 : f32
      %39 = vector.broadcast %cst_27 : f32 to vector<1x1xf32>
      %c0_28 = arith.constant 0 : index
      %c0_29 = arith.constant 0 : index
      %40 = vector.load %arg7[%c0_28, %c0_29] : memref<1x1xf32, #tpu.memory_space<vmem>>, vector<1x1xf32>
      tpu.vector_store %arg7[%c0_28, %c0_29], %39 {strides = array<i32>} : memref<1x1xf32, #tpu.memory_space<vmem>>, vector<1x1xf32>,
    } else {
    }
    %c0 = arith.constant 0 : index
    %c0_1 = arith.constant 0 : index
    %3 = vector.load %arg1[%c0, %c0_1] : memref<16x128xf32, #tpu.memory_space<vmem>>, vector<16x128xf32>
    %c0_2 = arith.constant 0 : index
    %c0_3 = arith.constant 0 : index
    %4 = vector.load %arg2[%c0_2, %c0_3] : memref<16x128xf32, #tpu.memory_space<vmem>>, vector<16x128xf32>
    %5 = arith.subf %3, %4 : vector<16x128xf32>
    %6 = arith.mulf %5, %5 : vector<16x128xf32>
    %cst = arith.constant dense<0.000000e+00> : vector<16xf32>
    %7 = vector.multi_reduction <add>, %6, %cst [1] : vector<16x128xf32> to vector<16xf32>
    %8 = vector.shape_cast %7 : vector<16xf32> to vector<16x1xf32>
    %cst_4 = arith.constant dense<0.000000e+00> : vector<1xf32>
    %9 = vector.multi_reduction <add>, %8, %cst_4 [0] : vector<16x1xf32> to vector<1xf32>
    %10 = vector.shape_cast %9 : vector<1xf32> to vector<1x1xf32>
    %c0_5 = arith.constant 0 : index
    %c0_6 = arith.constant 0 : index
    %11 = vector.load %arg6[%c0_5, %c0_6] : memref<1x1xf32, #tpu.memory_space<vmem>>, vector<1x1xf32>
    %12 = arith.addf %11, %10 : vector<1x1xf32>
    %c0_7 = arith.constant 0 : index
    %c0_8 = arith.constant 0 : index
    %13 = vector.load %arg6[%c0_7, %c0_8] : memref<1x1xf32, #tpu.memory_space<vmem>>, vector<1x1xf32>
    tpu.vector_store %arg6[%c0_7, %c0_8], %12 {strides = array<i32>} : memref<1x1xf32, #tpu.memory_space<vmem>>, vector<1x1xf32>,
    %c0_9 = arith.constant 0 : index
    %c0_10 = arith.constant 0 : index
    %14 = vector.load %arg3[%c0_9, %c0_10] : memref<16x1xf32, #tpu.memory_space<vmem>>, vector<16x1xf32>
    %c0_11 = arith.constant 0 : index
    %c0_12 = arith.constant 0 : index
    %15 = vector.load %arg4[%c0_11, %c0_12] : memref<16x1xf32, #tpu.memory_space<vmem>>, vector<16x1xf32>
    %cst_13 = arith.constant 0.000000e+00 : f32
    %16 = vector.broadcast %cst_13 : f32 to vector<16x1xf32>
    %17 = arith.maximumf %14, %16 : vector<16x1xf32>
    %18 = arith.mulf %14, %15 : vector<16x1xf32>
    %19 = arith.subf %17, %18 : vector<16x1xf32>
    %20 = math.absf %14 : vector<16x1xf32>
    %cst_14 = arith.constant 0.000000e+00 : f32
    %21 = vector.broadcast %cst_14 : f32 to vector<16x1xf32>
    %22 = arith.subf %21, %20 : vector<16x1xf32>
    %23 = math.exp %22 : vector<16x1xf32>
    %cst_15 = arith.constant 1.000000e+00 : f32
    %24 = vector.broadcast %cst_15 : f32 to vector<16x1xf32>
    %25 = arith.addf %24, %23 : vector<16x1xf32>
    %26 = math.log %25 : vector<16x1xf32>
    %27 = arith.addf %19, %26 : vector<16x1xf32>
    %c0_16 = arith.constant 0 : index
    %c0_17 = arith.constant 0 : index
    %28 = vector.load %arg5[%c0_16, %c0_17] : memref<16x1xf32, #tpu.memory_space<vmem>>, vector<16x1xf32>
    %29 = arith.mulf %28, %27 : vector<16x1xf32>
    %cst_18 = arith.constant dense<0.000000e+00> : vector<16xf32>
    %30 = vector.multi_reduction <add>, %29, %cst_18 [1] : vector<16x1xf32> to vector<16xf32>
    %31 = vector.shape_cast %30 : vector<16xf32> to vector<16x1xf32>
    %cst_19 = arith.constant dense<0.000000e+00> : vector<1xf32>
    %32 = vector.multi_reduction <add>, %31, %cst_19 [0] : vector<16x1xf32> to vector<1xf32>
    %33 = vector.shape_cast %32 : vector<1xf32> to vector<1x1xf32>
    %c0_20 = arith.constant 0 : index
    %c0_21 = arith.constant 0 : index
    %34 = vector.load %arg7[%c0_20, %c0_21] : memref<1x1xf32, #tpu.memory_space<vmem>>, vector<1x1xf32>
    %35 = arith.addf %34, %33 : vector<1x1xf32>
    %c0_22 = arith.constant 0 : index
    %c0_23 = arith.constant 0 : index
    %36 = vector.load %arg7[%c0_22, %c0_23] : memref<1x1xf32, #tpu.memory_space<vmem>>, vector<1x1xf32>
    tpu.vector_store %arg7[%c0_22, %c0_23], %35 {strides = array<i32>} : memref<1x1xf32, #tpu.memory_space<vmem>>, vector<1x1xf32>,
    return
  }
  func.func @transform_0(%arg0: i32) -> (i32, i32) {
    %c0_i32 = arith.constant 0 : i32
    %c0_i32_0 = arith.constant 0 : i32
    return %arg0, %c0_i32 : i32, i32
  }
  func.func @transform_1(%arg0: i32) -> (i32, i32) {
    %c0_i32 = arith.constant 0 : i32
    %c0_i32_0 = arith.constant 0 : i32
    return %arg0, %c0_i32 : i32, i32
  }
  func.func @transform_2(%arg0: i32) -> (i32, i32) {
    %c0_i32 = arith.constant 0 : i32
    %c0_i32_0 = arith.constant 0 : i32
    return %arg0, %c0_i32 : i32, i32
  }
  func.func @transform_3(%arg0: i32) -> (i32, i32) {
    %c0_i32 = arith.constant 0 : i32
    %c0_i32_0 = arith.constant 0 : i32
    return %arg0, %c0_i32 : i32, i32
  }
  func.func @transform_4(%arg0: i32) -> (i32, i32) {
    %c0_i32 = arith.constant 0 : i32
    %c0_i32_0 = arith.constant 0 : i32
    return %arg0, %c0_i32 : i32, i32
  }
  func.func @transform_5(%arg0: i32) -> (i32, i32) {
    %c0_i32 = arith.constant 0 : i32
    %c0_i32_0 = arith.constant 0 : i32
    %c0_i32_1 = arith.constant 0 : i32
    return %c0_i32, %c0_i32_0 : i32, i32
  }
  func.func @transform_6(%arg0: i32) -> (i32, i32) {
    %c0_i32 = arith.constant 0 : i32
    %c0_i32_0 = arith.constant 0 : i32
    %c0_i32_1 = arith.constant 0 : i32
    return %c0_i32, %c0_i32_0 : i32, i32
  }
}

</mosaic_0001>

<llo_original>
// kernel: transformer_forward.43
$region0: #{transformer_forward.43}
  #allocation0 [shape = 'u32[]', space=smem, size = 0x4, offset = 0x4, fixed_abs, tag = 'smem constant byte address 0x4 - core index']
  #allocation1 [shape = 'u32[144,128]{1,0:T(1,128)}', space=vmem, size = 0x12000, scoped, tag = 'internal scratch']
  %s0 = inlined_call_operand.vmem [shape: f32[16,32], index: 0, kind: input, shape index: {}]
  %s1 = inlined_call_operand.vmem [shape: f32[1,32], index: 1, kind: input, shape index: {}]
  %s2 = inlined_call_operand.vmem [shape: f32[1,32], index: 2, kind: input, shape index: {}]
  %s3 = inlined_call_operand.vmem [shape: f32[16,32], index: 3, kind: output, shape index: {}]
  %s4 = sld [smem:[#allocation0]]
  $region22: #{transformer_forward.43} parent=0
    _
  %s6 = ssub.s32 1, %s4
  %s7 = scalar_select 0, %s6, %s4
  // Predicated region
  $region2: #{transformer_forward.43} parent=0 // pred_check
    _
  $region3: #{transformer_forward.43} parent=0 // pred_check_branch
    %9 = sbr.rel (0) target = $region5
  $region4: #{transformer_forward.43} parent=0 // pred_region
    _
  $region5: #{transformer_forward.43} parent=0 // pred_fallthru
    _
  // Predicated region
  $region6: #{transformer_forward.43} parent=0 // pred_check
    _
  $region7: #{transformer_forward.43} parent=0 // pred_check_branch
    %11 = sbr.rel (0) target = $region9
  $region8: #{transformer_forward.43} parent=0 // pred_region
    _
  $region9: #{transformer_forward.43} parent=0 // pred_fallthru
    _
  // Predicated region
  $region10: #{transformer_forward.43} parent=0 // pred_check
    _
  $region11: #{transformer_forward.43} parent=0 // pred_check_branch
    %13 = sbr.rel (0) target = $region13
  $region12: #{transformer_forward.43} parent=0 // pred_region
    _
  $region13: #{transformer_forward.43} parent=0 // pred_fallthru
    _
  %v14 = vld [vmem:[%s0] sm:$0xff]
  %v15 = vld [vmem:[%s0 + $0x8] sm:$0xff]
  %vm16 = vcmask 261120
  %v17 = vsel %vm16, %v14, 0.0
  %18 = vadd.xlane.f32.xlu0 %v17
  %v19 = vpop.xlane.xlu0 %18
  %v20 = vsel %vm16, %v15, 0.0
  %21 = vadd.xlane.f32.xlu0 %v20
  %v22 = vpop.xlane.xlu0 %21
  %v23 = vrcp.pop 32.0
  %v24 = vmul.f32 %v19, %v23
  %v25 = vmul.f32 %v22, %v23
  %v26 = vsub.f32 %v14, %v24
  %v27 = vsub.f32 %v15, %v25
  %v28 = vmul.f32 %v26, %v26
  %v29 = vmul.f32 %v27, %v27
  %v30 = vsel %vm16, %v28, 0.0
  %31 = vadd.xlane.f32.xlu0 %v30
  %v32 = vpop.xlane.xlu0 %31
  %v33 = vsel %vm16, %v29, 0.0
  %34 = vadd.xlane.f32.xlu0 %v33
  %v35 = vpop.xlane.xlu0 %34
  %v36 = vmul.f32 %v32, %v23
  %v37 = vmul.f32 %v35, %v23
  %v38 = vadd.f32 %v36, 1e-05
  %v39 = vadd.f32 %v37, 1e-05
  %v40 = vrsqrt.pop %v38
  %v41 = vrsqrt.pop %v39
  %v42 = vmul.f32 %v26, %v40
  %v43 = vmul.f32 %v27, %v41
  %v44 = vld [vmem:[%s1] sm:$0x1]
  %v46 = vlaneseq
  %v47 = vshrl.u32 %v46, 7
  %v48 = vsub.s32 0, %v47
  %v49 = vrot.slane %v44, %v48
  %v51 = vmul.f32 %v42, %v49
  %v52 = vmul.f32 %v43, %v49
  %v53 = vld [vmem:[%s2] sm:$0x1]
  %v55 = vlaneseq
  %v56 = vshrl.u32 %v55, 7
  %v57 = vsub.s32 0, %v56
  %v58 = vrot.slane %v53, %v57
  %v60 = vadd.f32 %v51, %v58
  %v61 = vadd.f32 %v52, %v58
  %62 = vst.msk [vmem:[%s3] sm:$0xff] %vm16, %v60
  %63 = vst.msk [vmem:[%s3 + $0x8] sm:$0xff] %vm16, %v61
  // Predicated region
  $region14: #{transformer_forward.43} parent=0 // pred_check
    _
  $region15: #{transformer_forward.43} parent=0 // pred_check_branch
    %65 = sbr.rel (0) target = $region17
  $region16: #{transformer_forward.43} parent=0 // pred_region
    _
  $region17: #{transformer_forward.43} parent=0 // pred_fallthru
    _
  // Predicated region
  $region18: #{transformer_forward.43} parent=0 // pred_check
    _
  $region19: #{transformer_forward.43} parent=0 // pred_check_branch
    %67 = sbr.rel (0) target = $region21
  $region20: #{transformer_forward.43} parent=0 // pred_region
    _
  $region21: #{transformer_forward.43} parent=0 // pred_fallthru
    _

// kernel: transformer_forward.58
$region0: #{transformer_forward.58}
  #allocation0 [shape = 'u32[]', space=smem, size = 0x4, offset = 0x4, fixed_abs, tag = 'smem constant byte address 0x4 - core index']
  #allocation1 [shape = 'u32[144,128]{1,0:T(1,128)}', space=vmem, size = 0x12000, scoped, tag = 'internal scratch']
  #allocation2 [shape = 'f32[16,128]{1,0:T(8,128)}', space=vmem, size = 0x2000, scoped, tag = 'scratch operand']
  %s0 = inlined_call_operand.vmem [shape: bf16[16,128], index: 0, kind: input, shape index: {}]
  %s1 = inlined_call_operand.vmem [shape: bf16[128,128], index: 1, kind: input, shape index: {}]
  %s2 = inlined_call_operand.vmem [shape: f32[1,128], index: 2, kind: input, shape index: {}]
  %s3 = inlined_call_operand.vmem [shape: f32[16,128], index: 3, kind: output, shape index: {}]
  %s4 = sld [smem:[#allocation0]]
  $region30: #{transformer_forward.58} parent=0
    _
  %s6 = ssub.s32 1, %s4
  %s7 = scalar_select 0, %s6, %s4
  // Predicated region
  $region2: #{transformer_forward.58} parent=0 // pred_check
    _
  $region3: #{transformer_forward.58} parent=0 // pred_check_branch
    %9 = sbr.rel (0) target = $region5
  $region4: #{transformer_forward.58} parent=0 // pred_region
    _
  $region5: #{transformer_forward.58} parent=0 // pred_fallthru
    _
  // Predicated region
  $region6: #{transformer_forward.58} parent=0 // pred_check
    _
  $region7: #{transformer_forward.58} parent=0 // pred_check_branch
    %11 = sbr.rel (0) target = $region9
  $region8: #{transformer_forward.58} parent=0 // pred_region
    _
  $region9: #{transformer_forward.58} parent=0 // pred_fallthru
    _
  // Predicated region
  $region10: #{transformer_forward.58} parent=0 // pred_check
    _
  $region11: #{transformer_forward.58} parent=0 // pred_check_branch
    %13 = sbr.rel (0) target = $region13
  $region12: #{transformer_forward.58} parent=0 // pred_region
    _
  $region13: #{transformer_forward.58} parent=0 // pred_fallthru
    _
  %p15 = scmp.eq.s32.totalorder 0, 0
  // Predicated region
  $region14: #{transformer_forward.58} parent=0 // pred_check
    %p16 = pneg %p15
  $region15: #{transformer_forward.58} parent=0 // pred_check_branch
    %18 = sbr.rel (%p16) target = $region17
  $region16: #{transformer_forward.58} parent=0 // pred_region
    %19 = vst [vmem:[#allocation2] sm:$0xff] 0.0
    %20 = vst [vmem:[#allocation2 + $0x8] sm:$0xff] 0.0
  $region17: #{transformer_forward.58} parent=0 // pred_fallthru
    _
  %v21 = vld [vmem:[#allocation2] sm:$0xff]
  %v22 = vld [vmem:[#allocation2 + $0x8] sm:$0xff]
  %v23 = vld [vmem:[%s0] sm:$0xf]
  %v24 = vld [vmem:[%s0 + $0x4] sm:$0xf]
  %v25 = vld [vmem:[%s1] sm:$0xf]
  %v26 = vld [vmem:[%s1 + $0x4] sm:$0xf]
  %v27 = vld [vmem:[%s1 + $0x8] sm:$0xf]
  %v28 = vld [vmem:[%s1 + $0xc] sm:$0xf]
  %v29 = vld [vmem:[%s1 + $0x10] sm:$0xf]
  %v30 = vld [vmem:[%s1 + $0x14] sm:$0xf]
  %v31 = vld [vmem:[%s1 + $0x18] sm:$0xf]
  %v32 = vld [vmem:[%s1 + $0x1c] sm:$0xf]
  %v33 = vld [vmem:[%s1 + $0x20] sm:$0xf]
  %v34 = vld [vmem:[%s1 + $0x24] sm:$0xf]
  %v35 = vld [vmem:[%s1 + $0x28] sm:$0xf]
  %v36 = vld [vmem:[%s1 + $0x2c] sm:$0xf]
  %v37 = vld [vmem:[%s1 + $0x30] sm:$0xf]
  %v38 = vld [vmem:[%s1 + $0x34] sm:$0xf]
  %v39 = vld [vmem:[%s1 + $0x38] sm:$0xf]
  %v40 = vld [vmem:[%s1 + $0x3c] sm:$0xf]
  %v43 = vunpack.c.l.b16 %v23
  %v44 = vunpack.c.l.b16 %v24
  %v45 = vpack.c.b16 %v44, %v43
  %v63 = vunpack.c.l.b16 %v25
  %v64 = vunpack.c.l.b16 %v26
  %v65 = vunpack.c.l.b16 %v27
  %v66 = vunpack.c.l.b16 %v28
  %v67 = vunpack.c.l.b16 %v29
  %v68 = vunpack.c.l.b16 %v30
  %v69 = vunpack.c.l.b16 %v31
  %v70 = vunpack.c.l.b16 %v32
  %v71 = vunpack.c.l.b16 %v33
  %v72 = vunpack.c.l.b16 %v34
  %v73 = vunpack.c.l.b16 %v35
  %v74 = vunpack.c.l.b16 %v36
  %v75 = vunpack.c.l.b16 %v37
  %v76 = vunpack.c.l.b16 %v38
  %v77 = vunpack.c.l.b16 %v39
  %v78 = vunpack.c.l.b16 %v40
  %v79 = vpack.c.b16 %v64, %v63
  %v80 = vpack.c.b16 %v66, %v65
  %v81 = vpack.c.b16 %v68, %v67
  %v82 = vpack.c.b16 %v70, %v69
  %v83 = vpack.c.b16 %v72, %v71
  %v84 = vpack.c.b16 %v74, %v73
  %v85 = vpack.c.b16 %v76, %v75
  %v86 = vpack.c.b16 %v78, %v77
  %95 = vmatprep.subr.bf16.mxu0 0
  %96 = vmatpush1.bf16.msra.mxu0 %v79
  %97 = vmatprep.subr.bf16.mxu0 0
  %98 = vmatpush1.bf16.msra.mxu0 %v80
  %99 = vmatprep.subr.bf16.mxu0 0
  %100 = vmatpush1.bf16.msra.mxu0 %v81
  %101 = vmatprep.subr.bf16.mxu0 0
  %102 = vmatpush1.bf16.msra.mxu0 %v82
  %103 = vmatprep.subr.bf16.mxu0 0
  %104 = vmatpush1.bf16.msra.mxu0 %v83
  %105 = vmatprep.subr.bf16.mxu0 0
  %106 = vmatpush1.bf16.msra.mxu0 %v84
  %107 = vmatprep.subr.bf16.mxu0 0
  %108 = vmatpush1.bf16.msra.mxu0 %v85
  %109 = vmatprep.subr.bf16.mxu0 0
  %110 = vmatpush1.bf16.msra.mxu0 %v86
  %111 = vmatprep.subr.bf16.mxu0 0
  %112 = vmatpush1.bf16.msra.mxu0 0
  %113 = vmatprep.subr.bf16.mxu0 0
  %114 = vmatpush1.bf16.msra.mxu0 0
  %115 = vmatprep.subr.bf16.mxu0 0
  %116 = vmatpush1.bf16.msra.mxu0 0
  %117 = vmatprep.subr.bf16.mxu0 0
  %118 = vmatpush1.bf16.msra.mxu0 0
  %119 = vmatprep.subr.bf16.mxu0 0
  %120 = vmatpush1.bf16.msra.mxu0 0
  %121 = vmatprep.subr.bf16.mxu0 0
  %122 = vmatpush1.bf16.msra.mxu0 0
  %123 = vmatprep.subr.bf16.mxu0 0
  %124 = vmatpush1.bf16.msra.mxu0 0
  %125 = vmatprep.subr.bf16.mxu0 0
  %126 = vmatpush1.bf16.msra.mxu0 0
  %127 = vmatprep.mubr.bf16.mxu0 0
  %128 = vmatmul.mubr.bf16.gmra.mrb[0].mxu0 %v45
  %v129 = vpop.f32.mrb[0].mxu0
  %v130 = vadd.f32 0.0, %v129
  %v131 = vpop.f32.mrb[0].mxu0
  %v132 = vpop.f32.mrb[0].mxu0
  %v133 = vadd.f32 0.0, %v132
  %v134 = vpop.f32.mrb[0].mxu0
  %135 = vdwg.mxu0
  %v136 = vadd.f32 %v21, %v130
  %v137 = vadd.f32 %v22, %v133
  %138 = vst [vmem:[#allocation2] sm:$0xff] %v136
  %139 = vst [vmem:[#allocation2 + $0x8] sm:$0xff] %v137
  // Predicated region
  $region18: #{transformer_forward.58} parent=0 // pred_check
    %p140 = pneg %p15
  $region19: #{transformer_forward.58} parent=0 // pred_check_branch
    %142 = sbr.rel (%p140) target = $region21
  $region20: #{transformer_forward.58} parent=0 // pred_region
    %v143 = vld [vmem:[#allocation2] sm:$0xff]
    %v144 = vld [vmem:[#allocation2 + $0x8] sm:$0xff]
    %v145 = vld [vmem:[%s2] sm:$0x1]
    %v147 = vlaneseq
    %v148 = vshrl.u32 %v147, 7
    %v149 = vsub.s32 0, %v148
    %v150 = vrot.slane %v145, %v149
    %v152 = vadd.f32 %v143, %v150
    %v153 = vadd.f32 %v144, %v150
    %154 = vst [vmem:[%s3] sm:$0xff] %v152
    %155 = vst [vmem:[%s3 + $0x8] sm:$0xff] %v153
  $region21: #{transformer_forward.58} parent=0 // pred_fallthru
    _
  // Predicated region
  $region22: #{transformer_forward.58} parent=0 // pred_check
    _
  $region23: #{transformer_forward.58} parent=0 // pred_check_branch
    %157 = sbr.rel (0) target = $region25
  $region24: #{transformer_forward.58} parent=0 // pred_region
    _
  $region25: #{transformer_forward.58} parent=0 // pred_fallthru
    _
  // Predicated region
  $region26: #{transformer_forward.58} parent=0 // pred_check
    _
  $region27: #{transformer_forward.58} parent=0 // pred_check_branch
    %159 = sbr.rel (0) target = $region29
  $region28: #{transformer_forward.58} parent=0 // pred_region
    _
  $region29: #{transformer_forward.58} parent=0 // pred_fallthru
    _

// kernel: transformer_forward.44
$region0: #{transformer_forward.44}
  #allocation0 [shape = 'u32[]', space=smem, size = 0x4, offset = 0x4, fixed_abs, tag = 'smem constant byte address 0x4 - core index']
  #allocation1 [shape = 'u32[144,128]{1,0:T(1,128)}', space=vmem, size = 0x12000, scoped, tag = 'internal scratch']
  #allocation2 [shape = 'f32[16,128]{1,0:T(8,128)}', space=vmem, size = 0x2000, scoped, tag = 'scratch operand']
  %s0 = inlined_call_operand.vmem [shape: bf16[16,128], index: 0, kind: input, shape index: {}]
  %s1 = inlined_call_operand.vmem [shape: bf16[128,128], index: 1, kind: input, shape index: {}]
  %s2 = inlined_call_operand.vmem [shape: f32[1,128], index: 2, kind: input, shape index: {}]
  %s3 = inlined_call_operand.vmem [shape: bf16[16,128], index: 3, kind: output, shape index: {}]
  %s4 = sld [smem:[#allocation0]]
  $region30: #{transformer_forward.44} parent=0
    _
  %s6 = ssub.s32 1, %s4
  %s7 = scalar_select 0, %s6, %s4
  // Predicated region
  $region2: #{transformer_forward.44} parent=0 // pred_check
    _
  $region3: #{transformer_forward.44} parent=0 // pred_check_branch
    %9 = sbr.rel (0) target = $region5
  $region4: #{transformer_forward.44} parent=0 // pred_region
    _
  $region5: #{transformer_forward.44} parent=0 // pred_fallthru
    _
  // Predicated region
  $region6: #{transformer_forward.44} parent=0 // pred_check
    _
  $region7: #{transformer_forward.44} parent=0 // pred_check_branch
    %11 = sbr.rel (0) target = $region9
  $region8: #{transformer_forward.44} parent=0 // pred_region
    _
  $region9: #{transformer_forward.44} parent=0 // pred_fallthru
    _
  // Predicated region
  $region10: #{transformer_forward.44} parent=0 // pred_check
    _
  $region11: #{transformer_forward.44} parent=0 // pred_check_branch
    %13 = sbr.rel (0) target = $region13
  $region12: #{transformer_forward.44} parent=0 // pred_region
    _
  $region13: #{transformer_forward.44} parent=0 // pred_fallthru
    _
  %p15 = scmp.eq.s32.totalorder 0, 0
  // Predicated region
  $region14: #{transformer_forward.44} parent=0 // pred_check
    %p16 = pneg %p15
  $region15: #{transformer_forward.44} parent=0 // pred_check_branch
    %18 = sbr.rel (%p16) target = $region17
  $region16: #{transformer_forward.44} parent=0 // pred_region
    %19 = vst [vmem:[#allocation2] sm:$0xff] 0.0
    %20 = vst [vmem:[#allocation2 + $0x8] sm:$0xff] 0.0
  $region17: #{transformer_forward.44} parent=0 // pred_fallthru
    _
  %v21 = vld [vmem:[#allocation2] sm:$0xff]
  %v22 = vld [vmem:[#allocation2 + $0x8] sm:$0xff]
  %v23 = vld [vmem:[%s0] sm:$0xf]
  %v24 = vld [vmem:[%s0 + $0x4] sm:$0xf]
  %v25 = vld [vmem:[%s1] sm:$0xf]
  %v26 = vld [vmem:[%s1 + $0x4] sm:$0xf]
  %v27 = vld [vmem:[%s1 + $0x8] sm:$0xf]
  %v28 = vld [vmem:[%s1 + $0xc] sm:$0xf]
  %v29 = vld [vmem:[%s1 + $0x10] sm:$0xf]
  %v30 = vld [vmem:[%s1 + $0x14] sm:$0xf]
  %v31 = vld [vmem:[%s1 + $0x18] sm:$0xf]
  %v32 = vld [vmem:[%s1 + $0x1c] sm:$0xf]
  %v33 = vld [vmem:[%s1 + $0x20] sm:$0xf]
  %v34 = vld [vmem:[%s1 + $0x24] sm:$0xf]
  %v35 = vld [vmem:[%s1 + $0x28] sm:$0xf]
  %v36 = vld [vmem:[%s1 + $0x2c] sm:$0xf]
  %v37 = vld [vmem:[%s1 + $0x30] sm:$0xf]
  %v38 = vld [vmem:[%s1 + $0x34] sm:$0xf]
  %v39 = vld [vmem:[%s1 + $0x38] sm:$0xf]
  %v40 = vld [vmem:[%s1 + $0x3c] sm:$0xf]
  %v43 = vunpack.c.l.b16 %v23
  %v44 = vunpack.c.l.b16 %v24
  %v45 = vpack.c.b16 %v44, %v43
  %v63 = vunpack.c.l.b16 %v25
  %v64 = vunpack.c.l.b16 %v26
  %v65 = vunpack.c.l.b16 %v27
  %v66 = vunpack.c.l.b16 %v28
  %v67 = vunpack.c.l.b16 %v29
  %v68 = vunpack.c.l.b16 %v30
  %v69 = vunpack.c.l.b16 %v31
  %v70 = vunpack.c.l.b16 %v32
  %v71 = vunpack.c.l.b16 %v33
  %v72 = vunpack.c.l.b16 %v34
  %v73 = vunpack.c.l.b16 %v35
  %v74 = vunpack.c.l.b16 %v36
  %v75 = vunpack.c.l.b16 %v37
  %v76 = vunpack.c.l.b16 %v38
  %v77 = vunpack.c.l.b16 %v39
  %v78 = vunpack.c.l.b16 %v40
  %v79 = vpack.c.b16 %v64, %v63
  %v80 = vpack.c.b16 %v66, %v65
  %v81 = vpack.c.b16 %v68, %v67
  %v82 = vpack.c.b16 %v70, %v69
  %v83 = vpack.c.b16 %v72, %v71
  %v84 = vpack.c.b16 %v74, %v73
  %v85 = vpack.c.b16 %v76, %v75
  %v86 = vpack.c.b16 %v78, %v77
  %95 = vmatprep.subr.bf16.mxu0 0
  %96 = vmatpush1.bf16.msra.mxu0 %v79
  %97 = vmatprep.subr.bf16.mxu0 0
  %98 = vmatpush1.bf16.msra.mxu0 %v80
  %99 = vmatprep.subr.bf16.mxu0 0
  %100 = vmatpush1.bf16.msra.mxu0 %v81
  %101 = vmatprep.subr.bf16.mxu0 0
  %102 = vmatpush1.bf16.msra.mxu0 %v82
  %103 = vmatprep.subr.bf16.mxu0 0
  %104 = vmatpush1.bf16.msra.mxu0 %v83
  %105 = vmatprep.subr.bf16.mxu0 0
  %106 = vmatpush1.bf16.msra.mxu0 %v84
  %107 = vmatprep.subr.bf16.mxu0 0
  %108 = vmatpush1.bf16.msra.mxu0 %v85
  %109 = vmatprep.subr.bf16.mxu0 0
  %110 = vmatpush1.bf16.msra.mxu0 %v86
  %111 = vmatprep.subr.bf16.mxu0 0
  %112 = vmatpush1.bf16.msra.mxu0 0
  %113 = vmatprep.subr.bf16.mxu0 0
  %114 = vmatpush1.bf16.msra.mxu0 0
  %115 = vmatprep.subr.bf16.mxu0 0
  %116 = vmatpush1.bf16.msra.mxu0 0
  %117 = vmatprep.subr.bf16.mxu0 0
  %118 = vmatpush1.bf16.msra.mxu0 0
  %119 = vmatprep.subr.bf16.mxu0 0
  %120 = vmatpush1.bf16.msra.mxu0 0
  %121 = vmatprep.subr.bf16.mxu0 0
  %122 = vmatpush1.bf16.msra.mxu0 0
  %123 = vmatprep.subr.bf16.mxu0 0
  %124 = vmatpush1.bf16.msra.mxu0 0
  %125 = vmatprep.subr.bf16.mxu0 0
  %126 = vmatpush1.bf16.msra.mxu0 0
  %127 = vmatprep.mubr.bf16.mxu0 0
  %128 = vmatmul.mubr.bf16.gmra.mrb[0].mxu0 %v45
  %v129 = vpop.f32.mrb[0].mxu0
  %v130 = vadd.f32 0.0, %v129
  %v131 = vpop.f32.mrb[0].mxu0
  %v132 = vpop.f32.mrb[0].mxu0
  %v133 = vadd.f32 0.0, %v132
  %v134 = vpop.f32.mrb[0].mxu0
  %135 = vdwg.mxu0
  %v136 = vadd.f32 %v21, %v130
  %v137 = vadd.f32 %v22, %v133
  %138 = vst [vmem:[#allocation2] sm:$0xff] %v136
  %139 = vst [vmem:[#allocation2 + $0x8] sm:$0xff] %v137
  // Predicated region
  $region18: #{transformer_forward.44} parent=0 // pred_check
    %p140 = pneg %p15
  $region19: #{transformer_forward.44} parent=0 // pred_check_branch
    %142 = sbr.rel (%p140) target = $region21
  $region20: #{transformer_forward.44} parent=0 // pred_region
    %v143 = vld [vmem:[#allocation2] sm:$0xff]
    %v144 = vld [vmem:[#allocation2 + $0x8] sm:$0xff]
    %v145 = vld [vmem:[%s2] sm:$0x1]
    %v147 = vlaneseq
    %v148 = vshrl.u32 %v147, 7
    %v149 = vsub.s32 0, %v148
    %v150 = vrot.slane %v145, %v149
    %v152 = vadd.f32 %v143, %v150
    %v153 = vadd.f32 %v144, %v150
    %v154 = vpack.c.bf16 %v153, %v152
    %v156 = vunpack.c.l.b16 %v154
    %v157 = vunpack.c.h.b16 %v154
    %v158 = vpack.c.b16 %v156, %v156
    %v159 = vpack.c.b16 %v157, %v157
    %162 = vst [vmem:[%s3] sm:$0xf] %v158
    %163 = vst [vmem:[%s3 + $0x4] sm:$0xf] %v159
  $region21: #{transformer_forward.44} parent=0 // pred_fallthru
    _
  // Predicated region
  $region22: #{transformer_forward.44} parent=0 // pred_check
    _
  $region23: #{transformer_forward.44} parent=0 // pred_check_branch
    %165 = sbr.rel (0) target = $region25
  $region24: #{transformer_forward.44} parent=0 // pred_region
    _
  $region25: #{transformer_forward.44} parent=0 // pred_fallthru
    _
  // Predicated region
  $region26: #{transformer_forward.44} parent=0 // pred_check
    _
  $region27: #{transformer_forward.44} parent=0 // pred_check_branch
    %167 = sbr.rel (0) target = $region29
  $region28: #{transformer_forward.44} parent=0 // pred_region
    _
  $region29: #{transformer_forward.44} parent=0 // pred_fallthru
    _

// kernel: transformer_forward.45
$region0: #{transformer_forward.45}
  #allocation0 [shape = 'u32[]', space=smem, size = 0x4, offset = 0x4, fixed_abs, tag = 'smem constant byte address 0x4 - core index']
  #allocation1 [shape = 'u32[144,128]{1,0:T(1,128)}', space=vmem, size = 0x12000, scoped, tag = 'internal scratch']
  #allocation2 [shape = 's32[1]{0}', space=sflag, size = 0x4, scoped, tag = 'scoped memory for transformer_forward.45']
  #allocation3 [shape = 'u8[512]{0}', space=smem, size = 0x200, scoped, tag = 'prefetched SMEM operand 0']
  %s0 = inlined_call_operand.vmem [shape: s32[2], index: 0, kind: input, shape index: {}]
  %s1 = inlined_call_operand.vmem [shape: bf16[2,8,32], index: 1, kind: input, shape index: {}]
  %s2 = inlined_call_operand.vmem [shape: bf16[2,8,32], index: 2, kind: input, shape index: {}]
  %s3 = inlined_call_operand.vmem [shape: bf16[2,8,32], index: 3, kind: input, shape index: {}]
  %s4 = inlined_call_operand.vmem [shape: bf16[2,8,32], index: 4, kind: output, shape index: {}]
  %s5 = sld [smem:[#allocation0]]
  $region45: #{transformer_forward.45} parent=0
    _
  %s7 = ssub.s32 1, %s5
  %s8 = scalar_select 0, %s7, %s5
  %s9 = sshll.u32 %s0, 4
  %s10 = int_to_ptr.vmem [resolvable:$true] %s9
  %12 = dma.vmem_to_smem %s10, 16, [#allocation3], [#allocation2]
  %13 = dma.done [#allocation2], 16
  %14 = sfence
  loop: start=0, step=1, limit=4
  $region2: #{transformer_forward.45} parent=0 // loop_pre_header
    _
  $region3: #{transformer_forward.45} parent=0 // loop_header
    %s16 = sphi 0, %s20
    %p17 = scmp.ge.s32.totalorder %s16, 4
    %s26 = sphi 0, %s28
    %s29 = sphi 0, %s26
    %s30 = sphi 0, %s29
    %s46 = sphi 0, %s30
    %s52 = sphi 0, %s54
    %s55 = sphi 0, %s52
    %s56 = sphi 0, %s55
    %s72 = sphi 0, %s56
    %s78 = sphi 0, %s80
    %s81 = sphi 0, %s78
    %s82 = sphi 0, %s81
    %s98 = sphi 0, %s82
    %s104 = sphi 0, %s106
    %s107 = sphi 0, %s104
    %s108 = sphi 0, %s107
    %s124 = sphi 0, %s108
  $region4: #{transformer_forward.45} parent=0 // loop_header_branch
    %19 = sbr.rel (%p17) target = $region8
  $region5: #{transformer_forward.45} parent=0 // loop_body
    %s21 = ssub.s32 %s16, 1
    %s22 = ssub.s32 %s16, 2
    %s23 = sadd.s32 %s16, 1
    %s24 = ssub.s32 %s16, %s23
    %p25 = scmp.eq.s32.totalorder %s24, 0
    %s27 = sadd.s32 %s26, 1
    %s28 = scalar_select %p25, %s26, %s27
    %p31 = pneg %p25
    %p32 = scmp.eq.s32.totalorder %s16, 1
    %p33 = por %p31, %p32
    %p34 = scmp.ne.s32.totalorder %s26, %s29
    %p35 = scmp.eq.s32.totalorder %s16, 0
    %p36 = por %p34, %p35
    %p37 = scmp.ne.s32.totalorder %s26, %s29
    %p38 = scmp.eq.s32.totalorder %s21, 1
    %p39 = por %p37, %p38
    %p40 = scmp.ne.s32.totalorder %s29, %s30
    %p41 = scmp.eq.s32.totalorder %s21, 0
    %p42 = por %p40, %p41
    %p43 = scmp.ne.s32.totalorder %s29, %s30
    %p44 = scmp.eq.s32.totalorder %s22, 1
    %p45 = por %p43, %p44
    %p47 = scmp.ne.s32.totalorder %s30, %s46
    %p48 = scmp.eq.s32.totalorder %s22, 0
    %p49 = por %p47, %p48
    %s50 = ssub.s32 %s16, %s23
    %p51 = scmp.eq.s32.totalorder %s50, 0
    %s53 = sadd.s32 %s52, 1
    %s54 = scalar_select %p51, %s52, %s53
    %p57 = pneg %p51
    %p58 = scmp.eq.s32.totalorder %s16, 1
    %p59 = por %p57, %p58
    %p60 = scmp.ne.s32.totalorder %s52, %s55
    %p61 = scmp.eq.s32.totalorder %s16, 0
    %p62 = por %p60, %p61
    %p63 = scmp.ne.s32.totalorder %s52, %s55
    %p64 = scmp.eq.s32.totalorder %s21, 1
    %p65 = por %p63, %p64
    %p66 = scmp.ne.s32.totalorder %s55, %s56
    %p67 = scmp.eq.s32.totalorder %s21, 0
    %p68 = por %p66, %p67
    %p69 = scmp.ne.s32.totalorder %s55, %s56
    %p70 = scmp.eq.s32.totalorder %s22, 1
    %p71 = por %p69, %p70
    %p73 = scmp.ne.s32.totalorder %s56, %s72
    %p74 = scmp.eq.s32.totalorder %s22, 0
    %p75 = por %p73, %p74
    %s76 = ssub.s32 %s16, %s23
    %p77 = scmp.eq.s32.totalorder %s76, 0
    %s79 = sadd.s32 %s78, 1
    %s80 = scalar_select %p77, %s78, %s79
    %p83 = pneg %p77
    %p84 = scmp.eq.s32.totalorder %s16, 1
    %p85 = por %p83, %p84
    %p86 = scmp.ne.s32.totalorder %s78, %s81
    %p87 = scmp.eq.s32.totalorder %s16, 0
    %p88 = por %p86, %p87
    %p89 = scmp.ne.s32.totalorder %s78, %s81
    %p90 = scmp.eq.s32.totalorder %s21, 1
    %p91 = por %p89, %p90
    %p92 = scmp.ne.s32.totalorder %s81, %s82
    %p93 = scmp.eq.s32.totalorder %s21, 0
    %p94 = por %p92, %p93
    %p95 = scmp.ne.s32.totalorder %s81, %s82
    %p96 = scmp.eq.s32.totalorder %s22, 1
    %p97 = por %p95, %p96
    %p99 = scmp.ne.s32.totalorder %s82, %s98
    %p100 = scmp.eq.s32.totalorder %s22, 0
    %p101 = por %p99, %p100
    %s102 = ssub.s32 %s16, %s23
    %p103 = scmp.eq.s32.totalorder %s102, 0
    %s105 = sadd.s32 %s104, 1
    %s106 = scalar_select %p103, %s104, %s105
    %p109 = pneg %p103
    %p110 = scmp.eq.s32.totalorder %s16, 1
    %p111 = por %p109, %p110
    %p112 = scmp.ne.s32.totalorder %s104, %s107
    %p113 = scmp.eq.s32.totalorder %s16, 0
    %p114 = por %p112, %p113
    %p115 = scmp.ne.s32.totalorder %s104, %s107
    %p116 = scmp.eq.s32.totalorder %s21, 1
    %p117 = por %p115, %p116
    %p118 = scmp.ne.s32.totalorder %s107, %s108
    %p119 = scmp.eq.s32.totalorder %s21, 0
    %p120 = por %p118, %p119
    %p121 = scmp.ne.s32.totalorder %s107, %s108
    %p122 = scmp.eq.s32.totalorder %s22, 1
    %p123 = por %p121, %p122
    %p125 = scmp.ne.s32.totalorder %s108, %s124
    %p126 = scmp.eq.s32.totalorder %s22, 0
    %p127 = por %p125, %p126
    %p128 = scmp.le.s32.totalorder 1, %s16
    %p129 = scmp.lt.s32.totalorder %s16, 3
    %p130 = pnand %p128, %p129
    %p131 = pneg %p130
    // Predicated region
    $region9: #{transformer_forward.45} parent=5 // pred_check
      _
    $region10: #{transformer_forward.45} parent=5 // pred_check_branch
      %133 = sbr.rel (%p130) target = $region12
    $region11: #{transformer_forward.45} parent=5 // pred_region
      %s134 = ssub.s32 %s16, 1
    $region12: #{transformer_forward.45} parent=5 // pred_fallthru
      _
    %p135 = scmp.lt.s32.totalorder %s16, 2
    // Predicated region
    $region13: #{transformer_forward.45} parent=5 // pred_check
      %p136 = pneg %p135
    $region14: #{transformer_forward.45} parent=5 // pred_check_branch
      %138 = sbr.rel (%p136) target = $region16
    $region15: #{transformer_forward.45} parent=5 // pred_region
      // Predicated region
      $region17: #{transformer_forward.45} parent=15 // pred_check
        %p139 = pneg %p36
      $region18: #{transformer_forward.45} parent=15 // pred_check_branch
        %141 = sbr.rel (%p139) target = $region20
      $region19: #{transformer_forward.45} parent=15 // pred_region
        %p142 = scmp.lt.s32.totalorder %s16, 1
        %s143 = scalar_select %p142, %s16, 1
        %s144 = smul.addr %s143, 4
        %s145 = scalar_lea.vmem %s1, %s144
      $region20: #{transformer_forward.45} parent=15 // pred_fallthru
        _
      // Predicated region
      $region21: #{transformer_forward.45} parent=15 // pred_check
        %p146 = pneg %p62
      $region22: #{transformer_forward.45} parent=15 // pred_check_branch
        %148 = sbr.rel (%p146) target = $region24
      $region23: #{transformer_forward.45} parent=15 // pred_region
        %p149 = scmp.lt.s32.totalorder %s16, 1
        %s150 = scalar_select %p149, %s16, 1
        %s151 = smul.addr %s150, 4
        %s152 = scalar_lea.vmem %s2, %s151
      $region24: #{transformer_forward.45} parent=15 // pred_fallthru
        _
      // Predicated region
      $region25: #{transformer_forward.45} parent=15 // pred_check
        %p153 = pneg %p88
      $region26: #{transformer_forward.45} parent=15 // pred_check_branch
        %155 = sbr.rel (%p153) target = $region28
      $region27: #{transformer_forward.45} parent=15 // pred_region
        %p156 = scmp.lt.s32.totalorder %s16, 1
        %s157 = scalar_select %p156, %s16, 1
        %s158 = smul.addr %s157, 4
        %s159 = scalar_lea.vmem %s3, %s158
      $region28: #{transformer_forward.45} parent=15 // pred_fallthru
        _
    $region16: #{transformer_forward.45} parent=5 // pred_fallthru
      _
    %p160 = scmp.le.s32.totalorder 1, %s16
    %p161 = scmp.lt.s32.totalorder %s16, 3
    %p162 = pnand %p160, %p161
    %p163 = pneg %p162
    // Predicated region
    $region29: #{transformer_forward.45} parent=5 // pred_check
      _
    $region30: #{transformer_forward.45} parent=5 // pred_check_branch
      %165 = sbr.rel (%p162) target = $region32
    $region31: #{transformer_forward.45} parent=5 // pred_region
      %s166 = ssub.s32 %s16, 1
      %p167 = scmp.lt.s32.totalorder %s21, 1
      %s168 = scalar_select %p167, %s21, 1
      %s169 = smul.addr %s168, 4
      %s170 = scalar_lea.vmem %s1, %s169
      %p171 = pneg %p42
      %p172 = pneg %p39
      %p173 = scmp.lt.s32.totalorder %s21, 1
      %s174 = scalar_select %p173, %s21, 1
      %s175 = smul.addr %s174, 4
      %s176 = scalar_lea.vmem %s2, %s175
      %p177 = pneg %p68
      %p178 = pneg %p65
      %p179 = scmp.lt.s32.totalorder %s21, 1
      %s180 = scalar_select %p179, %s21, 1
      %s181 = smul.addr %s180, 4
      %s182 = scalar_lea.vmem %s3, %s181
      %p183 = pneg %p94
      %p184 = pneg %p91
      %p185 = pneg %p120
      %p186 = pneg %p117
      %p187 = scmp.lt.s32.totalorder %s21, 1
      %s188 = scalar_select %p187, %s21, 1
      %s189 = smul.addr %s188, 4
      %s190 = scalar_lea.vmem %s4, %s189
      %p191 = scmp.lt.s32.totalorder %s21, 1
      %s192 = scalar_select %p191, %s21, 1
      %s193 = smul.addr %s192, 4
      %s194 = scalar_lea.vmem %s1, %s193
      %p195 = scmp.lt.s32.totalorder %s21, 1
      %s196 = scalar_select %p195, %s21, 1
      %s197 = smul.addr %s196, 4
      %s198 = scalar_lea.vmem %s2, %s197
      %p199 = scmp.lt.s32.totalorder %s21, 1
      %s200 = scalar_select %p199, %s21, 1
      %s201 = smul.addr %s200, 4
      %s202 = scalar_lea.vmem %s3, %s201
      %p203 = scmp.lt.s32.totalorder %s21, 1
      %s204 = scalar_select %p203, %s21, 1
      %s205 = smul.addr %s204, 4
      %s206 = scalar_lea.vmem %s4, %s205
      %v208 = vld [vmem:[%s194] sm:$0xf]
      %v209 = vld [vmem:[%s198] sm:$0xf]
      %v210 = vld [vmem:[%s202] sm:$0xf]
      %s211 = sld [smem:[#allocation3 + %s21]]
      %v212 = vlaneseq
      %v213 = vand.u32 %v212, 127
      %v214 = vstv %s211
      %vm215 = vcmp.ge.s32.totalorder %v213, %v214
      %v216 = vsel %vm215, -1e+30, 0.0
      %vm217 = vcmask 64512
      %v219 = vsel %vm217, %v208, 0
      %v222 = vsel %vm217, %v209, 0
      %224 = vmatprep.subr.bf16.mxu0 0
      %225 = vmatpush1.bf16.xpose.msra.mxu0 %v222
      %226 = vmatprep.subr.bf16.mxu0 0
      %227 = vmatpush1.bf16.xpose.msra.mxu0 0
      %228 = vmatprep.subr.bf16.mxu0 0
      %229 = vmatpush1.bf16.xpose.msra.mxu0 0
      %230 = vmatprep.subr.bf16.mxu0 0
      %231 = vmatpush1.bf16.xpose.msra.mxu0 0
      %232 = vmatprep.subr.bf16.mxu0 0
      %233 = vmatpush1.bf16.xpose.msra.mxu0 0
      %234 = vmatprep.subr.bf16.mxu0 0
      %235 = vmatpush1.bf16.xpose.msra.mxu0 0
      %236 = vmatprep.subr.bf16.mxu0 0
      %237 = vmatpush1.bf16.xpose.msra.mxu0 0
      %238 = vmatprep.subr.bf16.mxu0 0
      %239 = vmatpush1.bf16.xpose.msra.mxu0 0
      %240 = vmatprep.subr.bf16.mxu0 0
      %241 = vmatpush1.bf16.xpose.msra.mxu0 0
      %242 = vmatprep.subr.bf16.mxu0 0
      %243 = vmatpush1.bf16.xpose.msra.mxu0 0
      %244 = vmatprep.subr.bf16.mxu0 0
      %245 = vmatpush1.bf16.xpose.msra.mxu0 0
      %246 = vmatprep.subr.bf16.mxu0 0
      %247 = vmatpush1.bf16.xpose.msra.mxu0 0
      %248 = vmatprep.subr.bf16.mxu0 0
      %249 = vmatpush1.bf16.xpose.msra.mxu0 0
      %250 = vmatprep.subr.bf16.mxu0 0
      %251 = vmatpush1.bf16.xpose.msra.mxu0 0
      %252 = vmatprep.subr.bf16.mxu0 0
      %253 = vmatpush1.bf16.xpose.msra.mxu0 0
      %254 = vmatprep.subr.bf16.mxu0 0
      %255 = vmatpush1.bf16.xpose.msra.mxu0 0
      %256 = vmatprep.mubr.bf16.mxu0 0
      %257 = vmatmul.mubr.bf16.gmra.mrb[0].mxu0 %v219
      %v258 = vpop.f32.mrb[0].mxu0
      %v259 = vadd.f32 0.0, %v258
      %v260 = vpop.f32.mrb[0].mxu0
      %v261 = vpop.f32.mrb[0].mxu0
      %v262 = vpop.f32.mrb[0].mxu0
      %263 = vdwg.mxu0
      %v264 = vmul.f32 %v259, 0.35355338
      %v265 = vadd.f32 %v264, %v216
      %v266 = vsel %vm217, %v265, -inf
      %267 = vmax.xlane.f32.xlu0 %v266
      %v268 = vpop.xlane.xlu0 %267
      %v269 = vsub.f32 %v265, %v268
      %v270 = vmul.f32 %v269, 1.442695
      %v271 = vpow.pop %v270
      %v272 = vsel %vm217, %v271, 0.0
      %273 = vadd.xlane.f32.xlu0 %v272
      %v274 = vpop.xlane.xlu0 %273
      %v275 = vrcp.pop %v274
      %v276 = vmul.f32 %v271, %v275
      %v277 = vpack.c.bf16 %v276, %v276
      %v279 = vsel %vm217, %v277, 0
      %vm281 = vcmask 1043456
      %v283 = vsel %vm281, %v210, 0
      %285 = vmatprep.subr.bf16.mxu0 0
      %286 = vmatpush1.bf16.msra.mxu0 %v283
      %287 = vmatprep.subr.bf16.mxu0 0
      %288 = vmatpush1.bf16.msra.mxu0 0
      %289 = vmatprep.subr.bf16.mxu0 0
      %290 = vmatpush1.bf16.msra.mxu0 0
      %291 = vmatprep.subr.bf16.mxu0 0
      %292 = vmatpush1.bf16.msra.mxu0 0
      %293 = vmatprep.subr.bf16.mxu0 0
      %294 = vmatpush1.bf16.msra.mxu0 0
      %295 = vmatprep.subr.bf16.mxu0 0
      %296 = vmatpush1.bf16.msra.mxu0 0
      %297 = vmatprep.subr.bf16.mxu0 0
      %298 = vmatpush1.bf16.msra.mxu0 0
      %299 = vmatprep.subr.bf16.mxu0 0
      %300 = vmatpush1.bf16.msra.mxu0 0
      %301 = vmatprep.subr.bf16.mxu0 0
      %302 = vmatpush1.bf16.msra.mxu0 0
      %303 = vmatprep.subr.bf16.mxu0 0
      %304 = vmatpush1.bf16.msra.mxu0 0
      %305 = vmatprep.subr.bf16.mxu0 0
      %306 = vmatpush1.bf16.msra.mxu0 0
      %307 = vmatprep.subr.bf16.mxu0 0
      %308 = vmatpush1.bf16.msra.mxu0 0
      %309 = vmatprep.subr.bf16.mxu0 0
      %310 = vmatpush1.bf16.msra.mxu0 0
      %311 = vmatprep.subr.bf16.mxu0 0
      %312 = vmatpush1.bf16.msra.mxu0 0
      %313 = vmatprep.subr.bf16.mxu0 0
      %314 = vmatpush1.bf16.msra.mxu0 0
      %315 = vmatprep.subr.bf16.mxu0 0
      %316 = vmatpush1.bf16.msra.mxu0 0
      %317 = vmatprep.mubr.bf16.mxu0 0
      %318 = vmatmul.mubr.bf16.gmra.mrb[0].mxu0 %v279
      %v319 = vpop.f32.mrb[0].mxu0
      %v320 = vadd.f32 0.0, %v319
      %v321 = vpop.f32.mrb[0].mxu0
      %v322 = vpop.f32.mrb[0].mxu0
      %v323 = vpop.f32.mrb[0].mxu0
      %324 = vdwg.mxu0
      %v326 = vunpack.c.l.b16 %v208
      %v327 = vpack.c.b16 %v326, %v326
      %328 = vrot.lane.b32.xlu0 %v327, 120
      %v329 = vpop.permute.xlu0 %328
      %v331 = vunpack.c.l.b16 %v209
      %v332 = vpack.c.b16 %v331, %v331
      %333 = vrot.lane.b32.xlu0 %v332, 120
      %v334 = vpop.permute.xlu0 %333
      %v336 = vsel %vm217, %v329, 0
      %v339 = vsel %vm217, %v334, 0
      %341 = vmatprep.subr.bf16.mxu0 0
      %342 = vmatpush1.bf16.xpose.msra.mxu0 %v339
      %343 = vmatprep.subr.bf16.mxu0 0
      %344 = vmatpush1.bf16.xpose.msra.mxu0 0
      %345 = vmatprep.subr.bf16.mxu0 0
      %346 = vmatpush1.bf16.xpose.msra.mxu0 0
      %347 = vmatprep.subr.bf16.mxu0 0
      %348 = vmatpush1.bf16.xpose.msra.mxu0 0
      %349 = vmatprep.subr.bf16.mxu0 0
      %350 = vmatpush1.bf16.xpose.msra.mxu0 0
      %351 = vmatprep.subr.bf16.mxu0 0
      %352 = vmatpush1.bf16.xpose.msra.mxu0 0
      %353 = vmatprep.subr.bf16.mxu0 0
      %354 = vmatpush1.bf16.xpose.msra.mxu0 0
      %355 = vmatprep.subr.bf16.mxu0 0
      %356 = vmatpush1.bf16.xpose.msra.mxu0 0
      %357 = vmatprep.subr.bf16.mxu0 0
      %358 = vmatpush1.bf16.xpose.msra.mxu0 0
      %359 = vmatprep.subr.bf16.mxu0 0
      %360 = vmatpush1.bf16.xpose.msra.mxu0 0
      %361 = vmatprep.subr.bf16.mxu0 0
      %362 = vmatpush1.bf16.xpose.msra.mxu0 0
      %363 = vmatprep.subr.bf16.mxu0 0
      %364 = vmatpush1.bf16.xpose.msra.mxu0 0
      %365 = vmatprep.subr.bf16.mxu0 0
      %366 = vmatpush1.bf16.xpose.msra.mxu0 0
      %367 = vmatprep.subr.bf16.mxu0 0
      %368 = vmatpush1.bf16.xpose.msra.mxu0 0
      %369 = vmatprep.subr.bf16.mxu0 0
      %370 = vmatpush1.bf16.xpose.msra.mxu0 0
      %371 = vmatprep.subr.bf16.mxu0 0
      %372 = vmatpush1.bf16.xpose.msra.mxu0 0
      %373 = vmatprep.mubr.bf16.mxu0 0
      %374 = vmatmul.mubr.bf16.gmra.mrb[0].mxu0 %v336
      %v375 = vpop.f32.mrb[0].mxu0
      %v376 = vadd.f32 0.0, %v375
      %v377 = vpop.f32.mrb[0].mxu0
      %v378 = vpop.f32.mrb[0].mxu0
      %v379 = vpop.f32.mrb[0].mxu0
      %380 = vdwg.mxu0
      %v381 = vmul.f32 %v376, 0.35355338
      %v382 = vadd.f32 %v381, %v216
      %v383 = vsel %vm217, %v382, -inf
      %384 = vmax.xlane.f32.xlu0 %v383
      %v385 = vpop.xlane.xlu0 %384
      %v386 = vsub.f32 %v382, %v385
      %v387 = vmul.f32 %v386, 1.442695
      %v388 = vpow.pop %v387
      %v389 = vsel %vm217, %v388, 0.0
      %390 = vadd.xlane.f32.xlu0 %v389
      %v391 = vpop.xlane.xlu0 %390
      %v392 = vrcp.pop %v391
      %v393 = vmul.f32 %v388, %v392
      %v394 = vpack.c.bf16 %v393, %v393
      %v396 = vunpack.c.l.b16 %v210
      %v397 = vpack.c.b16 %v396, %v396
      %398 = vrot.lane.b32.xlu0 %v397, 120
      %v399 = vpop.permute.xlu0 %398
      %v401 = vsel %vm217, %v394, 0
      %v404 = vsel %vm281, %v399, 0
      %406 = vmatprep.subr.bf16.mxu0 0
      %407 = vmatpush1.bf16.msra.mxu0 %v404
      %408 = vmatprep.subr.bf16.mxu0 0
      %409 = vmatpush1.bf16.msra.mxu0 0
      %410 = vmatprep.subr.bf16.mxu0 0
      %411 = vmatpush1.bf16.msra.mxu0 0
      %412 = vmatprep.subr.bf16.mxu0 0
      %413 = vmatpush1.bf16.msra.mxu0 0
      %414 = vmatprep.subr.bf16.mxu0 0
      %415 = vmatpush1.bf16.msra.mxu0 0
      %416 = vmatprep.subr.bf16.mxu0 0
      %417 = vmatpush1.bf16.msra.mxu0 0
      %418 = vmatprep.subr.bf16.mxu0 0
      %419 = vmatpush1.bf16.msra.mxu0 0
      %420 = vmatprep.subr.bf16.mxu0 0
      %421 = vmatpush1.bf16.msra.mxu0 0
      %422 = vmatprep.subr.bf16.mxu0 0
      %423 = vmatpush1.bf16.msra.mxu0 0
      %424 = vmatprep.subr.bf16.mxu0 0
      %425 = vmatpush1.bf16.msra.mxu0 0
      %426 = vmatprep.subr.bf16.mxu0 0
      %427 = vmatpush1.bf16.msra.mxu0 0
      %428 = vmatprep.subr.bf16.mxu0 0
      %429 = vmatpush1.bf16.msra.mxu0 0
      %430 = vmatprep.subr.bf16.mxu0 0
      %431 = vmatpush1.bf16.msra.mxu0 0
      %432 = vmatprep.subr.bf16.mxu0 0
      %433 = vmatpush1.bf16.msra.mxu0 0
      %434 = vmatprep.subr.bf16.mxu0 0
      %435 = vmatpush1.bf16.msra.mxu0 0
      %436 = vmatprep.subr.bf16.mxu0 0
      %437 = vmatpush1.bf16.msra.mxu0 0
      %438 = vmatprep.mubr.bf16.mxu0 0
      %439 = vmatmul.mubr.bf16.gmra.mrb[0].mxu0 %v401
      %v440 = vpop.f32.mrb[0].mxu0
      %v441 = vadd.f32 0.0, %v440
      %v442 = vpop.f32.mrb[0].mxu0
      %v443 = vpop.f32.mrb[0].mxu0
      %v444 = vpop.f32.mrb[0].mxu0
      %445 = vdwg.mxu0
      %446 = vrot.lane.b32.xlu0 %v327, 112
      %v447 = vpop.permute.xlu0 %446
      %448 = vrot.lane.b32.xlu0 %v332, 112
      %v449 = vpop.permute.xlu0 %448
      %v451 = vsel %vm217, %v447, 0
      %v454 = vsel %vm217, %v449, 0
      %456 = vmatprep.subr.bf16.mxu0 0
      %457 = vmatpush1.bf16.xpose.msra.mxu0 %v454
      %458 = vmatprep.subr.bf16.mxu0 0
      %459 = vmatpush1.bf16.xpose.msra.mxu0 0
      %460 = vmatprep.subr.bf16.mxu0 0
      %461 = vmatpush1.bf16.xpose.msra.mxu0 0
      %462 = vmatprep.subr.bf16.mxu0 0
      %463 = vmatpush1.bf16.xpose.msra.mxu0 0
      %464 = vmatprep.subr.bf16.mxu0 0
      %465 = vmatpush1.bf16.xpose.msra.mxu0 0
      %466 = vmatprep.subr.bf16.mxu0 0
      %467 = vmatpush1.bf16.xpose.msra.mxu0 0
      %468 = vmatprep.subr.bf16.mxu0 0
      %469 = vmatpush1.bf16.xpose.msra.mxu0 0
      %470 = vmatprep.subr.bf16.mxu0 0
      %471 = vmatpush1.bf16.xpose.msra.mxu0 0
      %472 = vmatprep.subr.bf16.mxu0 0
      %473 = vmatpush1.bf16.xpose.msra.mxu0 0
      %474 = vmatprep.subr.bf16.mxu0 0
      %475 = vmatpush1.bf16.xpose.msra.mxu0 0
      %476 = vmatprep.subr.bf16.mxu0 0
      %477 = vmatpush1.bf16.xpose.msra.mxu0 0
      %478 = vmatprep.subr.bf16.mxu0 0
      %479 = vmatpush1.bf16.xpose.msra.mxu0 0
      %480 = vmatprep.subr.bf16.mxu0 0
      %481 = vmatpush1.bf16.xpose.msra.mxu0 0
      %482 = vmatprep.subr.bf16.mxu0 0
      %483 = vmatpush1.bf16.xpose.msra.mxu0 0
      %484 = vmatprep.subr.bf16.mxu0 0
      %485 = vmatpush1.bf16.xpose.msra.mxu0 0
      %486 = vmatprep.subr.bf16.mxu0 0
      %487 = vmatpush1.bf16.xpose.msra.mxu0 0
      %488 = vmatprep.mubr.bf16.mxu0 0
      %489 = vmatmul.mubr.bf16.gmra.mrb[0].mxu0 %v451
      %v490 = vpop.f32.mrb[0].mxu0
      %v491 = vadd.f32 0.0, %v490
      %v492 = vpop.f32.mrb[0].mxu0
      %v493 = vpop.f32.mrb[0].mxu0
      %v494 = vpop.f32.mrb[0].mxu0
      %495 = vdwg.mxu0
      %v496 = vmul.f32 %v491, 0.35355338
      %v497 = vadd.f32 %v496, %v216
      %v498 = vsel %vm217, %v497, -inf
      %499 = vmax.xlane.f32.xlu0 %v498
      %v500 = vpop.xlane.xlu0 %499
      %v501 = vsub.f32 %v497, %v500
      %v502 = vmul.f32 %v501, 1.442695
      %v503 = vpow.pop %v502
      %v504 = vsel %vm217, %v503, 0.0
      %505 = vadd.xlane.f32.xlu0 %v504
      %v506 = vpop.xlane.xlu0 %505
      %v507 = vrcp.pop %v506
      %v508 = vmul.f32 %v503, %v507
      %v509 = vpack.c.bf16 %v508, %v508
      %510 = vrot.lane.b32.xlu0 %v397, 112
      %v511 = vpop.permute.xlu0 %510
      %v513 = vsel %vm217, %v509, 0
      %v516 = vsel %vm281, %v511, 0
      %518 = vmatprep.subr.bf16.mxu0 0
      %519 = vmatpush1.bf16.msra.mxu0 %v516
      %520 = vmatprep.subr.bf16.mxu0 0
      %521 = vmatpush1.bf16.msra.mxu0 0
      %522 = vmatprep.subr.bf16.mxu0 0
      %523 = vmatpush1.bf16.msra.mxu0 0
      %524 = vmatprep.subr.bf16.mxu0 0
      %525 = vmatpush1.bf16.msra.mxu0 0
      %526 = vmatprep.subr.bf16.mxu0 0
      %527 = vmatpush1.bf16.msra.mxu0 0
      %528 = vmatprep.subr.bf16.mxu0 0
      %529 = vmatpush1.bf16.msra.mxu0 0
      %530 = vmatprep.subr.bf16.mxu0 0
      %531 = vmatpush1.bf16.msra.mxu0 0
      %532 = vmatprep.subr.bf16.mxu0 0
      %533 = vmatpush1.bf16.msra.mxu0 0
      %534 = vmatprep.subr.bf16.mxu0 0
      %535 = vmatpush1.bf16.msra.mxu0 0
      %536 = vmatprep.subr.bf16.mxu0 0
      %537 = vmatpush1.bf16.msra.mxu0 0
      %538 = vmatprep.subr.bf16.mxu0 0
      %539 = vmatpush1.bf16.msra.mxu0 0
      %540 = vmatprep.subr.bf16.mxu0 0
      %541 = vmatpush1.bf16.msra.mxu0 0
      %542 = vmatprep.subr.bf16.mxu0 0
      %543 = vmatpush1.bf16.msra.mxu0 0
      %544 = vmatprep.subr.bf16.mxu0 0
      %545 = vmatpush1.bf16.msra.mxu0 0
      %546 = vmatprep.subr.bf16.mxu0 0
      %547 = vmatpush1.bf16.msra.mxu0 0
      %548 = vmatprep.subr.bf16.mxu0 0
      %549 = vmatpush1.bf16.msra.mxu0 0
      %550 = vmatprep.mubr.bf16.mxu0 0
      %551 = vmatmul.mubr.bf16.gmra.mrb[0].mxu0 %v513
      %v552 = vpop.f32.mrb[0].mxu0
      %v553 = vadd.f32 0.0, %v552
      %v554 = vpop.f32.mrb[0].mxu0
      %v555 = vpop.f32.mrb[0].mxu0
      %v556 = vpop.f32.mrb[0].mxu0
      %557 = vdwg.mxu0
      %558 = vrot.lane.b32.xlu0 %v327, 104
      %v559 = vpop.permute.xlu0 %558
      %560 = vrot.lane.b32.xlu0 %v332, 104
      %v561 = vpop.permute.xlu0 %560
      %v563 = vsel %vm217, %v559, 0
      %v566 = vsel %vm217, %v561, 0
      %568 = vmatprep.subr.bf16.mxu0 0
      %569 = vmatpush1.bf16.xpose.msra.mxu0 %v566
      %570 = vmatprep.subr.bf16.mxu0 0
      %571 = vmatpush1.bf16.xpose.msra.mxu0 0
      %572 = vmatprep.subr.bf16.mxu0 0
      %573 = vmatpush1.bf16.xpose.msra.mxu0 0
      %574 = vmatprep.subr.bf16.mxu0 0
      %575 = vmatpush1.bf16.xpose.msra.mxu0 0
      %576 = vmatprep.subr.bf16.mxu0 0
      %577 = vmatpush1.bf16.xpose.msra.mxu0 0
      %578 = vmatprep.subr.bf16.mxu0 0
      %579 = vmatpush1.bf16.xpose.msra.mxu0 0
      %580 = vmatprep.subr.bf16.mxu0 0
      %581 = vmatpush1.bf16.xpose.msra.mxu0 0
      %582 = vmatprep.subr.bf16.mxu0 0
      %583 = vmatpush1.bf16.xpose.msra.mxu0 0
      %584 = vmatprep.subr.bf16.mxu0 0
      %585 = vmatpush1.bf16.xpose.msra.mxu0 0
      %586 = vmatprep.subr.bf16.mxu0 0
      %587 = vmatpush1.bf16.xpose.msra.mxu0 0
      %588 = vmatprep.subr.bf16.mxu0 0
      %589 = vmatpush1.bf16.xpose.msra.mxu0 0
      %590 = vmatprep.subr.bf16.mxu0 0
      %591 = vmatpush1.bf16.xpose.msra.mxu0 0
      %592 = vmatprep.subr.bf16.mxu0 0
      %593 = vmatpush1.bf16.xpose.msra.mxu0 0
      %594 = vmatprep.subr.bf16.mxu0 0
      %595 = vmatpush1.bf16.xpose.msra.mxu0 0
      %596 = vmatprep.subr.bf16.mxu0 0
      %597 = vmatpush1.bf16.xpose.msra.mxu0 0
      %598 = vmatprep.subr.bf16.mxu0 0
      %599 = vmatpush1.bf16.xpose.msra.mxu0 0
      %600 = vmatprep.mubr.bf16.mxu0 0
      %601 = vmatmul.mubr.bf16.gmra.mrb[0].mxu0 %v563
      %v602 = vpop.f32.mrb[0].mxu0
      %v603 = vadd.f32 0.0, %v602
      %v604 = vpop.f32.mrb[0].mxu0
      %v605 = vpop.f32.mrb[0].mxu0
      %v606 = vpop.f32.mrb[0].mxu0
      %607 = vdwg.mxu0
      %v608 = vmul.f32 %v603, 0.35355338
      %v609 = vadd.f32 %v608, %v216
      %v610 = vsel %vm217, %v609, -inf
      %611 = vmax.xlane.f32.xlu0 %v610
      %v612 = vpop.xlane.xlu0 %611
      %v613 = vsub.f32 %v609, %v612
      %v614 = vmul.f32 %v613, 1.442695
      %v615 = vpow.pop %v614
      %v616 = vsel %vm217, %v615, 0.0
      %617 = vadd.xlane.f32.xlu0 %v616
      %v618 = vpop.xlane.xlu0 %617
      %v619 = vrcp.pop %v618
      %v620 = vmul.f32 %v615, %v619
      %v621 = vpack.c.bf16 %v620, %v620
      %622 = vrot.lane.b32.xlu0 %v397, 104
      %v623 = vpop.permute.xlu0 %622
      %v625 = vsel %vm217, %v621, 0
      %v628 = vsel %vm281, %v623, 0
      %630 = vmatprep.subr.bf16.mxu0 0
      %631 = vmatpush1.bf16.msra.mxu0 %v628
      %632 = vmatprep.subr.bf16.mxu0 0
      %633 = vmatpush1.bf16.msra.mxu0 0
      %634 = vmatprep.subr.bf16.mxu0 0
      %635 = vmatpush1.bf16.msra.mxu0 0
      %636 = vmatprep.subr.bf16.mxu0 0
      %637 = vmatpush1.bf16.msra.mxu0 0
      %638 = vmatprep.subr.bf16.mxu0 0
      %639 = vmatpush1.bf16.msra.mxu0 0
      %640 = vmatprep.subr.bf16.mxu0 0
      %641 = vmatpush1.bf16.msra.mxu0 0
      %642 = vmatprep.subr.bf16.mxu0 0
      %643 = vmatpush1.bf16.msra.mxu0 0
      %644 = vmatprep.subr.bf16.mxu0 0
      %645 = vmatpush1.bf16.msra.mxu0 0
      %646 = vmatprep.subr.bf16.mxu0 0
      %647 = vmatpush1.bf16.msra.mxu0 0
      %648 = vmatprep.subr.bf16.mxu0 0
      %649 = vmatpush1.bf16.msra.mxu0 0
      %650 = vmatprep.subr.bf16.mxu0 0
      %651 = vmatpush1.bf16.msra.mxu0 0
      %652 = vmatprep.subr.bf16.mxu0 0
      %653 = vmatpush1.bf16.msra.mxu0 0
      %654 = vmatprep.subr.bf16.mxu0 0
      %655 = vmatpush1.bf16.msra.mxu0 0
      %656 = vmatprep.subr.bf16.mxu0 0
      %657 = vmatpush1.bf16.msra.mxu0 0
      %658 = vmatprep.subr.bf16.mxu0 0
      %659 = vmatpush1.bf16.msra.mxu0 0
      %660 = vmatprep.subr.bf16.mxu0 0
      %661 = vmatpush1.bf16.msra.mxu0 0
      %662 = vmatprep.mubr.bf16.mxu0 0
      %663 = vmatmul.mubr.bf16.gmra.mrb[0].mxu0 %v625
      %v664 = vpop.f32.mrb[0].mxu0
      %v665 = vadd.f32 0.0, %v664
      %v666 = vpop.f32.mrb[0].mxu0
      %v667 = vpop.f32.mrb[0].mxu0
      %v668 = vpop.f32.mrb[0].mxu0
      %669 = vdwg.mxu0
      %671 = vrot.lane.b32.xlu0 %v441, 8
      %v672 = vpop.permute.xlu0 %671
      %675 = vrot.lane.b32.xlu0 %v553, 16
      %v676 = vpop.permute.xlu0 %675
      %679 = vrot.lane.b32.xlu0 %v665, 24
      %v680 = vpop.permute.xlu0 %679
      %v682 = vsel %vm217, %v320, %v672
      %vm683 = vcmask 130048
      %v684 = vsel %vm683, %v682, %v676
      %vm685 = vcmask 195584
      %v686 = vsel %vm685, %v684, %v680
      %v687 = vpack.c.bf16 %v686, %v686
      %vm688 = vcmask 257024
      %689 = vst.msk [vmem:[%s206] sm:$0xf] %vm688, %v687
      %p690 = scmp.lt.s32.totalorder %s21, 1
      %s691 = scalar_select %p690, %s21, 1
      %s692 = smul.addr %s691, 4
      %s693 = scalar_lea.vmem %s4, %s692
      // Predicated region
      $region33: #{transformer_forward.45} parent=31 // pred_check
        %p694 = pneg %p117
      $region34: #{transformer_forward.45} parent=31 // pred_check_branch
        %696 = sbr.rel (%p694) target = $region36
      $region35: #{transformer_forward.45} parent=31 // pred_region
        _
      $region36: #{transformer_forward.45} parent=31 // pred_fallthru
        _
    $region32: #{transformer_forward.45} parent=5 // pred_fallthru
      _
    %p697 = scmp.le.s32.totalorder 2, %s16
    // Predicated region
    $region37: #{transformer_forward.45} parent=5 // pred_check
      %p698 = pneg %p697
    $region38: #{transformer_forward.45} parent=5 // pred_check_branch
      %700 = sbr.rel (%p698) target = $region40
    $region39: #{transformer_forward.45} parent=5 // pred_region
      %s701 = ssub.s32 %s16, 2
      // Predicated region
      $region41: #{transformer_forward.45} parent=39 // pred_check
        %p702 = pneg %p123
      $region42: #{transformer_forward.45} parent=39 // pred_check_branch
        %704 = sbr.rel (%p702) target = $region44
      $region43: #{transformer_forward.45} parent=39 // pred_region
        %p705 = scmp.lt.s32.totalorder %s22, 1
        %s706 = scalar_select %p705, %s22, 1
        %s707 = smul.addr %s706, 4
        %s708 = scalar_lea.vmem %s4, %s707
      $region44: #{transformer_forward.45} parent=39 // pred_fallthru
        _
    $region40: #{transformer_forward.45} parent=5 // pred_fallthru
      _
  $region6: #{transformer_forward.45} parent=0 // loop_footer
    %s20 = sadd.s32 1, %s16
  $region7: #{transformer_forward.45} parent=0 // loop_footer_branch
    %15 = sbr.rel target = $region3
  $region8: #{transformer_forward.45} parent=0 // loop_exit
    _

// kernel: transformer_forward.46
$region0: #{transformer_forward.46}
  #allocation0 [shape = 'u32[]', space=smem, size = 0x4, offset = 0x4, fixed_abs, tag = 'smem constant byte address 0x4 - core index']
  #allocation1 [shape = 'u32[144,128]{1,0:T(1,128)}', space=vmem, size = 0x12000, scoped, tag = 'internal scratch']
  #allocation2 [shape = 'f32[16,128]{1,0:T(8,128)}', space=vmem, size = 0x2000, scoped, tag = 'scratch operand']
  %s0 = inlined_call_operand.vmem [shape: bf16[16,128], index: 0, kind: input, shape index: {}]
  %s1 = inlined_call_operand.vmem [shape: bf16[128,128], index: 1, kind: input, shape index: {}]
  %s2 = inlined_call_operand.vmem [shape: f32[1,128], index: 2, kind: input, shape index: {}]
  %s3 = inlined_call_operand.vmem [shape: f32[16,128], index: 3, kind: input, shape index: {}]
  %s4 = inlined_call_operand.vmem [shape: f32[16,128], index: 4, kind: output, shape index: {}]
  %s5 = sld [smem:[#allocation0]]
  $region34: #{transformer_forward.46} parent=0
    _
  %s7 = ssub.s32 1, %s5
  %s8 = scalar_select 0, %s7, %s5
  // Predicated region
  $region2: #{transformer_forward.46} parent=0 // pred_check
    _
  $region3: #{transformer_forward.46} parent=0 // pred_check_branch
    %10 = sbr.rel (0) target = $region5
  $region4: #{transformer_forward.46} parent=0 // pred_region
    _
  $region5: #{transformer_forward.46} parent=0 // pred_fallthru
    _
  // Predicated region
  $region6: #{transformer_forward.46} parent=0 // pred_check
    _
  $region7: #{transformer_forward.46} parent=0 // pred_check_branch
    %12 = sbr.rel (0) target = $region9
  $region8: #{transformer_forward.46} parent=0 // pred_region
    _
  $region9: #{transformer_forward.46} parent=0 // pred_fallthru
    _
  // Predicated region
  $region10: #{transformer_forward.46} parent=0 // pred_check
    _
  $region11: #{transformer_forward.46} parent=0 // pred_check_branch
    %14 = sbr.rel (0) target = $region13
  $region12: #{transformer_forward.46} parent=0 // pred_region
    _
  $region13: #{transformer_forward.46} parent=0 // pred_fallthru
    _
  // Predicated region
  $region14: #{transformer_forward.46} parent=0 // pred_check
    _
  $region15: #{transformer_forward.46} parent=0 // pred_check_branch
    %16 = sbr.rel (0) target = $region17
  $region16: #{transformer_forward.46} parent=0 // pred_region
    _
  $region17: #{transformer_forward.46} parent=0 // pred_fallthru
    _
  %p18 = scmp.eq.s32.totalorder 0, 0
  // Predicated region
  $region18: #{transformer_forward.46} parent=0 // pred_check
    %p19 = pneg %p18
  $region19: #{transformer_forward.46} parent=0 // pred_check_branch
    %21 = sbr.rel (%p19) target = $region21
  $region20: #{transformer_forward.46} parent=0 // pred_region
    %22 = vst [vmem:[#allocation2] sm:$0xff] 0.0
    %23 = vst [vmem:[#allocation2 + $0x8] sm:$0xff] 0.0
  $region21: #{transformer_forward.46} parent=0 // pred_fallthru
    _
  %v24 = vld [vmem:[#allocation2] sm:$0xff]
  %v25 = vld [vmem:[#allocation2 + $0x8] sm:$0xff]
  %v26 = vld [vmem:[%s0] sm:$0xf]
  %v27 = vld [vmem:[%s0 + $0x4] sm:$0xf]
  %v28 = vld [vmem:[%s1] sm:$0xf]
  %v29 = vld [vmem:[%s1 + $0x4] sm:$0xf]
  %v30 = vld [vmem:[%s1 + $0x8] sm:$0xf]
  %v31 = vld [vmem:[%s1 + $0xc] sm:$0xf]
  %v32 = vld [vmem:[%s1 + $0x10] sm:$0xf]
  %v33 = vld [vmem:[%s1 + $0x14] sm:$0xf]
  %v34 = vld [vmem:[%s1 + $0x18] sm:$0xf]
  %v35 = vld [vmem:[%s1 + $0x1c] sm:$0xf]
  %v36 = vld [vmem:[%s1 + $0x20] sm:$0xf]
  %v37 = vld [vmem:[%s1 + $0x24] sm:$0xf]
  %v38 = vld [vmem:[%s1 + $0x28] sm:$0xf]
  %v39 = vld [vmem:[%s1 + $0x2c] sm:$0xf]
  %v40 = vld [vmem:[%s1 + $0x30] sm:$0xf]
  %v41 = vld [vmem:[%s1 + $0x34] sm:$0xf]
  %v42 = vld [vmem:[%s1 + $0x38] sm:$0xf]
  %v43 = vld [vmem:[%s1 + $0x3c] sm:$0xf]
  %v46 = vunpack.c.l.b16 %v26
  %v47 = vunpack.c.l.b16 %v27
  %v48 = vpack.c.b16 %v47, %v46
  %v66 = vunpack.c.l.b16 %v28
  %v67 = vunpack.c.l.b16 %v29
  %v68 = vunpack.c.l.b16 %v30
  %v69 = vunpack.c.l.b16 %v31
  %v70 = vunpack.c.l.b16 %v32
  %v71 = vunpack.c.l.b16 %v33
  %v72 = vunpack.c.l.b16 %v34
  %v73 = vunpack.c.l.b16 %v35
  %v74 = vunpack.c.l.b16 %v36
  %v75 = vunpack.c.l.b16 %v37
  %v76 = vunpack.c.l.b16 %v38
  %v77 = vunpack.c.l.b16 %v39
  %v78 = vunpack.c.l.b16 %v40
  %v79 = vunpack.c.l.b16 %v41
  %v80 = vunpack.c.l.b16 %v42
  %v81 = vunpack.c.l.b16 %v43
  %v82 = vpack.c.b16 %v67, %v66
  %v83 = vpack.c.b16 %v69, %v68
  %v84 = vpack.c.b16 %v71, %v70
  %v85 = vpack.c.b16 %v73, %v72
  %v86 = vpack.c.b16 %v75, %v74
  %v87 = vpack.c.b16 %v77, %v76
  %v88 = vpack.c.b16 %v79, %v78
  %v89 = vpack.c.b16 %v81, %v80
  %98 = vmatprep.subr.bf16.mxu0 0
  %99 = vmatpush1.bf16.msra.mxu0 %v82
  %100 = vmatprep.subr.bf16.mxu0 0
  %101 = vmatpush1.bf16.msra.mxu0 %v83
  %102 = vmatprep.subr.bf16.mxu0 0
  %103 = vmatpush1.bf16.msra.mxu0 %v84
  %104 = vmatprep.subr.bf16.mxu0 0
  %105 = vmatpush1.bf16.msra.mxu0 %v85
  %106 = vmatprep.subr.bf16.mxu0 0
  %107 = vmatpush1.bf16.msra.mxu0 %v86
  %108 = vmatprep.subr.bf16.mxu0 0
  %109 = vmatpush1.bf16.msra.mxu0 %v87
  %110 = vmatprep.subr.bf16.mxu0 0
  %111 = vmatpush1.bf16.msra.mxu0 %v88
  %112 = vmatprep.subr.bf16.mxu0 0
  %113 = vmatpush1.bf16.msra.mxu0 %v89
  %114 = vmatprep.subr.bf16.mxu0 0
  %115 = vmatpush1.bf16.msra.mxu0 0
  %116 = vmatprep.subr.bf16.mxu0 0
  %117 = vmatpush1.bf16.msra.mxu0 0
  %118 = vmatprep.subr.bf16.mxu0 0
  %119 = vmatpush1.bf16.msra.mxu0 0
  %120 = vmatprep.subr.bf16.mxu0 0
  %121 = vmatpush1.bf16.msra.mxu0 0
  %122 = vmatprep.subr.bf16.mxu0 0
  %123 = vmatpush1.bf16.msra.mxu0 0
  %124 = vmatprep.subr.bf16.mxu0 0
  %125 = vmatpush1.bf16.msra.mxu0 0
  %126 = vmatprep.subr.bf16.mxu0 0
  %127 = vmatpush1.bf16.msra.mxu0 0
  %128 = vmatprep.subr.bf16.mxu0 0
  %129 = vmatpush1.bf16.msra.mxu0 0
  %130 = vmatprep.mubr.bf16.mxu0 0
  %131 = vmatmul.mubr.bf16.gmra.mrb[0].mxu0 %v48
  %v132 = vpop.f32.mrb[0].mxu0
  %v133 = vadd.f32 0.0, %v132
  %v134 = vpop.f32.mrb[0].mxu0
  %v135 = vpop.f32.mrb[0].mxu0
  %v136 = vadd.f32 0.0, %v135
  %v137 = vpop.f32.mrb[0].mxu0
  %138 = vdwg.mxu0
  %v139 = vadd.f32 %v24, %v133
  %v140 = vadd.f32 %v25, %v136
  %141 = vst [vmem:[#allocation2] sm:$0xff] %v139
  %142 = vst [vmem:[#allocation2 + $0x8] sm:$0xff] %v140
  // Predicated region
  $region22: #{transformer_forward.46} parent=0 // pred_check
    %p143 = pneg %p18
  $region23: #{transformer_forward.46} parent=0 // pred_check_branch
    %145 = sbr.rel (%p143) target = $region25
  $region24: #{transformer_forward.46} parent=0 // pred_region
    %v146 = vld [vmem:[#allocation2] sm:$0xff]
    %v147 = vld [vmem:[#allocation2 + $0x8] sm:$0xff]
    %v148 = vld [vmem:[%s2] sm:$0x1]
    %v150 = vlaneseq
    %v151 = vshrl.u32 %v150, 7
    %v152 = vsub.s32 0, %v151
    %v153 = vrot.slane %v148, %v152
    %v155 = vadd.f32 %v146, %v153
    %v156 = vadd.f32 %v147, %v153
    %v157 = vld [vmem:[%s3] sm:$0xff]
    %v158 = vld [vmem:[%s3 + $0x8] sm:$0xff]
    %v159 = vadd.f32 %v155, %v157
    %v160 = vadd.f32 %v156, %v158
    %161 = vst [vmem:[%s4] sm:$0xff] %v159
    %162 = vst [vmem:[%s4 + $0x8] sm:$0xff] %v160
  $region25: #{transformer_forward.46} parent=0 // pred_fallthru
    _
  // Predicated region
  $region26: #{transformer_forward.46} parent=0 // pred_check
    _
  $region27: #{transformer_forward.46} parent=0 // pred_check_branch
    %164 = sbr.rel (0) target = $region29
  $region28: #{transformer_forward.46} parent=0 // pred_region
    _
  $region29: #{transformer_forward.46} parent=0 // pred_fallthru
    _
  // Predicated region
  $region30: #{transformer_forward.46} parent=0 // pred_check
    _
  $region31: #{transformer_forward.46} parent=0 // pred_check_branch
    %166 = sbr.rel (0) target = $region33
  $region32: #{transformer_forward.46} parent=0 // pred_region
    _
  $region33: #{transformer_forward.46} parent=0 // pred_fallthru
    _

// kernel: transformer_forward.48
$region0: #{transformer_forward.48}
  #allocation0 [shape = 'u32[]', space=smem, size = 0x4, offset = 0x4, fixed_abs, tag = 'smem constant byte address 0x4 - core index']
  #allocation1 [shape = 'u32[144,128]{1,0:T(1,128)}', space=vmem, size = 0x12000, scoped, tag = 'internal scratch']
  #allocation2 [shape = 'f32[16,128]{1,0:T(8,128)}', space=vmem, size = 0x2000, scoped, tag = 'scratch operand']
  %s0 = inlined_call_operand.vmem [shape: bf16[16,128], index: 0, kind: input, shape index: {}]
  %s1 = inlined_call_operand.vmem [shape: bf16[128,128], index: 1, kind: input, shape index: {}]
  %s2 = inlined_call_operand.vmem [shape: f32[1,128], index: 2, kind: input, shape index: {}]
  %s3 = inlined_call_operand.vmem [shape: bf16[16,128], index: 3, kind: output, shape index: {}]
  %s4 = sld [smem:[#allocation0]]
  $region30: #{transformer_forward.48} parent=0
    _
  %s6 = ssub.s32 1, %s4
  %s7 = scalar_select 0, %s6, %s4
  // Predicated region
  $region2: #{transformer_forward.48} parent=0 // pred_check
    _
  $region3: #{transformer_forward.48} parent=0 // pred_check_branch
    %9 = sbr.rel (0) target = $region5
  $region4: #{transformer_forward.48} parent=0 // pred_region
    _
  $region5: #{transformer_forward.48} parent=0 // pred_fallthru
    _
  // Predicated region
  $region6: #{transformer_forward.48} parent=0 // pred_check
    _
  $region7: #{transformer_forward.48} parent=0 // pred_check_branch
    %11 = sbr.rel (0) target = $region9
  $region8: #{transformer_forward.48} parent=0 // pred_region
    _
  $region9: #{transformer_forward.48} parent=0 // pred_fallthru
    _
  // Predicated region
  $region10: #{transformer_forward.48} parent=0 // pred_check
    _
  $region11: #{transformer_forward.48} parent=0 // pred_check_branch
    %13 = sbr.rel (0) target = $region13
  $region12: #{transformer_forward.48} parent=0 // pred_region
    _
  $region13: #{transformer_forward.48} parent=0 // pred_fallthru
    _
  %p15 = scmp.eq.s32.totalorder 0, 0
  // Predicated region
  $region14: #{transformer_forward.48} parent=0 // pred_check
    %p16 = pneg %p15
  $region15: #{transformer_forward.48} parent=0 // pred_check_branch
    %18 = sbr.rel (%p16) target = $region17
  $region16: #{transformer_forward.48} parent=0 // pred_region
    %19 = vst [vmem:[#allocation2] sm:$0xff] 0.0
    %20 = vst [vmem:[#allocation2 + $0x8] sm:$0xff] 0.0
  $region17: #{transformer_forward.48} parent=0 // pred_fallthru
    _
  %v21 = vld [vmem:[#allocation2] sm:$0xff]
  %v22 = vld [vmem:[#allocation2 + $0x8] sm:$0xff]
  %v23 = vld [vmem:[%s0] sm:$0xf]
  %v24 = vld [vmem:[%s0 + $0x4] sm:$0xf]
  %v25 = vld [vmem:[%s1] sm:$0xf]
  %v26 = vld [vmem:[%s1 + $0x4] sm:$0xf]
  %v27 = vld [vmem:[%s1 + $0x8] sm:$0xf]
  %v28 = vld [vmem:[%s1 + $0xc] sm:$0xf]
  %v29 = vld [vmem:[%s1 + $0x10] sm:$0xf]
  %v30 = vld [vmem:[%s1 + $0x14] sm:$0xf]
  %v31 = vld [vmem:[%s1 + $0x18] sm:$0xf]
  %v32 = vld [vmem:[%s1 + $0x1c] sm:$0xf]
  %v33 = vld [vmem:[%s1 + $0x20] sm:$0xf]
  %v34 = vld [vmem:[%s1 + $0x24] sm:$0xf]
  %v35 = vld [vmem:[%s1 + $0x28] sm:$0xf]
  %v36 = vld [vmem:[%s1 + $0x2c] sm:$0xf]
  %v37 = vld [vmem:[%s1 + $0x30] sm:$0xf]
  %v38 = vld [vmem:[%s1 + $0x34] sm:$0xf]
  %v39 = vld [vmem:[%s1 + $0x38] sm:$0xf]
  %v40 = vld [vmem:[%s1 + $0x3c] sm:$0xf]
  %v43 = vunpack.c.l.b16 %v23
  %v44 = vunpack.c.l.b16 %v24
  %v45 = vpack.c.b16 %v44, %v43
  %v63 = vunpack.c.l.b16 %v25
  %v64 = vunpack.c.l.b16 %v26
  %v65 = vunpack.c.l.b16 %v27
  %v66 = vunpack.c.l.b16 %v28
  %v67 = vunpack.c.l.b16 %v29
  %v68 = vunpack.c.l.b16 %v30
  %v69 = vunpack.c.l.b16 %v31
  %v70 = vunpack.c.l.b16 %v32
  %v71 = vunpack.c.l.b16 %v33
  %v72 = vunpack.c.l.b16 %v34
  %v73 = vunpack.c.l.b16 %v35
  %v74 = vunpack.c.l.b16 %v36
  %v75 = vunpack.c.l.b16 %v37
  %v76 = vunpack.c.l.b16 %v38
  %v77 = vunpack.c.l.b16 %v39
  %v78 = vunpack.c.l.b16 %v40
  %v79 = vpack.c.b16 %v64, %v63
  %v80 = vpack.c.b16 %v66, %v65
  %v81 = vpack.c.b16 %v68, %v67
  %v82 = vpack.c.b16 %v70, %v69
  %v83 = vpack.c.b16 %v72, %v71
  %v84 = vpack.c.b16 %v74, %v73
  %v85 = vpack.c.b16 %v76, %v75
  %v86 = vpack.c.b16 %v78, %v77
  %95 = vmatprep.subr.bf16.mxu0 0
  %96 = vmatpush1.bf16.msra.mxu0 %v79
  %97 = vmatprep.subr.bf16.mxu0 0
  %98 = vmatpush1.bf16.msra.mxu0 %v80
  %99 = vmatprep.subr.bf16.mxu0 0
  %100 = vmatpush1.bf16.msra.mxu0 %v81
  %101 = vmatprep.subr.bf16.mxu0 0
  %102 = vmatpush1.bf16.msra.mxu0 %v82
  %103 = vmatprep.subr.bf16.mxu0 0
  %104 = vmatpush1.bf16.msra.mxu0 %v83
  %105 = vmatprep.subr.bf16.mxu0 0
  %106 = vmatpush1.bf16.msra.mxu0 %v84
  %107 = vmatprep.subr.bf16.mxu0 0
  %108 = vmatpush1.bf16.msra.mxu0 %v85
  %109 = vmatprep.subr.bf16.mxu0 0
  %110 = vmatpush1.bf16.msra.mxu0 %v86
  %111 = vmatprep.subr.bf16.mxu0 0
  %112 = vmatpush1.bf16.msra.mxu0 0
  %113 = vmatprep.subr.bf16.mxu0 0
  %114 = vmatpush1.bf16.msra.mxu0 0
  %115 = vmatprep.subr.bf16.mxu0 0
  %116 = vmatpush1.bf16.msra.mxu0 0
  %117 = vmatprep.subr.bf16.mxu0 0
  %118 = vmatpush1.bf16.msra.mxu0 0
  %119 = vmatprep.subr.bf16.mxu0 0
  %120 = vmatpush1.bf16.msra.mxu0 0
  %121 = vmatprep.subr.bf16.mxu0 0
  %122 = vmatpush1.bf16.msra.mxu0 0
  %123 = vmatprep.subr.bf16.mxu0 0
  %124 = vmatpush1.bf16.msra.mxu0 0
  %125 = vmatprep.subr.bf16.mxu0 0
  %126 = vmatpush1.bf16.msra.mxu0 0
  %127 = vmatprep.mubr.bf16.mxu0 0
  %128 = vmatmul.mubr.bf16.gmra.mrb[0].mxu0 %v45
  %v129 = vpop.f32.mrb[0].mxu0
  %v130 = vadd.f32 0.0, %v129
  %v131 = vpop.f32.mrb[0].mxu0
  %v132 = vpop.f32.mrb[0].mxu0
  %v133 = vadd.f32 0.0, %v132
  %v134 = vpop.f32.mrb[0].mxu0
  %135 = vdwg.mxu0
  %v136 = vadd.f32 %v21, %v130
  %v137 = vadd.f32 %v22, %v133
  %138 = vst [vmem:[#allocation2] sm:$0xff] %v136
  %139 = vst [vmem:[#allocation2 + $0x8] sm:$0xff] %v137
  // Predicated region
  $region18: #{transformer_forward.48} parent=0 // pred_check
    %p140 = pneg %p15
  $region19: #{transformer_forward.48} parent=0 // pred_check_branch
    %142 = sbr.rel (%p140) target = $region21
  $region20: #{transformer_forward.48} parent=0 // pred_region
    %v143 = vld [vmem:[#allocation2] sm:$0xff]
    %v144 = vld [vmem:[#allocation2 + $0x8] sm:$0xff]
    %v145 = vld [vmem:[%s2] sm:$0x1]
    %v147 = vlaneseq
    %v148 = vshrl.u32 %v147, 7
    %v149 = vsub.s32 0, %v148
    %v150 = vrot.slane %v145, %v149
    %v152 = vadd.f32 %v143, %v150
    %v153 = vadd.f32 %v144, %v150
    %v154 = vmax.f32 %v152, 0.0
    %v155 = vmax.f32 %v153, 0.0
    %v156 = vpack.c.bf16 %v155, %v154
    %v158 = vunpack.c.l.b16 %v156
    %v159 = vunpack.c.h.b16 %v156
    %v160 = vpack.c.b16 %v158, %v158
    %v161 = vpack.c.b16 %v159, %v159
    %164 = vst [vmem:[%s3] sm:$0xf] %v160
    %165 = vst [vmem:[%s3 + $0x4] sm:$0xf] %v161
  $region21: #{transformer_forward.48} parent=0 // pred_fallthru
    _
  // Predicated region
  $region22: #{transformer_forward.48} parent=0 // pred_check
    _
  $region23: #{transformer_forward.48} parent=0 // pred_check_branch
    %167 = sbr.rel (0) target = $region25
  $region24: #{transformer_forward.48} parent=0 // pred_region
    _
  $region25: #{transformer_forward.48} parent=0 // pred_fallthru
    _
  // Predicated region
  $region26: #{transformer_forward.48} parent=0 // pred_check
    _
  $region27: #{transformer_forward.48} parent=0 // pred_check_branch
    %169 = sbr.rel (0) target = $region29
  $region28: #{transformer_forward.48} parent=0 // pred_region
    _
  $region29: #{transformer_forward.48} parent=0 // pred_fallthru
    _

// kernel: transformer_forward.61
$region0: #{transformer_forward.61}
  #allocation0 [shape = 'u32[]', space=smem, size = 0x4, offset = 0x4, fixed_abs, tag = 'smem constant byte address 0x4 - core index']
  #allocation1 [shape = 'u32[144,128]{1,0:T(1,128)}', space=vmem, size = 0x12000, scoped, tag = 'internal scratch']
  %s0 = inlined_call_operand.vmem [shape: bf16[2,8,32], index: 0, kind: input, shape index: {}]
  %s1 = inlined_call_operand.vmem [shape: bf16[2,8,32], index: 1, kind: input, shape index: {}]
  %s2 = inlined_call_operand.vmem [shape: bf16[2,8,32], index: 2, kind: input, shape index: {}]
  %s3 = inlined_call_operand.vmem [shape: bf16[2,8,32], index: 3, kind: output, shape index: {}]
  %s4 = sld [smem:[#allocation0]]
  $region45: #{transformer_forward.61} parent=0
    _
  %s6 = ssub.s32 1, %s4
  %s7 = scalar_select 0, %s6, %s4
  loop: start=0, step=1, limit=4
  $region2: #{transformer_forward.61} parent=0 // loop_pre_header
    _
  $region3: #{transformer_forward.61} parent=0 // loop_header
    %s9 = sphi 0, %s13
    %p10 = scmp.ge.s32.totalorder %s9, 4
    %s19 = sphi 0, %s21
    %s22 = sphi 0, %s19
    %s23 = sphi 0, %s22
    %s39 = sphi 0, %s23
    %s45 = sphi 0, %s47
    %s48 = sphi 0, %s45
    %s49 = sphi 0, %s48
    %s65 = sphi 0, %s49
    %s71 = sphi 0, %s73
    %s74 = sphi 0, %s71
    %s75 = sphi 0, %s74
    %s91 = sphi 0, %s75
    %s97 = sphi 0, %s99
    %s100 = sphi 0, %s97
    %s101 = sphi 0, %s100
    %s117 = sphi 0, %s101
  $region4: #{transformer_forward.61} parent=0 // loop_header_branch
    %12 = sbr.rel (%p10) target = $region8
  $region5: #{transformer_forward.61} parent=0 // loop_body
    %s14 = ssub.s32 %s9, 1
    %s15 = ssub.s32 %s9, 2
    %s16 = sadd.s32 %s9, 1
    %s17 = ssub.s32 %s9, %s16
    %p18 = scmp.eq.s32.totalorder %s17, 0
    %s20 = sadd.s32 %s19, 1
    %s21 = scalar_select %p18, %s19, %s20
    %p24 = pneg %p18
    %p25 = scmp.eq.s32.totalorder %s9, 1
    %p26 = por %p24, %p25
    %p27 = scmp.ne.s32.totalorder %s19, %s22
    %p28 = scmp.eq.s32.totalorder %s9, 0
    %p29 = por %p27, %p28
    %p30 = scmp.ne.s32.totalorder %s19, %s22
    %p31 = scmp.eq.s32.totalorder %s14, 1
    %p32 = por %p30, %p31
    %p33 = scmp.ne.s32.totalorder %s22, %s23
    %p34 = scmp.eq.s32.totalorder %s14, 0
    %p35 = por %p33, %p34
    %p36 = scmp.ne.s32.totalorder %s22, %s23
    %p37 = scmp.eq.s32.totalorder %s15, 1
    %p38 = por %p36, %p37
    %p40 = scmp.ne.s32.totalorder %s23, %s39
    %p41 = scmp.eq.s32.totalorder %s15, 0
    %p42 = por %p40, %p41
    %s43 = ssub.s32 %s9, %s16
    %p44 = scmp.eq.s32.totalorder %s43, 0
    %s46 = sadd.s32 %s45, 1
    %s47 = scalar_select %p44, %s45, %s46
    %p50 = pneg %p44
    %p51 = scmp.eq.s32.totalorder %s9, 1
    %p52 = por %p50, %p51
    %p53 = scmp.ne.s32.totalorder %s45, %s48
    %p54 = scmp.eq.s32.totalorder %s9, 0
    %p55 = por %p53, %p54
    %p56 = scmp.ne.s32.totalorder %s45, %s48
    %p57 = scmp.eq.s32.totalorder %s14, 1
    %p58 = por %p56, %p57
    %p59 = scmp.ne.s32.totalorder %s48, %s49
    %p60 = scmp.eq.s32.totalorder %s14, 0
    %p61 = por %p59, %p60
    %p62 = scmp.ne.s32.totalorder %s48, %s49
    %p63 = scmp.eq.s32.totalorder %s15, 1
    %p64 = por %p62, %p63
    %p66 = scmp.ne.s32.totalorder %s49, %s65
    %p67 = scmp.eq.s32.totalorder %s15, 0
    %p68 = por %p66, %p67
    %s69 = ssub.s32 %s9, %s16
    %p70 = scmp.eq.s32.totalorder %s69, 0
    %s72 = sadd.s32 %s71, 1
    %s73 = scalar_select %p70, %s71, %s72
    %p76 = pneg %p70
    %p77 = scmp.eq.s32.totalorder %s9, 1
    %p78 = por %p76, %p77
    %p79 = scmp.ne.s32.totalorder %s71, %s74
    %p80 = scmp.eq.s32.totalorder %s9, 0
    %p81 = por %p79, %p80
    %p82 = scmp.ne.s32.totalorder %s71, %s74
    %p83 = scmp.eq.s32.totalorder %s14, 1
    %p84 = por %p82, %p83
    %p85 = scmp.ne.s32.totalorder %s74, %s75
    %p86 = scmp.eq.s32.totalorder %s14, 0
    %p87 = por %p85, %p86
    %p88 = scmp.ne.s32.totalorder %s74, %s75
    %p89 = scmp.eq.s32.totalorder %s15, 1
    %p90 = por %p88, %p89
    %p92 = scmp.ne.s32.totalorder %s75, %s91
    %p93 = scmp.eq.s32.totalorder %s15, 0
    %p94 = por %p92, %p93
    %s95 = ssub.s32 %s9, %s16
    %p96 = scmp.eq.s32.totalorder %s95, 0
    %s98 = sadd.s32 %s97, 1
    %s99 = scalar_select %p96, %s97, %s98
    %p102 = pneg %p96
    %p103 = scmp.eq.s32.totalorder %s9, 1
    %p104 = por %p102, %p103
    %p105 = scmp.ne.s32.totalorder %s97, %s100
    %p106 = scmp.eq.s32.totalorder %s9, 0
    %p107 = por %p105, %p106
    %p108 = scmp.ne.s32.totalorder %s97, %s100
    %p109 = scmp.eq.s32.totalorder %s14, 1
    %p110 = por %p108, %p109
    %p111 = scmp.ne.s32.totalorder %s100, %s101
    %p112 = scmp.eq.s32.totalorder %s14, 0
    %p113 = por %p111, %p112
    %p114 = scmp.ne.s32.totalorder %s100, %s101
    %p115 = scmp.eq.s32.totalorder %s15, 1
    %p116 = por %p114, %p115
    %p118 = scmp.ne.s32.totalorder %s101, %s117
    %p119 = scmp.eq.s32.totalorder %s15, 0
    %p120 = por %p118, %p119
    %p121 = scmp.le.s32.totalorder 1, %s9
    %p122 = scmp.lt.s32.totalorder %s9, 3
    %p123 = pnand %p121, %p122
    %p124 = pneg %p123
    // Predicated region
    $region9: #{transformer_forward.61} parent=5 // pred_check
      _
    $region10: #{transformer_forward.61} parent=5 // pred_check_branch
      %126 = sbr.rel (%p123) target = $region12
    $region11: #{transformer_forward.61} parent=5 // pred_region
      %s127 = ssub.s32 %s9, 1
    $region12: #{transformer_forward.61} parent=5 // pred_fallthru
      _
    %p128 = scmp.lt.s32.totalorder %s9, 2
    // Predicated region
    $region13: #{transformer_forward.61} parent=5 // pred_check
      %p129 = pneg %p128
    $region14: #{transformer_forward.61} parent=5 // pred_check_branch
      %131 = sbr.rel (%p129) target = $region16
    $region15: #{transformer_forward.61} parent=5 // pred_region
      // Predicated region
      $region17: #{transformer_forward.61} parent=15 // pred_check
        %p132 = pneg %p29
      $region18: #{transformer_forward.61} parent=15 // pred_check_branch
        %134 = sbr.rel (%p132) target = $region20
      $region19: #{transformer_forward.61} parent=15 // pred_region
        %p135 = scmp.lt.s32.totalorder %s9, 1
        %s136 = scalar_select %p135, %s9, 1
        %s137 = smul.addr %s136, 4
        %s138 = scalar_lea.vmem %s0, %s137
      $region20: #{transformer_forward.61} parent=15 // pred_fallthru
        _
      // Predicated region
      $region21: #{transformer_forward.61} parent=15 // pred_check
        %p139 = pneg %p55
      $region22: #{transformer_forward.61} parent=15 // pred_check_branch
        %141 = sbr.rel (%p139) target = $region24
      $region23: #{transformer_forward.61} parent=15 // pred_region
        %p142 = scmp.lt.s32.totalorder %s9, 1
        %s143 = scalar_select %p142, %s9, 1
        %s144 = smul.addr %s143, 4
        %s145 = scalar_lea.vmem %s1, %s144
      $region24: #{transformer_forward.61} parent=15 // pred_fallthru
        _
      // Predicated region
      $region25: #{transformer_forward.61} parent=15 // pred_check
        %p146 = pneg %p81
      $region26: #{transformer_forward.61} parent=15 // pred_check_branch
        %148 = sbr.rel (%p146) target = $region28
      $region27: #{transformer_forward.61} parent=15 // pred_region
        %p149 = scmp.lt.s32.totalorder %s9, 1
        %s150 = scalar_select %p149, %s9, 1
        %s151 = smul.addr %s150, 4
        %s152 = scalar_lea.vmem %s2, %s151
      $region28: #{transformer_forward.61} parent=15 // pred_fallthru
        _
    $region16: #{transformer_forward.61} parent=5 // pred_fallthru
      _
    %p153 = scmp.le.s32.totalorder 1, %s9
    %p154 = scmp.lt.s32.totalorder %s9, 3
    %p155 = pnand %p153, %p154
    %p156 = pneg %p155
    // Predicated region
    $region29: #{transformer_forward.61} parent=5 // pred_check
      _
    $region30: #{transformer_forward.61} parent=5 // pred_check_branch
      %158 = sbr.rel (%p155) target = $region32
    $region31: #{transformer_forward.61} parent=5 // pred_region
      %s159 = ssub.s32 %s9, 1
      %p160 = scmp.lt.s32.totalorder %s14, 1
      %s161 = scalar_select %p160, %s14, 1
      %s162 = smul.addr %s161, 4
      %s163 = scalar_lea.vmem %s0, %s162
      %p164 = pneg %p35
      %p165 = pneg %p32
      %p166 = scmp.lt.s32.totalorder %s14, 1
      %s167 = scalar_select %p166, %s14, 1
      %s168 = smul.addr %s167, 4
      %s169 = scalar_lea.vmem %s1, %s168
      %p170 = pneg %p61
      %p171 = pneg %p58
      %p172 = scmp.lt.s32.totalorder %s14, 1
      %s173 = scalar_select %p172, %s14, 1
      %s174 = smul.addr %s173, 4
      %s175 = scalar_lea.vmem %s2, %s174
      %p176 = pneg %p87
      %p177 = pneg %p84
      %p178 = pneg %p113
      %p179 = pneg %p110
      %p180 = scmp.lt.s32.totalorder %s14, 1
      %s181 = scalar_select %p180, %s14, 1
      %s182 = smul.addr %s181, 4
      %s183 = scalar_lea.vmem %s3, %s182
      %p184 = scmp.lt.s32.totalorder %s14, 1
      %s185 = scalar_select %p184, %s14, 1
      %s186 = smul.addr %s185, 4
      %s187 = scalar_lea.vmem %s0, %s186
      %p188 = scmp.lt.s32.totalorder %s14, 1
      %s189 = scalar_select %p188, %s14, 1
      %s190 = smul.addr %s189, 4
      %s191 = scalar_lea.vmem %s1, %s190
      %p192 = scmp.lt.s32.totalorder %s14, 1
      %s193 = scalar_select %p192, %s14, 1
      %s194 = smul.addr %s193, 4
      %s195 = scalar_lea.vmem %s2, %s194
      %p196 = scmp.lt.s32.totalorder %s14, 1
      %s197 = scalar_select %p196, %s14, 1
      %s198 = smul.addr %s197, 4
      %s199 = scalar_lea.vmem %s3, %s198
      %v201 = vld [vmem:[%s187] sm:$0xf]
      %v202 = vld [vmem:[%s191] sm:$0xf]
      %v203 = vld [vmem:[%s195] sm:$0xf]
      %v204 = vlaneseq
      %v205 = vshrl.u32 %v204, 7
      %v206 = vlaneseq
      %v207 = vand.u32 %v206, 127
      %vm208 = vcmp.gt.s32.totalorder %v207, %v205
      %v209 = vsel %vm208, -1e+30, 0.0
      %vm210 = vcmask 64512
      %v212 = vsel %vm210, %v201, 0
      %v215 = vsel %vm210, %v202, 0
      %217 = vmatprep.subr.bf16.mxu0 0
      %218 = vmatpush1.bf16.xpose.msra.mxu0 %v215
      %219 = vmatprep.subr.bf16.mxu0 0
      %220 = vmatpush1.bf16.xpose.msra.mxu0 0
      %221 = vmatprep.subr.bf16.mxu0 0
      %222 = vmatpush1.bf16.xpose.msra.mxu0 0
      %223 = vmatprep.subr.bf16.mxu0 0
      %224 = vmatpush1.bf16.xpose.msra.mxu0 0
      %225 = vmatprep.subr.bf16.mxu0 0
      %226 = vmatpush1.bf16.xpose.msra.mxu0 0
      %227 = vmatprep.subr.bf16.mxu0 0
      %228 = vmatpush1.bf16.xpose.msra.mxu0 0
      %229 = vmatprep.subr.bf16.mxu0 0
      %230 = vmatpush1.bf16.xpose.msra.mxu0 0
      %231 = vmatprep.subr.bf16.mxu0 0
      %232 = vmatpush1.bf16.xpose.msra.mxu0 0
      %233 = vmatprep.subr.bf16.mxu0 0
      %234 = vmatpush1.bf16.xpose.msra.mxu0 0
      %235 = vmatprep.subr.bf16.mxu0 0
      %236 = vmatpush1.bf16.xpose.msra.mxu0 0
      %237 = vmatprep.subr.bf16.mxu0 0
      %238 = vmatpush1.bf16.xpose.msra.mxu0 0
      %239 = vmatprep.subr.bf16.mxu0 0
      %240 = vmatpush1.bf16.xpose.msra.mxu0 0
      %241 = vmatprep.subr.bf16.mxu0 0
      %242 = vmatpush1.bf16.xpose.msra.mxu0 0
      %243 = vmatprep.subr.bf16.mxu0 0
      %244 = vmatpush1.bf16.xpose.msra.mxu0 0
      %245 = vmatprep.subr.bf16.mxu0 0
      %246 = vmatpush1.bf16.xpose.msra.mxu0 0
      %247 = vmatprep.subr.bf16.mxu0 0
      %248 = vmatpush1.bf16.xpose.msra.mxu0 0
      %249 = vmatprep.mubr.bf16.mxu0 0
      %250 = vmatmul.mubr.bf16.gmra.mrb[0].mxu0 %v212
      %v251 = vpop.f32.mrb[0].mxu0
      %v252 = vadd.f32 0.0, %v251
      %v253 = vpop.f32.mrb[0].mxu0
      %v254 = vpop.f32.mrb[0].mxu0
      %v255 = vpop.f32.mrb[0].mxu0
      %256 = vdwg.mxu0
      %v257 = vmul.f32 %v252, 0.35355338
      %v258 = vadd.f32 %v257, %v209
      %v259 = vsel %vm210, %v258, -inf
      %260 = vmax.xlane.f32.xlu0 %v259
      %v261 = vpop.xlane.xlu0 %260
      %v262 = vsub.f32 %v258, %v261
      %v263 = vmul.f32 %v262, 1.442695
      %v264 = vpow.pop %v263
      %v265 = vsel %vm210, %v264, 0.0
      %266 = vadd.xlane.f32.xlu0 %v265
      %v267 = vpop.xlane.xlu0 %266
      %v268 = vrcp.pop %v267
      %v269 = vmul.f32 %v264, %v268
      %v270 = vpack.c.bf16 %v269, %v269
      %v272 = vsel %vm210, %v270, 0
      %vm274 = vcmask 1043456
      %v276 = vsel %vm274, %v203, 0
      %278 = vmatprep.subr.bf16.mxu0 0
      %279 = vmatpush1.bf16.msra.mxu0 %v276
      %280 = vmatprep.subr.bf16.mxu0 0
      %281 = vmatpush1.bf16.msra.mxu0 0
      %282 = vmatprep.subr.bf16.mxu0 0
      %283 = vmatpush1.bf16.msra.mxu0 0
      %284 = vmatprep.subr.bf16.mxu0 0
      %285 = vmatpush1.bf16.msra.mxu0 0
      %286 = vmatprep.subr.bf16.mxu0 0
      %287 = vmatpush1.bf16.msra.mxu0 0
      %288 = vmatprep.subr.bf16.mxu0 0
      %289 = vmatpush1.bf16.msra.mxu0 0
      %290 = vmatprep.subr.bf16.mxu0 0
      %291 = vmatpush1.bf16.msra.mxu0 0
      %292 = vmatprep.subr.bf16.mxu0 0
      %293 = vmatpush1.bf16.msra.mxu0 0
      %294 = vmatprep.subr.bf16.mxu0 0
      %295 = vmatpush1.bf16.msra.mxu0 0
      %296 = vmatprep.subr.bf16.mxu0 0
      %297 = vmatpush1.bf16.msra.mxu0 0
      %298 = vmatprep.subr.bf16.mxu0 0
      %299 = vmatpush1.bf16.msra.mxu0 0
      %300 = vmatprep.subr.bf16.mxu0 0
      %301 = vmatpush1.bf16.msra.mxu0 0
      %302 = vmatprep.subr.bf16.mxu0 0
      %303 = vmatpush1.bf16.msra.mxu0 0
      %304 = vmatprep.subr.bf16.mxu0 0
      %305 = vmatpush1.bf16.msra.mxu0 0
      %306 = vmatprep.subr.bf16.mxu0 0
      %307 = vmatpush1.bf16.msra.mxu0 0
      %308 = vmatprep.subr.bf16.mxu0 0
      %309 = vmatpush1.bf16.msra.mxu0 0
      %310 = vmatprep.mubr.bf16.mxu0 0
      %311 = vmatmul.mubr.bf16.gmra.mrb[0].mxu0 %v272
      %v312 = vpop.f32.mrb[0].mxu0
      %v313 = vadd.f32 0.0, %v312
      %v314 = vpop.f32.mrb[0].mxu0
      %v315 = vpop.f32.mrb[0].mxu0
      %v316 = vpop.f32.mrb[0].mxu0
      %317 = vdwg.mxu0
      %v319 = vunpack.c.l.b16 %v201
      %v320 = vpack.c.b16 %v319, %v319
      %321 = vrot.lane.b32.xlu0 %v320, 120
      %v322 = vpop.permute.xlu0 %321
      %v324 = vunpack.c.l.b16 %v202
      %v325 = vpack.c.b16 %v324, %v324
      %326 = vrot.lane.b32.xlu0 %v325, 120
      %v327 = vpop.permute.xlu0 %326
      %v329 = vsel %vm210, %v322, 0
      %v332 = vsel %vm210, %v327, 0
      %334 = vmatprep.subr.bf16.mxu0 0
      %335 = vmatpush1.bf16.xpose.msra.mxu0 %v332
      %336 = vmatprep.subr.bf16.mxu0 0
      %337 = vmatpush1.bf16.xpose.msra.mxu0 0
      %338 = vmatprep.subr.bf16.mxu0 0
      %339 = vmatpush1.bf16.xpose.msra.mxu0 0
      %340 = vmatprep.subr.bf16.mxu0 0
      %341 = vmatpush1.bf16.xpose.msra.mxu0 0
      %342 = vmatprep.subr.bf16.mxu0 0
      %343 = vmatpush1.bf16.xpose.msra.mxu0 0
      %344 = vmatprep.subr.bf16.mxu0 0
      %345 = vmatpush1.bf16.xpose.msra.mxu0 0
      %346 = vmatprep.subr.bf16.mxu0 0
      %347 = vmatpush1.bf16.xpose.msra.mxu0 0
      %348 = vmatprep.subr.bf16.mxu0 0
      %349 = vmatpush1.bf16.xpose.msra.mxu0 0
      %350 = vmatprep.subr.bf16.mxu0 0
      %351 = vmatpush1.bf16.xpose.msra.mxu0 0
      %352 = vmatprep.subr.bf16.mxu0 0
      %353 = vmatpush1.bf16.xpose.msra.mxu0 0
      %354 = vmatprep.subr.bf16.mxu0 0
      %355 = vmatpush1.bf16.xpose.msra.mxu0 0
      %356 = vmatprep.subr.bf16.mxu0 0
      %357 = vmatpush1.bf16.xpose.msra.mxu0 0
      %358 = vmatprep.subr.bf16.mxu0 0
      %359 = vmatpush1.bf16.xpose.msra.mxu0 0
      %360 = vmatprep.subr.bf16.mxu0 0
      %361 = vmatpush1.bf16.xpose.msra.mxu0 0
      %362 = vmatprep.subr.bf16.mxu0 0
      %363 = vmatpush1.bf16.xpose.msra.mxu0 0
      %364 = vmatprep.subr.bf16.mxu0 0
      %365 = vmatpush1.bf16.xpose.msra.mxu0 0
      %366 = vmatprep.mubr.bf16.mxu0 0
      %367 = vmatmul.mubr.bf16.gmra.mrb[0].mxu0 %v329
      %v368 = vpop.f32.mrb[0].mxu0
      %v369 = vadd.f32 0.0, %v368
      %v370 = vpop.f32.mrb[0].mxu0
      %v371 = vpop.f32.mrb[0].mxu0
      %v372 = vpop.f32.mrb[0].mxu0
      %373 = vdwg.mxu0
      %v374 = vmul.f32 %v369, 0.35355338
      %v375 = vadd.f32 %v374, %v209
      %v376 = vsel %vm210, %v375, -inf
      %377 = vmax.xlane.f32.xlu0 %v376
      %v378 = vpop.xlane.xlu0 %377
      %v379 = vsub.f32 %v375, %v378
      %v380 = vmul.f32 %v379, 1.442695
      %v381 = vpow.pop %v380
      %v382 = vsel %vm210, %v381, 0.0
      %383 = vadd.xlane.f32.xlu0 %v382
      %v384 = vpop.xlane.xlu0 %383
      %v385 = vrcp.pop %v384
      %v386 = vmul.f32 %v381, %v385
      %v387 = vpack.c.bf16 %v386, %v386
      %v389 = vunpack.c.l.b16 %v203
      %v390 = vpack.c.b16 %v389, %v389
      %391 = vrot.lane.b32.xlu0 %v390, 120
      %v392 = vpop.permute.xlu0 %391
      %v394 = vsel %vm210, %v387, 0
      %v397 = vsel %vm274, %v392, 0
      %399 = vmatprep.subr.bf16.mxu0 0
      %400 = vmatpush1.bf16.msra.mxu0 %v397
      %401 = vmatprep.subr.bf16.mxu0 0
      %402 = vmatpush1.bf16.msra.mxu0 0
      %403 = vmatprep.subr.bf16.mxu0 0
      %404 = vmatpush1.bf16.msra.mxu0 0
      %405 = vmatprep.subr.bf16.mxu0 0
      %406 = vmatpush1.bf16.msra.mxu0 0
      %407 = vmatprep.subr.bf16.mxu0 0
      %408 = vmatpush1.bf16.msra.mxu0 0
      %409 = vmatprep.subr.bf16.mxu0 0
      %410 = vmatpush1.bf16.msra.mxu0 0
      %411 = vmatprep.subr.bf16.mxu0 0
      %412 = vmatpush1.bf16.msra.mxu0 0
      %413 = vmatprep.subr.bf16.mxu0 0
      %414 = vmatpush1.bf16.msra.mxu0 0
      %415 = vmatprep.subr.bf16.mxu0 0
      %416 = vmatpush1.bf16.msra.mxu0 0
      %417 = vmatprep.subr.bf16.mxu0 0
      %418 = vmatpush1.bf16.msra.mxu0 0
      %419 = vmatprep.subr.bf16.mxu0 0
      %420 = vmatpush1.bf16.msra.mxu0 0
      %421 = vmatprep.subr.bf16.mxu0 0
      %422 = vmatpush1.bf16.msra.mxu0 0
      %423 = vmatprep.subr.bf16.mxu0 0
      %424 = vmatpush1.bf16.msra.mxu0 0
      %425 = vmatprep.subr.bf16.mxu0 0
      %426 = vmatpush1.bf16.msra.mxu0 0
      %427 = vmatprep.subr.bf16.mxu0 0
      %428 = vmatpush1.bf16.msra.mxu0 0
      %429 = vmatprep.subr.bf16.mxu0 0
      %430 = vmatpush1.bf16.msra.mxu0 0
      %431 = vmatprep.mubr.bf16.mxu0 0
      %432 = vmatmul.mubr.bf16.gmra.mrb[0].mxu0 %v394
      %v433 = vpop.f32.mrb[0].mxu0
      %v434 = vadd.f32 0.0, %v433
      %v435 = vpop.f32.mrb[0].mxu0
      %v436 = vpop.f32.mrb[0].mxu0
      %v437 = vpop.f32.mrb[0].mxu0
      %438 = vdwg.mxu0
      %439 = vrot.lane.b32.xlu0 %v320, 112
      %v440 = vpop.permute.xlu0 %439
      %441 = vrot.lane.b32.xlu0 %v325, 112
      %v442 = vpop.permute.xlu0 %441
      %v444 = vsel %vm210, %v440, 0
      %v447 = vsel %vm210, %v442, 0
      %449 = vmatprep.subr.bf16.mxu0 0
      %450 = vmatpush1.bf16.xpose.msra.mxu0 %v447
      %451 = vmatprep.subr.bf16.mxu0 0
      %452 = vmatpush1.bf16.xpose.msra.mxu0 0
      %453 = vmatprep.subr.bf16.mxu0 0
      %454 = vmatpush1.bf16.xpose.msra.mxu0 0
      %455 = vmatprep.subr.bf16.mxu0 0
      %456 = vmatpush1.bf16.xpose.msra.mxu0 0
      %457 = vmatprep.subr.bf16.mxu0 0
      %458 = vmatpush1.bf16.xpose.msra.mxu0 0
      %459 = vmatprep.subr.bf16.mxu0 0
      %460 = vmatpush1.bf16.xpose.msra.mxu0 0
      %461 = vmatprep.subr.bf16.mxu0 0
      %462 = vmatpush1.bf16.xpose.msra.mxu0 0
      %463 = vmatprep.subr.bf16.mxu0 0
      %464 = vmatpush1.bf16.xpose.msra.mxu0 0
      %465 = vmatprep.subr.bf16.mxu0 0
      %466 = vmatpush1.bf16.xpose.msra.mxu0 0
      %467 = vmatprep.subr.bf16.mxu0 0
      %468 = vmatpush1.bf16.xpose.msra.mxu0 0
      %469 = vmatprep.subr.bf16.mxu0 0
      %470 = vmatpush1.bf16.xpose.msra.mxu0 0
      %471 = vmatprep.subr.bf16.mxu0 0
      %472 = vmatpush1.bf16.xpose.msra.mxu0 0
      %473 = vmatprep.subr.bf16.mxu0 0
      %474 = vmatpush1.bf16.xpose.msra.mxu0 0
      %475 = vmatprep.subr.bf16.mxu0 0
      %476 = vmatpush1.bf16.xpose.msra.mxu0 0
      %477 = vmatprep.subr.bf16.mxu0 0
      %478 = vmatpush1.bf16.xpose.msra.mxu0 0
      %479 = vmatprep.subr.bf16.mxu0 0
      %480 = vmatpush1.bf16.xpose.msra.mxu0 0
      %481 = vmatprep.mubr.bf16.mxu0 0
      %482 = vmatmul.mubr.bf16.gmra.mrb[0].mxu0 %v444
      %v483 = vpop.f32.mrb[0].mxu0
      %v484 = vadd.f32 0.0, %v483
      %v485 = vpop.f32.mrb[0].mxu0
      %v486 = vpop.f32.mrb[0].mxu0
      %v487 = vpop.f32.mrb[0].mxu0
      %488 = vdwg.mxu0
      %v489 = vmul.f32 %v484, 0.35355338
      %v490 = vadd.f32 %v489, %v209
      %v491 = vsel %vm210, %v490, -inf
      %492 = vmax.xlane.f32.xlu0 %v491
      %v493 = vpop.xlane.xlu0 %492
      %v494 = vsub.f32 %v490, %v493
      %v495 = vmul.f32 %v494, 1.442695
      %v496 = vpow.pop %v495
      %v497 = vsel %vm210, %v496, 0.0
      %498 = vadd.xlane.f32.xlu0 %v497
      %v499 = vpop.xlane.xlu0 %498
      %v500 = vrcp.pop %v499
      %v501 = vmul.f32 %v496, %v500
      %v502 = vpack.c.bf16 %v501, %v501
      %503 = vrot.lane.b32.xlu0 %v390, 112
      %v504 = vpop.permute.xlu0 %503
      %v506 = vsel %vm210, %v502, 0
      %v509 = vsel %vm274, %v504, 0
      %511 = vmatprep.subr.bf16.mxu0 0
      %512 = vmatpush1.bf16.msra.mxu0 %v509
      %513 = vmatprep.subr.bf16.mxu0 0
      %514 = vmatpush1.bf16.msra.mxu0 0
      %515 = vmatprep.subr.bf16.mxu0 0
      %516 = vmatpush1.bf16.msra.mxu0 0
      %517 = vmatprep.subr.bf16.mxu0 0
      %518 = vmatpush1.bf16.msra.mxu0 0
      %519 = vmatprep.subr.bf16.mxu0 0
      %520 = vmatpush1.bf16.msra.mxu0 0
      %521 = vmatprep.subr.bf16.mxu0 0
      %522 = vmatpush1.bf16.msra.mxu0 0
      %523 = vmatprep.subr.bf16.mxu0 0
      %524 = vmatpush1.bf16.msra.mxu0 0
      %525 = vmatprep.subr.bf16.mxu0 0
      %526 = vmatpush1.bf16.msra.mxu0 0
      %527 = vmatprep.subr.bf16.mxu0 0
      %528 = vmatpush1.bf16.msra.mxu0 0
      %529 = vmatprep.subr.bf16.mxu0 0
      %530 = vmatpush1.bf16.msra.mxu0 0
      %531 = vmatprep.subr.bf16.mxu0 0
      %532 = vmatpush1.bf16.msra.mxu0 0
      %533 = vmatprep.subr.bf16.mxu0 0
      %534 = vmatpush1.bf16.msra.mxu0 0
      %535 = vmatprep.subr.bf16.mxu0 0
      %536 = vmatpush1.bf16.msra.mxu0 0
      %537 = vmatprep.subr.bf16.mxu0 0
      %538 = vmatpush1.bf16.msra.mxu0 0
      %539 = vmatprep.subr.bf16.mxu0 0
      %540 = vmatpush1.bf16.msra.mxu0 0
      %541 = vmatprep.subr.bf16.mxu0 0
      %542 = vmatpush1.bf16.msra.mxu0 0
      %543 = vmatprep.mubr.bf16.mxu0 0
      %544 = vmatmul.mubr.bf16.gmra.mrb[0].mxu0 %v506
      %v545 = vpop.f32.mrb[0].mxu0
      %v546 = vadd.f32 0.0, %v545
      %v547 = vpop.f32.mrb[0].mxu0
      %v548 = vpop.f32.mrb[0].mxu0
      %v549 = vpop.f32.mrb[0].mxu0
      %550 = vdwg.mxu0
      %551 = vrot.lane.b32.xlu0 %v320, 104
      %v552 = vpop.permute.xlu0 %551
      %553 = vrot.lane.b32.xlu0 %v325, 104
      %v554 = vpop.permute.xlu0 %553
      %v556 = vsel %vm210, %v552, 0
      %v559 = vsel %vm210, %v554, 0
      %561 = vmatprep.subr.bf16.mxu0 0
      %562 = vmatpush1.bf16.xpose.msra.mxu0 %v559
      %563 = vmatprep.subr.bf16.mxu0 0
      %564 = vmatpush1.bf16.xpose.msra.mxu0 0
      %565 = vmatprep.subr.bf16.mxu0 0
      %566 = vmatpush1.bf16.xpose.msra.mxu0 0
      %567 = vmatprep.subr.bf16.mxu0 0
      %568 = vmatpush1.bf16.xpose.msra.mxu0 0
      %569 = vmatprep.subr.bf16.mxu0 0
      %570 = vmatpush1.bf16.xpose.msra.mxu0 0
      %571 = vmatprep.subr.bf16.mxu0 0
      %572 = vmatpush1.bf16.xpose.msra.mxu0 0
      %573 = vmatprep.subr.bf16.mxu0 0
      %574 = vmatpush1.bf16.xpose.msra.mxu0 0
      %575 = vmatprep.subr.bf16.mxu0 0
      %576 = vmatpush1.bf16.xpose.msra.mxu0 0
      %577 = vmatprep.subr.bf16.mxu0 0
      %578 = vmatpush1.bf16.xpose.msra.mxu0 0
      %579 = vmatprep.subr.bf16.mxu0 0
      %580 = vmatpush1.bf16.xpose.msra.mxu0 0
      %581 = vmatprep.subr.bf16.mxu0 0
      %582 = vmatpush1.bf16.xpose.msra.mxu0 0
      %583 = vmatprep.subr.bf16.mxu0 0
      %584 = vmatpush1.bf16.xpose.msra.mxu0 0
      %585 = vmatprep.subr.bf16.mxu0 0
      %586 = vmatpush1.bf16.xpose.msra.mxu0 0
      %587 = vmatprep.subr.bf16.mxu0 0
      %588 = vmatpush1.bf16.xpose.msra.mxu0 0
      %589 = vmatprep.subr.bf16.mxu0 0
      %590 = vmatpush1.bf16.xpose.msra.mxu0 0
      %591 = vmatprep.subr.bf16.mxu0 0
      %592 = vmatpush1.bf16.xpose.msra.mxu0 0
      %593 = vmatprep.mubr.bf16.mxu0 0
      %594 = vmatmul.mubr.bf16.gmra.mrb[0].mxu0 %v556
      %v595 = vpop.f32.mrb[0].mxu0
      %v596 = vadd.f32 0.0, %v595
      %v597 = vpop.f32.mrb[0].mxu0
      %v598 = vpop.f32.mrb[0].mxu0
      %v599 = vpop.f32.mrb[0].mxu0
      %600 = vdwg.mxu0
      %v601 = vmul.f32 %v596, 0.35355338
      %v602 = vadd.f32 %v601, %v209
      %v603 = vsel %vm210, %v602, -inf
      %604 = vmax.xlane.f32.xlu0 %v603
      %v605 = vpop.xlane.xlu0 %604
      %v606 = vsub.f32 %v602, %v605
      %v607 = vmul.f32 %v606, 1.442695
      %v608 = vpow.pop %v607
      %v609 = vsel %vm210, %v608, 0.0
      %610 = vadd.xlane.f32.xlu0 %v609
      %v611 = vpop.xlane.xlu0 %610
      %v612 = vrcp.pop %v611
      %v613 = vmul.f32 %v608, %v612
      %v614 = vpack.c.bf16 %v613, %v613
      %615 = vrot.lane.b32.xlu0 %v390, 104
      %v616 = vpop.permute.xlu0 %615
      %v618 = vsel %vm210, %v614, 0
      %v621 = vsel %vm274, %v616, 0
      %623 = vmatprep.subr.bf16.mxu0 0
      %624 = vmatpush1.bf16.msra.mxu0 %v621
      %625 = vmatprep.subr.bf16.mxu0 0
      %626 = vmatpush1.bf16.msra.mxu0 0
      %627 = vmatprep.subr.bf16.mxu0 0
      %628 = vmatpush1.bf16.msra.mxu0 0
      %629 = vmatprep.subr.bf16.mxu0 0
      %630 = vmatpush1.bf16.msra.mxu0 0
      %631 = vmatprep.subr.bf16.mxu0 0
      %632 = vmatpush1.bf16.msra.mxu0 0
      %633 = vmatprep.subr.bf16.mxu0 0
      %634 = vmatpush1.bf16.msra.mxu0 0
      %635 = vmatprep.subr.bf16.mxu0 0
      %636 = vmatpush1.bf16.msra.mxu0 0
      %637 = vmatprep.subr.bf16.mxu0 0
      %638 = vmatpush1.bf16.msra.mxu0 0
      %639 = vmatprep.subr.bf16.mxu0 0
      %640 = vmatpush1.bf16.msra.mxu0 0
      %641 = vmatprep.subr.bf16.mxu0 0
      %642 = vmatpush1.bf16.msra.mxu0 0
      %643 = vmatprep.subr.bf16.mxu0 0
      %644 = vmatpush1.bf16.msra.mxu0 0
      %645 = vmatprep.subr.bf16.mxu0 0
      %646 = vmatpush1.bf16.msra.mxu0 0
      %647 = vmatprep.subr.bf16.mxu0 0
      %648 = vmatpush1.bf16.msra.mxu0 0
      %649 = vmatprep.subr.bf16.mxu0 0
      %650 = vmatpush1.bf16.msra.mxu0 0
      %651 = vmatprep.subr.bf16.mxu0 0
      %652 = vmatpush1.bf16.msra.mxu0 0
      %653 = vmatprep.subr.bf16.mxu0 0
      %654 = vmatpush1.bf16.msra.mxu0 0
      %655 = vmatprep.mubr.bf16.mxu0 0
      %656 = vmatmul.mubr.bf16.gmra.mrb[0].mxu0 %v618
      %v657 = vpop.f32.mrb[0].mxu0
      %v658 = vadd.f32 0.0, %v657
      %v659 = vpop.f32.mrb[0].mxu0
      %v660 = vpop.f32.mrb[0].mxu0
      %v661 = vpop.f32.mrb[0].mxu0
      %662 = vdwg.mxu0
      %664 = vrot.lane.b32.xlu0 %v434, 8
      %v665 = vpop.permute.xlu0 %664
      %668 = vrot.lane.b32.xlu0 %v546, 16
      %v669 = vpop.permute.xlu0 %668
      %672 = vrot.lane.b32.xlu0 %v658, 24
      %v673 = vpop.permute.xlu0 %672
      %v675 = vsel %vm210, %v313, %v665
      %vm676 = vcmask 130048
      %v677 = vsel %vm676, %v675, %v669
      %vm678 = vcmask 195584
      %v679 = vsel %vm678, %v677, %v673
      %v680 = vpack.c.bf16 %v679, %v679
      %vm681 = vcmask 257024
      %682 = vst.msk [vmem:[%s199] sm:$0xf] %vm681, %v680
      %p683 = scmp.lt.s32.totalorder %s14, 1
      %s684 = scalar_select %p683, %s14, 1
      %s685 = smul.addr %s684, 4
      %s686 = scalar_lea.vmem %s3, %s685
      // Predicated region
      $region33: #{transformer_forward.61} parent=31 // pred_check
        %p687 = pneg %p110
      $region34: #{transformer_forward.61} parent=31 // pred_check_branch
        %689 = sbr.rel (%p687) target = $region36
      $region35: #{transformer_forward.61} parent=31 // pred_region
        _
      $region36: #{transformer_forward.61} parent=31 // pred_fallthru
        _
    $region32: #{transformer_forward.61} parent=5 // pred_fallthru
      _
    %p690 = scmp.le.s32.totalorder 2, %s9
    // Predicated region
    $region37: #{transformer_forward.61} parent=5 // pred_check
      %p691 = pneg %p690
    $region38: #{transformer_forward.61} parent=5 // pred_check_branch
      %693 = sbr.rel (%p691) target = $region40
    $region39: #{transformer_forward.61} parent=5 // pred_region
      %s694 = ssub.s32 %s9, 2
      // Predicated region
      $region41: #{transformer_forward.61} parent=39 // pred_check
        %p695 = pneg %p116
      $region42: #{transformer_forward.61} parent=39 // pred_check_branch
        %697 = sbr.rel (%p695) target = $region44
      $region43: #{transformer_forward.61} parent=39 // pred_region
        %p698 = scmp.lt.s32.totalorder %s15, 1
        %s699 = scalar_select %p698, %s15, 1
        %s700 = smul.addr %s699, 4
        %s701 = scalar_lea.vmem %s3, %s700
      $region44: #{transformer_forward.61} parent=39 // pred_fallthru
        _
    $region40: #{transformer_forward.61} parent=5 // pred_fallthru
      _
  $region6: #{transformer_forward.61} parent=0 // loop_footer
    %s13 = sadd.s32 1, %s9
  $region7: #{transformer_forward.61} parent=0 // loop_footer_branch
    %8 = sbr.rel target = $region3
  $region8: #{transformer_forward.61} parent=0 // loop_exit
    _

// kernel: transformer_forward.85
$region0: #{transformer_forward.85}
  #allocation0 [shape = 'u32[]', space=smem, size = 0x4, offset = 0x4, fixed_abs, tag = 'smem constant byte address 0x4 - core index']
  #allocation1 [shape = 'u32[144,128]{1,0:T(1,128)}', space=vmem, size = 0x12000, scoped, tag = 'internal scratch']
  %s0 = inlined_call_operand.vmem [shape: f32[16,128], index: 0, kind: input, shape index: {}]
  %s1 = inlined_call_operand.vmem [shape: f32[16,128], index: 1, kind: input, shape index: {}]
  %s2 = inlined_call_operand.vmem [shape: f32[16,1], index: 2, kind: input, shape index: {}]
  %s3 = inlined_call_operand.vmem [shape: f32[16,1], index: 3, kind: input, shape index: {}]
  %s4 = inlined_call_operand.vmem [shape: f32[16,1], index: 4, kind: input, shape index: {}]
  %s5 = inlined_call_operand.hbm [shape: f32[1,1], index: 5, kind: output, shape index: {0}]
  %s6 = inlined_call_operand.hbm [shape: f32[1,1], index: 6, kind: output, shape index: {1}]
  %7 = xla_tuple %s5, %s6
  %s8 = sld [smem:[#allocation0]]
  $region42: #{transformer_forward.85} parent=0
    _
  %s10 = ssub.s32 1, %s8
  %s11 = scalar_select 0, %s10, %s8
  $region1: #{transformer_forward.85} parent=0
    #allocation2 [shape = 'u8[512]{0}', space=vmem, size = 0x400, scoped, tag = 'output window, operand 0, single buffered']
    #allocation3 [shape = 's32[1]{0}', space=sflag, size = 0x4, scoped, tag = 'scoped memory for transformer_forward.85']
    #allocation4 [shape = 'u8[512]{0}', space=vmem, size = 0x400, scoped, tag = 'output window, operand 1, single buffered']
    #allocation5 [shape = 's32[1]{0}', space=sflag, size = 0x4, scoped, tag = 'scoped memory for transformer_forward.85']
    %12 = vsyncpa [#allocation3], 0
    %13 = vsyncpa [#allocation5], 0
    // Predicated region
    $region2: #{transformer_forward.85} parent=1 // pred_check
      _
    $region3: #{transformer_forward.85} parent=1 // pred_check_branch
      %15 = sbr.rel (0) target = $region5
    $region4: #{transformer_forward.85} parent=1 // pred_region
      _
    $region5: #{transformer_forward.85} parent=1 // pred_fallthru
      _
    // Predicated region
    $region6: #{transformer_forward.85} parent=1 // pred_check
      _
    $region7: #{transformer_forward.85} parent=1 // pred_check_branch
      %17 = sbr.rel (0) target = $region9
    $region8: #{transformer_forward.85} parent=1 // pred_region
      _
    $region9: #{transformer_forward.85} parent=1 // pred_fallthru
      _
    // Predicated region
    $region10: #{transformer_forward.85} parent=1 // pred_check
      _
    $region11: #{transformer_forward.85} parent=1 // pred_check_branch
      %19 = sbr.rel (0) target = $region13
    $region12: #{transformer_forward.85} parent=1 // pred_region
      _
    $region13: #{transformer_forward.85} parent=1 // pred_fallthru
      _
    // Predicated region
    $region14: #{transformer_forward.85} parent=1 // pred_check
      _
    $region15: #{transformer_forward.85} parent=1 // pred_check_branch
      %21 = sbr.rel (0) target = $region17
    $region16: #{transformer_forward.85} parent=1 // pred_region
      _
    $region17: #{transformer_forward.85} parent=1 // pred_fallthru
      _
    // Predicated region
    $region18: #{transformer_forward.85} parent=1 // pred_check
      _
    $region19: #{transformer_forward.85} parent=1 // pred_check_branch
      %23 = sbr.rel (0) target = $region21
    $region20: #{transformer_forward.85} parent=1 // pred_region
      _
    $region21: #{transformer_forward.85} parent=1 // pred_fallthru
      _
    %p24 = scmp.eq.s32.totalorder 0, 0
    // Predicated region
    $region22: #{transformer_forward.85} parent=1 // pred_check
      %p25 = pneg %p24
    $region23: #{transformer_forward.85} parent=1 // pred_check_branch
      %27 = sbr.rel (%p25) target = $region25
    $region24: #{transformer_forward.85} parent=1 // pred_region
      %vm28 = vcmask 0
      %29 = vst.msk [vmem:[#allocation2] sm:$0x1] %vm28, 0.0
      %30 = vst.msk [vmem:[#allocation4] sm:$0x1] %vm28, 0.0
    $region25: #{transformer_forward.85} parent=1 // pred_fallthru
      _
    %v31 = vld [vmem:[%s0] sm:$0xff]
    %v32 = vld [vmem:[%s0 + $0x8] sm:$0xff]
    %v33 = vld [vmem:[%s1] sm:$0xff]
    %v34 = vld [vmem:[%s1 + $0x8] sm:$0xff]
    %v35 = vsub.f32 %v31, %v33
    %v36 = vsub.f32 %v32, %v34
    %v37 = vmul.f32 %v35, %v35
    %v38 = vmul.f32 %v36, %v36
    %39 = vadd.xlane.f32.xlu0 %v37
    %v40 = vpop.xlane.xlu0 %39
    %41 = vadd.xlane.f32.xlu0 %v38
    %v42 = vpop.xlane.xlu0 %41
    %v43 = vadd.f32 %v40, %v42
    %v44 = vrot.slane %v43, 4
    %v45 = vadd.f32 %v43, %v44
    %v46 = vrot.slane %v45, 2
    %v47 = vadd.f32 %v45, %v46
    %v48 = vrot.slane %v47, 1
    %v49 = vadd.f32 %v47, %v48
    %v50 = vld [vmem:[#allocation2] sm:$0x1]
    %v51 = vadd.f32 %v50, %v49
    %vm52 = vcmask 0
    %53 = vst.msk [vmem:[#allocation2] sm:$0x1] %vm52, %v51
    %v54 = vld [vmem:[%s2] sm:$0xff]
    %v55 = vld [vmem:[%s2 + $0x8] sm:$0xff]
    %v56 = vld [vmem:[%s3] sm:$0xff]
    %v57 = vld [vmem:[%s3 + $0x8] sm:$0xff]
    %v58 = vmax.f32 %v54, 0.0
    %v59 = vmax.f32 %v55, 0.0
    %v60 = vmul.f32 %v54, %v56
    %v61 = vmul.f32 %v55, %v57
    %v62 = vsub.f32 %v58, %v60
    %v63 = vsub.f32 %v59, %v61
    %v64 = vand.u32 2147483647, %v54
    %v65 = vand.u32 2147483647, %v55
    %v66 = vsub.f32 0.0, %v64
    %v67 = vsub.f32 0.0, %v65
    %v68 = vmul.f32 %v66, 1.442695
    %v69 = vpow.pop %v68
    %v70 = vmul.f32 %v67, 1.442695
    %v71 = vpow.pop %v70
    %v72 = vadd.f32 %v69, 1.0
    %v73 = vadd.f32 %v71, 1.0
    %v74 = vlog2.pop %v72
    %v75 = vmul.f32 %v74, 0.6931472
    %v76 = vlog2.pop %v73
    %v77 = vmul.f32 %v76, 0.6931472
    %v78 = vadd.f32 %v62, %v75
    %v79 = vadd.f32 %v63, %v77
    %v80 = vld [vmem:[%s4] sm:$0xff]
    %v81 = vld [vmem:[%s4 + $0x8] sm:$0xff]
    %v82 = vmul.f32 %v80, %v78
    %v83 = vmul.f32 %v81, %v79
    %v84 = vadd.f32 %v82, 0.0
    %v85 = vadd.f32 %v83, 0.0
    %vm86 = vcmask 7168
    %v87 = vsel %vm86, %v84, 0.0
    %v88 = vsel %vm86, %v85, 0.0
    %v89 = vadd.f32 %v87, %v88
    %v90 = vrot.slane %v89, 4
    %v91 = vadd.f32 %v89, %v90
    %v92 = vrot.slane %v91, 2
    %v93 = vadd.f32 %v91, %v92
    %v94 = vrot.slane %v93, 1
    %v95 = vadd.f32 %v93, %v94
    %v96 = vld [vmem:[#allocation4] sm:$0x1]
    %v97 = vadd.f32 %v96, %v95
    %98 = vst.msk [vmem:[#allocation4] sm:$0x1] %vm52, %v97
    // Predicated region
    $region26: #{transformer_forward.85} parent=1 // pred_check
      _
    $region27: #{transformer_forward.85} parent=1 // pred_check_branch
      %100 = sbr.rel (0) target = $region29
    $region28: #{transformer_forward.85} parent=1 // pred_region
      %s102 = ssub.s32 16, 16
      %103 = vsyncadd [#allocation3], %s102
      %s105 = sshll.u32 [#allocation2], 4
      %s106 = int_to_ptr.vmem [resolvable:$true] %s105
      %108 = dma.vmem_to_hbm [thread:$0]  %s106, 16, %s5, [#allocation3]
    $region29: #{transformer_forward.85} parent=1 // pred_fallthru
      _
    // Predicated region
    $region30: #{transformer_forward.85} parent=1 // pred_check
      _
    $region31: #{transformer_forward.85} parent=1 // pred_check_branch
      %110 = sbr.rel (0) target = $region33
    $region32: #{transformer_forward.85} parent=1 // pred_region
      %s112 = ssub.s32 16, 16
      %113 = vsyncadd [#allocation5], %s112
      %s115 = sshll.u32 [#allocation4], 4
      %s116 = int_to_ptr.vmem [resolvable:$true] %s115
      %118 = dma.vmem_to_hbm [thread:$0]  %s116, 16, %s6, [#allocation5]
    $region33: #{transformer_forward.85} parent=1 // pred_fallthru
      _
    // Predicated region
    $region34: #{transformer_forward.85} parent=1 // pred_check
      _
    $region35: #{transformer_forward.85} parent=1 // pred_check_branch
      %120 = sbr.rel (0) target = $region37
    $region36: #{transformer_forward.85} parent=1 // pred_region
      %121 = dma.done [#allocation3], 16
    $region37: #{transformer_forward.85} parent=1 // pred_fallthru
      _
    // Predicated region
    $region38: #{transformer_forward.85} parent=1 // pred_check
      _
    $region39: #{transformer_forward.85} parent=1 // pred_check_branch
      %123 = sbr.rel (0) target = $region41
    $region40: #{transformer_forward.85} parent=1 // pred_region
      %124 = dma.done [#allocation5], 16
    $region41: #{transformer_forward.85} parent=1 // pred_fallthru
      _
    %125 = vsyncpa [#allocation3], 1
    %126 = vsyncpa [#allocation5], 1

</llo_original>
